<compile_context>
chip_gen: v6e
topology: v6e:2x2x1
jax: 0.10.0
libtpu: 0.0.40
codegen_flags: <defaults>
</compile_context>

<pallas_src>
import functools

import jax
import jax.numpy as jnp
from jax.experimental import pallas as pl
from jax.experimental.pallas import tpu as pltpu

VMEM_LIMIT = 24 * 1024 * 1024


# ----------------------------------------------------------------------------
# Fused residual-block kernel
# ----------------------------------------------------------------------------
def _make_block_kernel(stride, Ho, Wo, Cin, Cmid, Cout, has_sc_conv):
    def kernel(x_ref, w1_ref, s1_ref, b1_ref, w2_ref, s2_ref, b2_ref, *rest):
        if has_sc_conv:
            (wsc_ref, ssc_ref, bsc_ref,
             out_ref, acc1_ref, mid_ref, acc2_ref) = rest
        else:
            out_ref, acc1_ref, mid_ref, acc2_ref = rest

        f32 = jnp.float32

        # -------- conv1 (3x3, stride) + bn1 + relu  ->  mid (VMEM scratch) ------
        if stride == 1:
            xv = x_ref[0]                                    # (Ho+2, Wo+2, Cin) bf16
            # W-direction im2col materialised once: (Ho+2, Wo, 3*Cin)
            xw = jnp.concatenate(
                [xv[:, 0:Wo, :], xv[:, 1:Wo + 1, :], xv[:, 2:Wo + 2, :]], axis=-1)
            acc1_ref[...] = jnp.zeros_like(acc1_ref)
            for dy in range(3):                              # only H offset varies (free)
                acc1_ref[...] += jnp.dot(
                    xw[dy:dy + Ho].reshape(Ho * Wo, 3 * Cin), w1_ref[dy],
                    preferred_element_type=f32)
        else:
            # even-phase im2col patches prepared in glue: (Ho*Wo, 9*Cin) bf16
            patches = x_ref[0]
            acc1_ref[...] = jnp.dot(patches, w1_ref[...], preferred_element_type=f32)

        mid = jnp.maximum(acc1_ref[...] * s1_ref[...] + b1_ref[...], 0.0)  # f32
        mid_ref[...] = jnp.zeros_like(mid_ref)               # zero padded border
        mid_ref[1:Ho + 1, 1:Wo + 1, :] = mid.reshape(Ho, Wo, Cmid)

        # -------- shortcut ------------------------------------------------------
        if has_sc_conv:
            if stride == 2:
                # centre tap (dy=dx=1) of each patch == x[2i, 2j, :]
                xc = x_ref[0][:, 4 * Cin:5 * Cin]            # (Ho*Wo, Cin) bf16
            else:
                xc = x_ref[0][1:Ho + 1, 1:Wo + 1, :].reshape(Ho * Wo, Cin)
            sc = jnp.dot(xc, wsc_ref[...], preferred_element_type=f32)
            sc = sc * ssc_ref[...] + bsc_ref[...]
        else:
            sc = x_ref[0][1:Ho + 1, 1:Wo + 1, :].reshape(Ho * Wo, Cin).astype(f32)

        # -------- conv2 (3x3, stride 1) + bn2 + add + relu ----------------------
        mp = mid_ref[...]                                    # (Ho+2, Wo+2, Cmid) f32
        mw = jnp.concatenate(
            [mp[:, 0:Wo, :], mp[:, 1:Wo + 1, :], mp[:, 2:Wo + 2, :]],
            axis=-1).astype(jnp.bfloat16)                    # (Ho+2, Wo, 3*Cmid)
        acc2_ref[...] = jnp.zeros_like(acc2_ref)
        for dy in range(3):
            acc2_ref[...] += jnp.dot(
                mw[dy:dy + Ho].reshape(Ho * Wo, 3 * Cmid), w2_ref[dy],
                preferred_element_type=f32)

        out = acc2_ref[...] * s2_ref[...] + b2_ref[...] + sc
        out = jnp.maximum(out, 0.0)
        out_ref[0] = out.reshape(Ho, Wo, Cout).astype(out_ref.dtype)

    return kernel


# ----------------------------------------------------------------------------
# Wrapper (glue: pad, even-phase im2col for stride 2, bf16 casts, BlockSpecs)
# ----------------------------------------------------------------------------
def _residual_block_call(x_nhwc, params, stride):
    N, H, W, Cin = x_nhwc.shape
    w1 = params["w1"]                      # (3, 3, Cin, Cmid)  HWIO
    w2 = params["w2"]                      # (3, 3, Cmid, Cout)
    Cmid, Cout = w1.shape[-1], w2.shape[-1]
    has_sc_conv = (stride != 1) or (Cin != Cout)
    if stride == 2:
        assert H % 2 == 0 and W % 2 == 0
    Ho, Wo = H // stride, W // stride

    x_pad = jnp.pad(x_nhwc, ((0, 0), (1, 1), (1, 1), (0, 0))).astype(jnp.bfloat16)

    if stride == 1:
        x_in = x_pad                                               # (N, H+2, W+2, Cin)
        x_spec = pl.BlockSpec((1, H + 2, W + 2, Cin), lambda n: (n, 0, 0, 0))
        w1_in = w1.reshape(3, 3 * Cin, Cmid).astype(jnp.bfloat16)
        w1_spec = pl.BlockSpec((3, 3 * Cin, Cmid), lambda n: (0, 0, 0))
    else:
        # Even-phase im2col: only the patches the stride-2 conv actually needs.
        slabs = [x_pad[:, dy:dy + 2 * Ho:2, dx:dx + 2 * Wo:2, :]
                 for dy in range(3) for dx in range(3)]
        x_in = jnp.concatenate(slabs, axis=-1).reshape(N, Ho * Wo, 9 * Cin)
        x_spec = pl.BlockSpec((1, Ho * Wo, 9 * Cin), lambda n: (n, 0, 0))
        w1_in = w1.reshape(9 * Cin, Cmid).astype(jnp.bfloat16)
        w1_spec = pl.BlockSpec((9 * Cin, Cmid), lambda n: (0, 0))

    def cvec(v, c):
        return v.reshape(1, c).astype(jnp.float32)

    args = [x_in, w1_in, cvec(params["s1"], Cmid), cvec(params["b1"], Cmid),
            w2.reshape(3, 3 * Cmid, Cout).astype(jnp.bfloat16),
            cvec(params["s2"], Cout), cvec(params["b2"], Cout)]
    in_specs = [x_spec, w1_spec,
                pl.BlockSpec((1, Cmid), lambda n: (0, 0)),
                pl.BlockSpec((1, Cmid), lambda n: (0, 0)),
                pl.BlockSpec((3, 3 * Cmid, Cout), lambda n: (0, 0, 0)),
                pl.BlockSpec((1, Cout), lambda n: (0, 0)),
                pl.BlockSpec((1, Cout), lambda n: (0, 0))]
    if has_sc_conv:
        args += [params["wsc"].astype(jnp.bfloat16),
                 cvec(params["ssc"], Cout), cvec(params["bsc"], Cout)]
        in_specs += [pl.BlockSpec((Cin, Cout), lambda n: (0, 0)),
                     pl.BlockSpec((1, Cout), lambda n: (0, 0)),
                     pl.BlockSpec((1, Cout), lambda n: (0, 0))]

    kernel = _make_block_kernel(stride, Ho, Wo, Cin, Cmid, Cout, has_sc_conv)
    return pl.pallas_call(
        kernel,
        out_shape=jax.ShapeDtypeStruct((N, Ho, Wo, Cout), jnp.float32),
        grid_spec=pltpu.PrefetchScalarGridSpec(
            num_scalar_prefetch=0,
            grid=(N,),
            in_specs=in_specs,
            out_specs=pl.BlockSpec((1, Ho, Wo, Cout), lambda n: (n, 0, 0, 0)),
            scratch_shapes=[
                pltpu.VMEM((Ho * Wo, Cmid), jnp.float32),         # conv1 accumulator
                pltpu.VMEM((Ho + 2, Wo + 2, Cmid), jnp.float32),  # padded mid activation
                pltpu.VMEM((Ho * Wo, Cout), jnp.float32),         # conv2 accumulator
            ]),
        compiler_params=pltpu.CompilerParams(
            dimension_semantics=("parallel",),
            vmem_limit_bytes=VMEM_LIMIT),
    )(*args)


@functools.partial(jax.jit, static_argnames=("stride",))
def residual_block(x_nhwc, params, *, stride=1):
    """ResidualBlock.forward on NHWC f32 input -> NHWC f32 output."""
    return _residual_block_call(x_nhwc, params, stride)


# ----------------------------------------------------------------------------
# Parameter init (BatchNorm folded with running stats -> inference semantics)
# ----------------------------------------------------------------------------
def init_residual_block(key, in_planes, planes, stride=1, eps=1e-5):
    def conv_w(k, kh, kw, cin, cout):
        fan_in = kh * kw * cin
        std = (2.0 / fan_in) ** 0.5
        return jax.random.normal(k, (kh, kw, cin, cout), jnp.float32) * std

    def bn_fold(k, c):
        k1, k2, k3, k4 = jax.random.split(k, 4)
        gamma = 1.0 + 0.1 * jax.random.normal(k1, (c,), jnp.float32)
        beta = 0.1 * jax.random.normal(k2, (c,), jnp.float32)
        mean = 0.1 * jax.random.normal(k3, (c,), jnp.float32)
        var = 1.0 + 0.1 * jax.random.uniform(k4, (c,), jnp.float32)
        scale = gamma / jnp.sqrt(var + eps)
        bias = beta - mean * scale
        return scale, bias

    keys = jax.random.split(key, 6)
    p = {"w1": conv_w(keys[0], 3, 3, in_planes, planes)}
    p["s1"], p["b1"] = bn_fold(keys[1], planes)
    p["w2"] = conv_w(keys[2], 3, 3, planes, planes)
    p["s2"], p["b2"] = bn_fold(keys[3], planes)
    if stride != 1 or in_planes != planes:
        p["wsc"] = conv_w(keys[4], 1, 1, in_planes, planes)[0, 0]   # (Cin, Cout)
        p["ssc"], p["bsc"] = bn_fold(keys[5], planes)
    return p


# ----------------------------------------------------------------------------
if __name__ == "__main__":
    key = jax.random.PRNGKey(0)
    kx, kA, kB = jax.random.split(key, 3)

    N, Cin, H, W = 2, 64, 16, 16
    x_nchw = jax.random.normal(kx, (N, Cin, H, W), jnp.float32)   # PyTorch NCHW
    x = jnp.transpose(x_nchw, (0, 2, 3, 1))                       # -> NHWC once

    # Block A: identity shortcut   (stride=1, in_planes == planes)
    pA = init_residual_block(kA, in_planes=Cin, planes=64, stride=1)
    # Block B: projection shortcut (stride=2, in_planes != planes)
    pB = init_residual_block(kB, in_planes=64, planes=128, stride=2)

    yA = residual_block(x, pA, stride=1)       # (2, 16, 16, 64)
    yB = residual_block(yA, pB, stride=2)      # (2, 8, 8, 128)
    yB = jax.block_until_ready(yB)

    assert yA.shape == (N, H, W, 64), yA.shape
    assert yB.shape == (N, H // 2, W // 2, 128), yB.shape
    assert bool(jnp.all(jnp.isfinite(yA))) and bool(jnp.all(jnp.isfinite(yB)))
    assert bool(jnp.all(yA >= 0.0)) and bool(jnp.all(yB >= 0.0))   # ReLU outputs
    print("KERNEL_OK")
</pallas_src>

<mosaic_0001>
module attributes {stable_mosaic.version = 11 : i64} {
  func.func @kernel(%arg0: i32, %arg1: memref<1x18x18x64xbf16, #tpu.memory_space<vmem>>, %arg2: memref<3x192x64xbf16, #tpu.memory_space<vmem>>, %arg3: memref<1x64xf32, #tpu.memory_space<vmem>>, %arg4: memref<1x64xf32, #tpu.memory_space<vmem>>, %arg5: memref<3x192x64xbf16, #tpu.memory_space<vmem>>, %arg6: memref<1x64xf32, #tpu.memory_space<vmem>>, %arg7: memref<1x64xf32, #tpu.memory_space<vmem>>, %arg8: memref<1x16x16x64xf32, #tpu.memory_space<vmem>>, %arg9: memref<256x64xf32, #tpu.memory_space<vmem>>, %arg10: memref<18x18x64xf32, #tpu.memory_space<vmem>>, %arg11: memref<256x64xf32, #tpu.memory_space<vmem>>) attributes {dimension_semantics = [#tpu.dimension_semantics<parallel>], iteration_bounds = array<i64: 2>, scalar_prefetch = 0 : i64, scratch_operands = 3 : i64, tpu.core_type = #tpu.core_type<tc>, window_params = [{transform_indices = @transform_0, window_bounds = array<i64: 1, 18, 18, 64>}, {pipeline_mode = #tpu.pipeline_mode<synchronous>, transform_indices = @transform_1, window_bounds = array<i64: 3, 192, 64>}, {pipeline_mode = #tpu.pipeline_mode<synchronous>, transform_indices = @transform_2, window_bounds = array<i64: 1, 64>}, {pipeline_mode = #tpu.pipeline_mode<synchronous>, transform_indices = @transform_3, window_bounds = array<i64: 1, 64>}, {pipeline_mode = #tpu.pipeline_mode<synchronous>, transform_indices = @transform_4, window_bounds = array<i64: 3, 192, 64>}, {pipeline_mode = #tpu.pipeline_mode<synchronous>, transform_indices = @transform_5, window_bounds = array<i64: 1, 64>}, {pipeline_mode = #tpu.pipeline_mode<synchronous>, transform_indices = @transform_6, window_bounds = array<i64: 1, 64>}, {transform_indices = @transform_7, window_bounds = array<i64: 1, 16, 16, 64>}]} {
    %c0 = arith.constant 0 : index
    %c0_0 = arith.constant 0 : index
    %c0_1 = arith.constant 0 : index
    %c0_2 = arith.constant 0 : index
    %0 = vector.load %arg1[%c0, %c0_0, %c0_1, %c0_2] : memref<1x18x18x64xbf16, #tpu.memory_space<vmem>>, vector<1x18x18x64xbf16>
    %1 = vector.shape_cast %0 : vector<1x18x18x64xbf16> to vector<18x18x64xbf16>
    %2 = vector.extract_strided_slice %1 {offsets = [0, 0, 0], sizes = [18, 16, 64], strides = [1, 1, 1]} : vector<18x18x64xbf16> to vector<18x16x64xbf16>
    %3 = vector.extract_strided_slice %1 {offsets = [0, 1, 0], sizes = [18, 16, 64], strides = [1, 1, 1]} : vector<18x18x64xbf16> to vector<18x16x64xbf16>
    %4 = vector.extract_strided_slice %1 {offsets = [0, 2, 0], sizes = [18, 16, 64], strides = [1, 1, 1]} : vector<18x18x64xbf16> to vector<18x16x64xbf16>
    %5 = tpu.concatenate %2, %3, %4 in 2 : vector<18x16x64xbf16>, vector<18x16x64xbf16>, vector<18x16x64xbf16> -> vector<18x16x192xbf16>
    %cst = arith.constant 0.000000e+00 : f32
    %6 = vector.broadcast %cst : f32 to vector<256x64xf32>
    %c0_3 = arith.constant 0 : index
    %c0_4 = arith.constant 0 : index
    %7 = vector.load %arg9[%c0_3, %c0_4] : memref<256x64xf32, #tpu.memory_space<vmem>>, vector<256x64xf32>
    tpu.vector_store %arg9[%c0_3, %c0_4], %6 {strides = array<i32>} : memref<256x64xf32, #tpu.memory_space<vmem>>, vector<256x64xf32>,
    %c0_5 = arith.constant 0 : index
    %c0_6 = arith.constant 0 : index
    %8 = vector.load %arg9[%c0_5, %c0_6] : memref<256x64xf32, #tpu.memory_space<vmem>>, vector<256x64xf32>
    %9 = vector.extract_strided_slice %5 {offsets = [0, 0, 0], sizes = [16, 16, 192], strides = [1, 1, 1]} : vector<18x16x192xbf16> to vector<16x16x192xbf16>
    %10 = vector.shape_cast %9 : vector<16x16x192xbf16> to vector<256x192xbf16>
    %c0_7 = arith.constant 0 : index
    %c0_8 = arith.constant 0 : index
    %c0_9 = arith.constant 0 : index
    %11 = vector.load %arg2[%c0_7, %c0_8, %c0_9] : memref<3x192x64xbf16, #tpu.memory_space<vmem>>, vector<1x192x64xbf16>
    %12 = vector.shape_cast %11 : vector<1x192x64xbf16> to vector<192x64xbf16>
    %cst_10 = arith.constant dense<0.000000e+00> : vector<256x64xf32>
    %13 = tpu.matmul %10, %12, %cst_10 {dimension_numbers = #tpu.dot_dimension_numbers<[1], [0], [0], [1], [0, 0, 1, 1], [], []>} : vector<256x192xbf16>, vector<192x64xbf16>, vector<256x64xf32> -> vector<256x64xf32>
    %14 = arith.addf %8, %13 : vector<256x64xf32>
    %c0_11 = arith.constant 0 : index
    %c0_12 = arith.constant 0 : index
    %15 = vector.load %arg9[%c0_11, %c0_12] : memref<256x64xf32, #tpu.memory_space<vmem>>, vector<256x64xf32>
    tpu.vector_store %arg9[%c0_11, %c0_12], %14 {strides = array<i32>} : memref<256x64xf32, #tpu.memory_space<vmem>>, vector<256x64xf32>,
    %c0_13 = arith.constant 0 : index
    %c0_14 = arith.constant 0 : index
    %16 = vector.load %arg9[%c0_13, %c0_14] : memref<256x64xf32, #tpu.memory_space<vmem>>, vector<256x64xf32>
    %17 = vector.extract_strided_slice %5 {offsets = [1, 0, 0], sizes = [16, 16, 192], strides = [1, 1, 1]} : vector<18x16x192xbf16> to vector<16x16x192xbf16>
    %18 = vector.shape_cast %17 : vector<16x16x192xbf16> to vector<256x192xbf16>
    %c1 = arith.constant 1 : index
    %c0_15 = arith.constant 0 : index
    %c0_16 = arith.constant 0 : index
    %19 = vector.load %arg2[%c1, %c0_15, %c0_16] : memref<3x192x64xbf16, #tpu.memory_space<vmem>>, vector<1x192x64xbf16>
    %20 = vector.shape_cast %19 : vector<1x192x64xbf16> to vector<192x64xbf16>
    %cst_17 = arith.constant dense<0.000000e+00> : vector<256x64xf32>
    %21 = tpu.matmul %18, %20, %cst_17 {dimension_numbers = #tpu.dot_dimension_numbers<[1], [0], [0], [1], [0, 0, 1, 1], [], []>} : vector<256x192xbf16>, vector<192x64xbf16>, vector<256x64xf32> -> vector<256x64xf32>
    %22 = arith.addf %16, %21 : vector<256x64xf32>
    %c0_18 = arith.constant 0 : index
    %c0_19 = arith.constant 0 : index
    %23 = vector.load %arg9[%c0_18, %c0_19] : memref<256x64xf32, #tpu.memory_space<vmem>>, vector<256x64xf32>
    tpu.vector_store %arg9[%c0_18, %c0_19], %22 {strides = array<i32>} : memref<256x64xf32, #tpu.memory_space<vmem>>, vector<256x64xf32>,
    %c0_20 = arith.constant 0 : index
    %c0_21 = arith.constant 0 : index
    %24 = vector.load %arg9[%c0_20, %c0_21] : memref<256x64xf32, #tpu.memory_space<vmem>>, vector<256x64xf32>
    %25 = vector.extract_strided_slice %5 {offsets = [2, 0, 0], sizes = [16, 16, 192], strides = [1, 1, 1]} : vector<18x16x192xbf16> to vector<16x16x192xbf16>
    %26 = vector.shape_cast %25 : vector<16x16x192xbf16> to vector<256x192xbf16>
    %c2 = arith.constant 2 : index
    %c0_22 = arith.constant 0 : index
    %c0_23 = arith.constant 0 : index
    %27 = vector.load %arg2[%c2, %c0_22, %c0_23] : memref<3x192x64xbf16, #tpu.memory_space<vmem>>, vector<1x192x64xbf16>
    %28 = vector.shape_cast %27 : vector<1x192x64xbf16> to vector<192x64xbf16>
    %cst_24 = arith.constant dense<0.000000e+00> : vector<256x64xf32>
    %29 = tpu.matmul %26, %28, %cst_24 {dimension_numbers = #tpu.dot_dimension_numbers<[1], [0], [0], [1], [0, 0, 1, 1], [], []>} : vector<256x192xbf16>, vector<192x64xbf16>, vector<256x64xf32> -> vector<256x64xf32>
    %30 = arith.addf %24, %29 : vector<256x64xf32>
    %c0_25 = arith.constant 0 : index
    %c0_26 = arith.constant 0 : index
    %31 = vector.load %arg9[%c0_25, %c0_26] : memref<256x64xf32, #tpu.memory_space<vmem>>, vector<256x64xf32>
    tpu.vector_store %arg9[%c0_25, %c0_26], %30 {strides = array<i32>} : memref<256x64xf32, #tpu.memory_space<vmem>>, vector<256x64xf32>,
    %c0_27 = arith.constant 0 : index
    %c0_28 = arith.constant 0 : index
    %32 = vector.load %arg9[%c0_27, %c0_28] : memref<256x64xf32, #tpu.memory_space<vmem>>, vector<256x64xf32>
    %c0_29 = arith.constant 0 : index
    %c0_30 = arith.constant 0 : index
    %33 = vector.load %arg3[%c0_29, %c0_30] : memref<1x64xf32, #tpu.memory_space<vmem>>, vector<1x64xf32>
    %34 = vector.broadcast %33 : vector<1x64xf32> to vector<256x64xf32>
    %35 = arith.mulf %32, %34 : vector<256x64xf32>
    %c0_31 = arith.constant 0 : index
    %c0_32 = arith.constant 0 : index
    %36 = vector.load %arg4[%c0_31, %c0_32] : memref<1x64xf32, #tpu.memory_space<vmem>>, vector<1x64xf32>
    %37 = vector.broadcast %36 : vector<1x64xf32> to vector<256x64xf32>
    %38 = arith.addf %35, %37 : vector<256x64xf32>
    %cst_33 = arith.constant 0.000000e+00 : f32
    %39 = vector.broadcast %cst_33 : f32 to vector<256x64xf32>
    %40 = arith.maximumf %38, %39 : vector<256x64xf32>
    %cst_34 = arith.constant 0.000000e+00 : f32
    %41 = vector.broadcast %cst_34 : f32 to vector<18x18x64xf32>
    %c0_35 = arith.constant 0 : index
    %c0_36 = arith.constant 0 : index
    %c0_37 = arith.constant 0 : index
    %42 = vector.load %arg10[%c0_35, %c0_36, %c0_37] : memref<18x18x64xf32, #tpu.memory_space<vmem>>, vector<18x18x64xf32>
    tpu.vector_store %arg10[%c0_35, %c0_36, %c0_37], %41 {strides = array<i32>} : memref<18x18x64xf32, #tpu.memory_space<vmem>>, vector<18x18x64xf32>,
    %43 = vector.shape_cast %40 : vector<256x64xf32> to vector<16x16x64xf32>
    %c1_38 = arith.constant 1 : index
    %c1_39 = arith.constant 1 : index
    %c0_40 = arith.constant 0 : index
    %44 = vector.load %arg10[%c1_38, %c1_39, %c0_40] : memref<18x18x64xf32, #tpu.memory_space<vmem>>, vector<16x16x64xf32>
    tpu.vector_store %arg10[%c1_38, %c1_39, %c0_40], %43 {strides = array<i32>} : memref<18x18x64xf32, #tpu.memory_space<vmem>>, vector<16x16x64xf32>,
    %c0_41 = arith.constant 0 : index
    %c0_42 = arith.constant 0 : index
    %c0_43 = arith.constant 0 : index
    %c0_44 = arith.constant 0 : index
    %45 = vector.load %arg1[%c0_41, %c0_42, %c0_43, %c0_44] : memref<1x18x18x64xbf16, #tpu.memory_space<vmem>>, vector<1x18x18x64xbf16>
    %46 = vector.shape_cast %45 : vector<1x18x18x64xbf16> to vector<18x18x64xbf16>
    %47 = vector.extract_strided_slice %46 {offsets = [1, 1, 0], sizes = [16, 16, 64], strides = [1, 1, 1]} : vector<18x18x64xbf16> to vector<16x16x64xbf16>
    %48 = vector.shape_cast %47 : vector<16x16x64xbf16> to vector<256x64xbf16>
    %49 = arith.extf %48 : vector<256x64xbf16> to vector<256x64xf32>
    %c0_45 = arith.constant 0 : index
    %c0_46 = arith.constant 0 : index
    %c0_47 = arith.constant 0 : index
    %50 = vector.load %arg10[%c0_45, %c0_46, %c0_47] : memref<18x18x64xf32, #tpu.memory_space<vmem>>, vector<18x18x64xf32>
    %51 = vector.extract_strided_slice %50 {offsets = [0, 0, 0], sizes = [18, 16, 64], strides = [1, 1, 1]} : vector<18x18x64xf32> to vector<18x16x64xf32>
    %52 = vector.extract_strided_slice %50 {offsets = [0, 1, 0], sizes = [18, 16, 64], strides = [1, 1, 1]} : vector<18x18x64xf32> to vector<18x16x64xf32>
    %53 = vector.extract_strided_slice %50 {offsets = [0, 2, 0], sizes = [18, 16, 64], strides = [1, 1, 1]} : vector<18x18x64xf32> to vector<18x16x64xf32>
    %54 = tpu.concatenate %51, %52, %53 in 2 : vector<18x16x64xf32>, vector<18x16x64xf32>, vector<18x16x64xf32> -> vector<18x16x192xf32>
    %55 = arith.truncf %54 : vector<18x16x192xf32> to vector<18x16x192xbf16>
    %cst_48 = arith.constant 0.000000e+00 : f32
    %56 = vector.broadcast %cst_48 : f32 to vector<256x64xf32>
    %c0_49 = arith.constant 0 : index
    %c0_50 = arith.constant 0 : index
    %57 = vector.load %arg11[%c0_49, %c0_50] : memref<256x64xf32, #tpu.memory_space<vmem>>, vector<256x64xf32>
    tpu.vector_store %arg11[%c0_49, %c0_50], %56 {strides = array<i32>} : memref<256x64xf32, #tpu.memory_space<vmem>>, vector<256x64xf32>,
    %c0_51 = arith.constant 0 : index
    %c0_52 = arith.constant 0 : index
    %58 = vector.load %arg11[%c0_51, %c0_52] : memref<256x64xf32, #tpu.memory_space<vmem>>, vector<256x64xf32>
    %59 = vector.extract_strided_slice %55 {offsets = [0, 0, 0], sizes = [16, 16, 192], strides = [1, 1, 1]} : vector<18x16x192xbf16> to vector<16x16x192xbf16>
    %60 = vector.shape_cast %59 : vector<16x16x192xbf16> to vector<256x192xbf16>
    %c0_53 = arith.constant 0 : index
    %c0_54 = arith.constant 0 : index
    %c0_55 = arith.constant 0 : index
    %61 = vector.load %arg5[%c0_53, %c0_54, %c0_55] : memref<3x192x64xbf16, #tpu.memory_space<vmem>>, vector<1x192x64xbf16>
    %62 = vector.shape_cast %61 : vector<1x192x64xbf16> to vector<192x64xbf16>
    %cst_56 = arith.constant dense<0.000000e+00> : vector<256x64xf32>
    %63 = tpu.matmul %60, %62, %cst_56 {dimension_numbers = #tpu.dot_dimension_numbers<[1], [0], [0], [1], [0, 0, 1, 1], [], []>} : vector<256x192xbf16>, vector<192x64xbf16>, vector<256x64xf32> -> vector<256x64xf32>
    %64 = arith.addf %58, %63 : vector<256x64xf32>
    %c0_57 = arith.constant 0 : index
    %c0_58 = arith.constant 0 : index
    %65 = vector.load %arg11[%c0_57, %c0_58] : memref<256x64xf32, #tpu.memory_space<vmem>>, vector<256x64xf32>
    tpu.vector_store %arg11[%c0_57, %c0_58], %64 {strides = array<i32>} : memref<256x64xf32, #tpu.memory_space<vmem>>, vector<256x64xf32>,
    %c0_59 = arith.constant 0 : index
    %c0_60 = arith.constant 0 : index
    %66 = vector.load %arg11[%c0_59, %c0_60] : memref<256x64xf32, #tpu.memory_space<vmem>>, vector<256x64xf32>
    %67 = vector.extract_strided_slice %55 {offsets = [1, 0, 0], sizes = [16, 16, 192], strides = [1, 1, 1]} : vector<18x16x192xbf16> to vector<16x16x192xbf16>
    %68 = vector.shape_cast %67 : vector<16x16x192xbf16> to vector<256x192xbf16>
    %c1_61 = arith.constant 1 : index
    %c0_62 = arith.constant 0 : index
    %c0_63 = arith.constant 0 : index
    %69 = vector.load %arg5[%c1_61, %c0_62, %c0_63] : memref<3x192x64xbf16, #tpu.memory_space<vmem>>, vector<1x192x64xbf16>
    %70 = vector.shape_cast %69 : vector<1x192x64xbf16> to vector<192x64xbf16>
    %cst_64 = arith.constant dense<0.000000e+00> : vector<256x64xf32>
    %71 = tpu.matmul %68, %70, %cst_64 {dimension_numbers = #tpu.dot_dimension_numbers<[1], [0], [0], [1], [0, 0, 1, 1], [], []>} : vector<256x192xbf16>, vector<192x64xbf16>, vector<256x64xf32> -> vector<256x64xf32>
    %72 = arith.addf %66, %71 : vector<256x64xf32>
    %c0_65 = arith.constant 0 : index
    %c0_66 = arith.constant 0 : index
    %73 = vector.load %arg11[%c0_65, %c0_66] : memref<256x64xf32, #tpu.memory_space<vmem>>, vector<256x64xf32>
    tpu.vector_store %arg11[%c0_65, %c0_66], %72 {strides = array<i32>} : memref<256x64xf32, #tpu.memory_space<vmem>>, vector<256x64xf32>,
    %c0_67 = arith.constant 0 : index
    %c0_68 = arith.constant 0 : index
    %74 = vector.load %arg11[%c0_67, %c0_68] : memref<256x64xf32, #tpu.memory_space<vmem>>, vector<256x64xf32>
    %75 = vector.extract_strided_slice %55 {offsets = [2, 0, 0], sizes = [16, 16, 192], strides = [1, 1, 1]} : vector<18x16x192xbf16> to vector<16x16x192xbf16>
    %76 = vector.shape_cast %75 : vector<16x16x192xbf16> to vector<256x192xbf16>
    %c2_69 = arith.constant 2 : index
    %c0_70 = arith.constant 0 : index
    %c0_71 = arith.constant 0 : index
    %77 = vector.load %arg5[%c2_69, %c0_70, %c0_71] : memref<3x192x64xbf16, #tpu.memory_space<vmem>>, vector<1x192x64xbf16>
    %78 = vector.shape_cast %77 : vector<1x192x64xbf16> to vector<192x64xbf16>
    %cst_72 = arith.constant dense<0.000000e+00> : vector<256x64xf32>
    %79 = tpu.matmul %76, %78, %cst_72 {dimension_numbers = #tpu.dot_dimension_numbers<[1], [0], [0], [1], [0, 0, 1, 1], [], []>} : vector<256x192xbf16>, vector<192x64xbf16>, vector<256x64xf32> -> vector<256x64xf32>
    %80 = arith.addf %74, %79 : vector<256x64xf32>
    %c0_73 = arith.constant 0 : index
    %c0_74 = arith.constant 0 : index
    %81 = vector.load %arg11[%c0_73, %c0_74] : memref<256x64xf32, #tpu.memory_space<vmem>>, vector<256x64xf32>
    tpu.vector_store %arg11[%c0_73, %c0_74], %80 {strides = array<i32>} : memref<256x64xf32, #tpu.memory_space<vmem>>, vector<256x64xf32>,
    %c0_75 = arith.constant 0 : index
    %c0_76 = arith.constant 0 : index
    %82 = vector.load %arg11[%c0_75, %c0_76] : memref<256x64xf32, #tpu.memory_space<vmem>>, vector<256x64xf32>
    %c0_77 = arith.constant 0 : index
    %c0_78 = arith.constant 0 : index
    %83 = vector.load %arg6[%c0_77, %c0_78] : memref<1x64xf32, #tpu.memory_space<vmem>>, vector<1x64xf32>
    %84 = vector.broadcast %83 : vector<1x64xf32> to vector<256x64xf32>
    %85 = arith.mulf %82, %84 : vector<256x64xf32>
    %c0_79 = arith.constant 0 : index
    %c0_80 = arith.constant 0 : index
    %86 = vector.load %arg7[%c0_79, %c0_80] : memref<1x64xf32, #tpu.memory_space<vmem>>, vector<1x64xf32>
    %87 = vector.broadcast %86 : vector<1x64xf32> to vector<256x64xf32>
    %88 = arith.addf %85, %87 : vector<256x64xf32>
    %89 = arith.addf %88, %49 : vector<256x64xf32>
    %cst_81 = arith.constant 0.000000e+00 : f32
    %90 = vector.broadcast %cst_81 : f32 to vector<256x64xf32>
    %91 = arith.maximumf %89, %90 : vector<256x64xf32>
    %92 = vector.shape_cast %91 : vector<256x64xf32> to vector<16x16x64xf32>
    %c0_82 = arith.constant 0 : index
    %c0_83 = arith.constant 0 : index
    %c0_84 = arith.constant 0 : index
    %c0_85 = arith.constant 0 : index
    %93 = vector.load %arg8[%c0_82, %c0_83, %c0_84, %c0_85] : memref<1x16x16x64xf32, #tpu.memory_space<vmem>>, vector<1x16x16x64xf32>
    %94 = vector.shape_cast %93 : vector<1x16x16x64xf32> to vector<16x16x64xf32>
    %95 = vector.shape_cast %92 : vector<16x16x64xf32> to vector<1x16x16x64xf32>
    tpu.vector_store %arg8[%c0_82, %c0_83, %c0_84, %c0_85], %95 {strides = array<i32>} : memref<1x16x16x64xf32, #tpu.memory_space<vmem>>, vector<1x16x16x64xf32>,
    return
  }
  func.func @transform_0(%arg0: i32) -> (i32, i32, i32, i32) {
    %c0_i32 = arith.constant 0 : i32
    %c0_i32_0 = arith.constant 0 : i32
    %c0_i32_1 = arith.constant 0 : i32
    %c0_i32_2 = arith.constant 0 : i32
    return %arg0, %c0_i32, %c0_i32_0, %c0_i32_1 : i32, i32, i32, i32
  }
  func.func @transform_1(%arg0: i32) -> (i32, i32, i32) {
    %c0_i32 = arith.constant 0 : i32
    %c0_i32_0 = arith.constant 0 : i32
    %c0_i32_1 = arith.constant 0 : i32
    %c0_i32_2 = arith.constant 0 : i32
    return %c0_i32, %c0_i32_0, %c0_i32_1 : i32, i32, i32
  }
  func.func @transform_2(%arg0: i32) -> (i32, i32) {
    %c0_i32 = arith.constant 0 : i32
    %c0_i32_0 = arith.constant 0 : i32
    %c0_i32_1 = arith.constant 0 : i32
    return %c0_i32, %c0_i32_0 : i32, i32
  }
  func.func @transform_3(%arg0: i32) -> (i32, i32) {
    %c0_i32 = arith.constant 0 : i32
    %c0_i32_0 = arith.constant 0 : i32
    %c0_i32_1 = arith.constant 0 : i32
    return %c0_i32, %c0_i32_0 : i32, i32
  }
  func.func @transform_4(%arg0: i32) -> (i32, i32, i32) {
    %c0_i32 = arith.constant 0 : i32
    %c0_i32_0 = arith.constant 0 : i32
    %c0_i32_1 = arith.constant 0 : i32
    %c0_i32_2 = arith.constant 0 : i32
    return %c0_i32, %c0_i32_0, %c0_i32_1 : i32, i32, i32
  }
  func.func @transform_5(%arg0: i32) -> (i32, i32) {
    %c0_i32 = arith.constant 0 : i32
    %c0_i32_0 = arith.constant 0 : i32
    %c0_i32_1 = arith.constant 0 : i32
    return %c0_i32, %c0_i32_0 : i32, i32
  }
  func.func @transform_6(%arg0: i32) -> (i32, i32) {
    %c0_i32 = arith.constant 0 : i32
    %c0_i32_0 = arith.constant 0 : i32
    %c0_i32_1 = arith.constant 0 : i32
    return %c0_i32, %c0_i32_0 : i32, i32
  }
  func.func @transform_7(%arg0: i32) -> (i32, i32, i32, i32) {
    %c0_i32 = arith.constant 0 : i32
    %c0_i32_0 = arith.constant 0 : i32
    %c0_i32_1 = arith.constant 0 : i32
    %c0_i32_2 = arith.constant 0 : i32
    return %arg0, %c0_i32, %c0_i32_0, %c0_i32_1 : i32, i32, i32, i32
  }
}

</mosaic_0001>

<llo_original>
// kernel: residual_block.1
$region0: #{residual_block.1}
  #allocation0 [shape = 'u32[]', space=smem, size = 0x4, offset = 0x4, fixed_abs, tag = 'smem constant byte address 0x4 - core index']
  #allocation1 [shape = 'u32[144,128]{1,0:T(1,128)}', space=vmem, size = 0x12000, scoped, tag = 'internal scratch']
  #allocation2 [shape = 'f32[256,64]{1,0:T(8,128)}', space=vmem, size = 0x20000, scoped, tag = 'scratch operand']
  #allocation3 [shape = 'f32[18,18,64]{2,1,0:T(8,128)}', space=vmem, size = 0x36000, scoped, tag = 'scratch operand']
  #allocation4 [shape = 'f32[256,64]{1,0:T(8,128)}', space=vmem, size = 0x20000, scoped, tag = 'scratch operand']
  %s0 = inlined_call_operand.vmem [shape: bf16[2,18,18,64], index: 0, kind: input, shape index: {}]
  %s1 = inlined_call_operand.vmem [shape: bf16[3,192,64], index: 1, kind: input, shape index: {}]
  %s2 = inlined_call_operand.vmem [shape: f32[1,64], index: 2, kind: input, shape index: {}]
  %s3 = inlined_call_operand.vmem [shape: f32[1,64], index: 3, kind: input, shape index: {}]
  %s4 = inlined_call_operand.vmem [shape: bf16[3,192,64], index: 4, kind: input, shape index: {}]
  %s5 = inlined_call_operand.vmem [shape: f32[1,64], index: 5, kind: input, shape index: {}]
  %s6 = inlined_call_operand.vmem [shape: f32[1,64], index: 6, kind: input, shape index: {}]
  %s7 = inlined_call_operand.hbm [shape: f32[2,16,16,64], index: 7, kind: output, shape index: {}]
  %s8 = sld [smem:[#allocation0]]
  $region61: #{residual_block.1} parent=0
    _
  %s10 = ssub.s32 1, %s8
  %s11 = scalar_select 0, %s10, %s8
  $region1: #{residual_block.1} parent=0
    #allocation5 [shape = 'u8[262144]{0}', space=vmem, size = 0x40000, scoped, tag = 'output window, operand 0']
    #allocation6 [shape = 's32[2]{0}', space=sflag, size = 0x8, scoped, tag = 'scoped memory for residual_block.1']
    %12 = vsyncpa [#allocation6], 0
    %s13 = scalar_lea.sflag [#allocation6], 1
    %14 = vsyncpa %s13, 0
    loop: start=0, step=1, limit=4
    $region2: #{residual_block.1} parent=1 // loop_pre_header
      _
    $region3: #{residual_block.1} parent=1 // loop_header
      %s16 = sphi 0, %s20
      %p17 = scmp.ge.s32.totalorder %s16, 4
      %s26 = sphi 0, %s28
      %s29 = sphi 0, %s26
      %s30 = sphi 0, %s29
      %s46 = sphi 0, %s30
      %s50 = sphi 0, %s50
      %s52 = sphi 0, %s50
      %s53 = sphi 0, %s52
      %s67 = sphi 0, %s53
      %s71 = sphi 0, %s71
      %s73 = sphi 0, %s71
      %s74 = sphi 0, %s73
      %s88 = sphi 0, %s74
      %s92 = sphi 0, %s92
      %s94 = sphi 0, %s92
      %s95 = sphi 0, %s94
      %s109 = sphi 0, %s95
      %s113 = sphi 0, %s113
      %s115 = sphi 0, %s113
      %s116 = sphi 0, %s115
      %s130 = sphi 0, %s116
      %s134 = sphi 0, %s134
      %s136 = sphi 0, %s134
      %s137 = sphi 0, %s136
      %s151 = sphi 0, %s137
      %s155 = sphi 0, %s155
      %s157 = sphi 0, %s155
      %s158 = sphi 0, %s157
      %s172 = sphi 0, %s158
      %s178 = sphi 0, %s180
      %s181 = sphi 0, %s178
      %s182 = sphi 0, %s181
      %s198 = sphi 0, %s182
    $region4: #{residual_block.1} parent=1 // loop_header_branch
      %19 = sbr.rel (%p17) target = $region8
    $region5: #{residual_block.1} parent=1 // loop_body
      %s21 = ssub.s32 %s16, 1
      %s22 = ssub.s32 %s16, 2
      %s23 = sadd.s32 %s16, 1
      %s24 = ssub.s32 %s16, %s23
      %p25 = scmp.eq.s32.totalorder %s24, 0
      %s27 = sadd.s32 %s26, 1
      %s28 = scalar_select %p25, %s26, %s27
      %p31 = pneg %p25
      %p32 = scmp.eq.s32.totalorder %s16, 1
      %p33 = por %p31, %p32
      %p34 = scmp.ne.s32.totalorder %s26, %s29
      %p35 = scmp.eq.s32.totalorder %s16, 0
      %p36 = por %p34, %p35
      %p37 = scmp.ne.s32.totalorder %s26, %s29
      %p38 = scmp.eq.s32.totalorder %s21, 1
      %p39 = por %p37, %p38
      %p40 = scmp.ne.s32.totalorder %s29, %s30
      %p41 = scmp.eq.s32.totalorder %s21, 0
      %p42 = por %p40, %p41
      %p43 = scmp.ne.s32.totalorder %s29, %s30
      %p44 = scmp.eq.s32.totalorder %s22, 1
      %p45 = por %p43, %p44
      %p47 = scmp.ne.s32.totalorder %s30, %s46
      %p48 = scmp.eq.s32.totalorder %s22, 0
      %p49 = por %p47, %p48
      %s51 = sadd.s32 %s50, 1
      %p54 = scmp.eq.s32.totalorder %s16, 1
      %p55 = scmp.ne.s32.totalorder %s50, %s52
      %p56 = scmp.eq.s32.totalorder %s16, 0
      %p57 = por %p55, %p56
      %p58 = scmp.ne.s32.totalorder %s50, %s52
      %p59 = scmp.eq.s32.totalorder %s21, 1
      %p60 = por %p58, %p59
      %p61 = scmp.ne.s32.totalorder %s52, %s53
      %p62 = scmp.eq.s32.totalorder %s21, 0
      %p63 = por %p61, %p62
      %p64 = scmp.ne.s32.totalorder %s52, %s53
      %p65 = scmp.eq.s32.totalorder %s22, 1
      %p66 = por %p64, %p65
      %p68 = scmp.ne.s32.totalorder %s53, %s67
      %p69 = scmp.eq.s32.totalorder %s22, 0
      %p70 = por %p68, %p69
      %s72 = sadd.s32 %s71, 1
      %p75 = scmp.eq.s32.totalorder %s16, 1
      %p76 = scmp.ne.s32.totalorder %s71, %s73
      %p77 = scmp.eq.s32.totalorder %s16, 0
      %p78 = por %p76, %p77
      %p79 = scmp.ne.s32.totalorder %s71, %s73
      %p80 = scmp.eq.s32.totalorder %s21, 1
      %p81 = por %p79, %p80
      %p82 = scmp.ne.s32.totalorder %s73, %s74
      %p83 = scmp.eq.s32.totalorder %s21, 0
      %p84 = por %p82, %p83
      %p85 = scmp.ne.s32.totalorder %s73, %s74
      %p86 = scmp.eq.s32.totalorder %s22, 1
      %p87 = por %p85, %p86
      %p89 = scmp.ne.s32.totalorder %s74, %s88
      %p90 = scmp.eq.s32.totalorder %s22, 0
      %p91 = por %p89, %p90
      %s93 = sadd.s32 %s92, 1
      %p96 = scmp.eq.s32.totalorder %s16, 1
      %p97 = scmp.ne.s32.totalorder %s92, %s94
      %p98 = scmp.eq.s32.totalorder %s16, 0
      %p99 = por %p97, %p98
      %p100 = scmp.ne.s32.totalorder %s92, %s94
      %p101 = scmp.eq.s32.totalorder %s21, 1
      %p102 = por %p100, %p101
      %p103 = scmp.ne.s32.totalorder %s94, %s95
      %p104 = scmp.eq.s32.totalorder %s21, 0
      %p105 = por %p103, %p104
      %p106 = scmp.ne.s32.totalorder %s94, %s95
      %p107 = scmp.eq.s32.totalorder %s22, 1
      %p108 = por %p106, %p107
      %p110 = scmp.ne.s32.totalorder %s95, %s109
      %p111 = scmp.eq.s32.totalorder %s22, 0
      %p112 = por %p110, %p111
      %s114 = sadd.s32 %s113, 1
      %p117 = scmp.eq.s32.totalorder %s16, 1
      %p118 = scmp.ne.s32.totalorder %s113, %s115
      %p119 = scmp.eq.s32.totalorder %s16, 0
      %p120 = por %p118, %p119
      %p121 = scmp.ne.s32.totalorder %s113, %s115
      %p122 = scmp.eq.s32.totalorder %s21, 1
      %p123 = por %p121, %p122
      %p124 = scmp.ne.s32.totalorder %s115, %s116
      %p125 = scmp.eq.s32.totalorder %s21, 0
      %p126 = por %p124, %p125
      %p127 = scmp.ne.s32.totalorder %s115, %s116
      %p128 = scmp.eq.s32.totalorder %s22, 1
      %p129 = por %p127, %p128
      %p131 = scmp.ne.s32.totalorder %s116, %s130
      %p132 = scmp.eq.s32.totalorder %s22, 0
      %p133 = por %p131, %p132
      %s135 = sadd.s32 %s134, 1
      %p138 = scmp.eq.s32.totalorder %s16, 1
      %p139 = scmp.ne.s32.totalorder %s134, %s136
      %p140 = scmp.eq.s32.totalorder %s16, 0
      %p141 = por %p139, %p140
      %p142 = scmp.ne.s32.totalorder %s134, %s136
      %p143 = scmp.eq.s32.totalorder %s21, 1
      %p144 = por %p142, %p143
      %p145 = scmp.ne.s32.totalorder %s136, %s137
      %p146 = scmp.eq.s32.totalorder %s21, 0
      %p147 = por %p145, %p146
      %p148 = scmp.ne.s32.totalorder %s136, %s137
      %p149 = scmp.eq.s32.totalorder %s22, 1
      %p150 = por %p148, %p149
      %p152 = scmp.ne.s32.totalorder %s137, %s151
      %p153 = scmp.eq.s32.totalorder %s22, 0
      %p154 = por %p152, %p153
      %s156 = sadd.s32 %s155, 1
      %p159 = scmp.eq.s32.totalorder %s16, 1
      %p160 = scmp.ne.s32.totalorder %s155, %s157
      %p161 = scmp.eq.s32.totalorder %s16, 0
      %p162 = por %p160, %p161
      %p163 = scmp.ne.s32.totalorder %s155, %s157
      %p164 = scmp.eq.s32.totalorder %s21, 1
      %p165 = por %p163, %p164
      %p166 = scmp.ne.s32.totalorder %s157, %s158
      %p167 = scmp.eq.s32.totalorder %s21, 0
      %p168 = por %p166, %p167
      %p169 = scmp.ne.s32.totalorder %s157, %s158
      %p170 = scmp.eq.s32.totalorder %s22, 1
      %p171 = por %p169, %p170
      %p173 = scmp.ne.s32.totalorder %s158, %s172
      %p174 = scmp.eq.s32.totalorder %s22, 0
      %p175 = por %p173, %p174
      %s176 = ssub.s32 %s16, %s23
      %p177 = scmp.eq.s32.totalorder %s176, 0
      %s179 = sadd.s32 %s178, 1
      %s180 = scalar_select %p177, %s178, %s179
      %p183 = pneg %p177
      %p184 = scmp.eq.s32.totalorder %s16, 1
      %p185 = por %p183, %p184
      %p186 = scmp.ne.s32.totalorder %s178, %s181
      %p187 = scmp.eq.s32.totalorder %s16, 0
      %p188 = por %p186, %p187
      %p189 = scmp.ne.s32.totalorder %s178, %s181
      %p190 = scmp.eq.s32.totalorder %s21, 1
      %p191 = por %p189, %p190
      %p192 = scmp.ne.s32.totalorder %s181, %s182
      %p193 = scmp.eq.s32.totalorder %s21, 0
      %p194 = por %p192, %p193
      %p195 = scmp.ne.s32.totalorder %s181, %s182
      %p196 = scmp.eq.s32.totalorder %s22, 1
      %p197 = por %p195, %p196
      %p199 = scmp.ne.s32.totalorder %s182, %s198
      %p200 = scmp.eq.s32.totalorder %s22, 0
      %p201 = por %p199, %p200
      %p202 = scmp.le.s32.totalorder 1, %s16
      %p203 = scmp.lt.s32.totalorder %s16, 3
      %p204 = pnand %p202, %p203
      %p205 = pneg %p204
      // Predicated region
      $region9: #{residual_block.1} parent=5 // pred_check
        _
      $region10: #{residual_block.1} parent=5 // pred_check_branch
        %207 = sbr.rel (%p204) target = $region12
      $region11: #{residual_block.1} parent=5 // pred_region
        %s208 = ssub.s32 %s16, 1
        // Predicated region
        $region13: #{residual_block.1} parent=11 // pred_check
          %p209 = pneg %p63
        $region14: #{residual_block.1} parent=11 // pred_check_branch
          %211 = sbr.rel (%p209) target = $region16
        $region15: #{residual_block.1} parent=11 // pred_region
          _
        $region16: #{residual_block.1} parent=11 // pred_fallthru
          _
        // Predicated region
        $region17: #{residual_block.1} parent=11 // pred_check
          %p212 = pneg %p84
        $region18: #{residual_block.1} parent=11 // pred_check_branch
          %214 = sbr.rel (%p212) target = $region20
        $region19: #{residual_block.1} parent=11 // pred_region
          _
        $region20: #{residual_block.1} parent=11 // pred_fallthru
          _
        // Predicated region
        $region21: #{residual_block.1} parent=11 // pred_check
          %p215 = pneg %p105
        $region22: #{residual_block.1} parent=11 // pred_check_branch
          %217 = sbr.rel (%p215) target = $region24
        $region23: #{residual_block.1} parent=11 // pred_region
          _
        $region24: #{residual_block.1} parent=11 // pred_fallthru
          _
        // Predicated region
        $region25: #{residual_block.1} parent=11 // pred_check
          %p218 = pneg %p126
        $region26: #{residual_block.1} parent=11 // pred_check_branch
          %220 = sbr.rel (%p218) target = $region28
        $region27: #{residual_block.1} parent=11 // pred_region
          _
        $region28: #{residual_block.1} parent=11 // pred_fallthru
          _
        // Predicated region
        $region29: #{residual_block.1} parent=11 // pred_check
          %p221 = pneg %p147
        $region30: #{residual_block.1} parent=11 // pred_check_branch
          %223 = sbr.rel (%p221) target = $region32
        $region31: #{residual_block.1} parent=11 // pred_region
          _
        $region32: #{residual_block.1} parent=11 // pred_fallthru
          _
        // Predicated region
        $region33: #{residual_block.1} parent=11 // pred_check
          %p224 = pneg %p168
        $region34: #{residual_block.1} parent=11 // pred_check_branch
          %226 = sbr.rel (%p224) target = $region36
        $region35: #{residual_block.1} parent=11 // pred_region
          _
        $region36: #{residual_block.1} parent=11 // pred_fallthru
          _
      $region12: #{residual_block.1} parent=5 // pred_fallthru
        _
      %p227 = scmp.lt.s32.totalorder %s16, 2
      // Predicated region
      $region37: #{residual_block.1} parent=5 // pred_check
        %p228 = pneg %p227
      $region38: #{residual_block.1} parent=5 // pred_check_branch
        %230 = sbr.rel (%p228) target = $region40
      $region39: #{residual_block.1} parent=5 // pred_region
        // Predicated region
        $region41: #{residual_block.1} parent=39 // pred_check
          %p231 = pneg %p36
        $region42: #{residual_block.1} parent=39 // pred_check_branch
          %233 = sbr.rel (%p231) target = $region44
        $region43: #{residual_block.1} parent=39 // pred_region
          %p234 = scmp.lt.s32.totalorder %s16, 1
          %s235 = scalar_select %p234, %s16, 1
          %s236 = smul.addr %s235, 54
          %s237 = smul.addr %s236, 4
          %s238 = scalar_lea.vmem %s0, %s237
        $region44: #{residual_block.1} parent=39 // pred_fallthru
          _
      $region40: #{residual_block.1} parent=5 // pred_fallthru
        _
      %p239 = scmp.le.s32.totalorder 1, %s16
      %p240 = scmp.lt.s32.totalorder %s16, 3
      %p241 = pnand %p239, %p240
      %p242 = pneg %p241
      // Predicated region
      $region45: #{residual_block.1} parent=5 // pred_check
        _
      $region46: #{residual_block.1} parent=5 // pred_check_branch
        %244 = sbr.rel (%p241) target = $region48
      $region47: #{residual_block.1} parent=5 // pred_region
        %s245 = ssub.s32 %s16, 1
        %p246 = scmp.lt.s32.totalorder %s21, 1
        %s247 = scalar_select %p246, %s21, 1
        %s248 = smul.addr %s247, 54
        %s249 = smul.addr %s248, 4
        %s250 = scalar_lea.vmem %s0, %s249
        %p251 = pneg %p42
        %p252 = pneg %p39
        %p253 = pneg %p63
        %p254 = pneg %p60
        %p255 = pneg %p84
        %p256 = pneg %p81
        %p257 = pneg %p105
        %p258 = pneg %p102
        %p259 = pneg %p126
        %p260 = pneg %p123
        %p261 = pneg %p147
        %p262 = pneg %p144
        %p263 = pneg %p168
        %p264 = pneg %p165
        %p265 = pneg %p194
        %p266 = pneg %p191
        %s267 = sand.u32 %s181, 1
        %s268 = scalar_lea.sflag [#allocation6], %s267
        %s269 = sand.u32 %s181, 1
        %s270 = smul.addr %s269, 256
        %s271 = scalar_lea.vmem [#allocation5], %s270
        %p272 = scmp.lt.s32.totalorder %s21, 1
        %s273 = scalar_select %p272, %s21, 1
        %s274 = smul.addr %s273, 54
        %s275 = smul.addr %s274, 4
        %s276 = scalar_lea.vmem %s0, %s275
        %v278 = vld [vmem:[%s276] sm:$0xf]
        %v279 = vld [vmem:[%s276 + $0x4] sm:$0xf]
        %v280 = vld [vmem:[%s276 + $0x8] sm:$0x1]
        %v281 = vld [vmem:[%s276 + $0xc] sm:$0xf]
        %v282 = vld [vmem:[%s276 + $0x10] sm:$0xf]
        %v283 = vld [vmem:[%s276 + $0x14] sm:$0x1]
        %v284 = vld [vmem:[%s276 + $0x18] sm:$0xf]
        %v285 = vld [vmem:[%s276 + $0x1c] sm:$0xf]
        %v286 = vld [vmem:[%s276 + $0x20] sm:$0x1]
        %v287 = vld [vmem:[%s276 + $0x24] sm:$0xf]
        %v288 = vld [vmem:[%s276 + $0x28] sm:$0xf]
        %v289 = vld [vmem:[%s276 + $0x2c] sm:$0x1]
        %v290 = vld [vmem:[%s276 + $0x30] sm:$0xf]
        %v291 = vld [vmem:[%s276 + $0x34] sm:$0xf]
        %v292 = vld [vmem:[%s276 + $0x38] sm:$0x1]
        %v293 = vld [vmem:[%s276 + $0x3c] sm:$0xf]
        %v294 = vld [vmem:[%s276 + $0x40] sm:$0xf]
        %v295 = vld [vmem:[%s276 + $0x44] sm:$0x1]
        %v296 = vld [vmem:[%s276 + $0x48] sm:$0xf]
        %v297 = vld [vmem:[%s276 + $0x4c] sm:$0xf]
        %v298 = vld [vmem:[%s276 + $0x50] sm:$0x1]
        %v299 = vld [vmem:[%s276 + $0x54] sm:$0xf]
        %v300 = vld [vmem:[%s276 + $0x58] sm:$0xf]
        %v301 = vld [vmem:[%s276 + $0x5c] sm:$0x1]
        %v302 = vld [vmem:[%s276 + $0x60] sm:$0xf]
        %v303 = vld [vmem:[%s276 + $0x64] sm:$0xf]
        %v304 = vld [vmem:[%s276 + $0x68] sm:$0x1]
        %v305 = vld [vmem:[%s276 + $0x6c] sm:$0xf]
        %v306 = vld [vmem:[%s276 + $0x70] sm:$0xf]
        %v307 = vld [vmem:[%s276 + $0x74] sm:$0x1]
        %v308 = vld [vmem:[%s276 + $0x78] sm:$0xf]
        %v309 = vld [vmem:[%s276 + $0x7c] sm:$0xf]
        %v310 = vld [vmem:[%s276 + $0x80] sm:$0x1]
        %v311 = vld [vmem:[%s276 + $0x84] sm:$0xf]
        %v312 = vld [vmem:[%s276 + $0x88] sm:$0xf]
        %v313 = vld [vmem:[%s276 + $0x8c] sm:$0x1]
        %v314 = vld [vmem:[%s276 + $0x90] sm:$0xf]
        %v315 = vld [vmem:[%s276 + $0x94] sm:$0xf]
        %v316 = vld [vmem:[%s276 + $0x98] sm:$0x1]
        %v317 = vld [vmem:[%s276 + $0x9c] sm:$0xf]
        %v318 = vld [vmem:[%s276 + $0xa0] sm:$0xf]
        %v319 = vld [vmem:[%s276 + $0xa4] sm:$0x1]
        %v320 = vld [vmem:[%s276 + $0xa8] sm:$0xf]
        %v321 = vld [vmem:[%s276 + $0xac] sm:$0xf]
        %v322 = vld [vmem:[%s276 + $0xb0] sm:$0x1]
        %v323 = vld [vmem:[%s276 + $0xb4] sm:$0xf]
        %v324 = vld [vmem:[%s276 + $0xb8] sm:$0xf]
        %v325 = vld [vmem:[%s276 + $0xbc] sm:$0x1]
        %v326 = vld [vmem:[%s276 + $0xc0] sm:$0xf]
        %v327 = vld [vmem:[%s276 + $0xc4] sm:$0xf]
        %v328 = vld [vmem:[%s276 + $0xc8] sm:$0x1]
        %v329 = vld [vmem:[%s276 + $0xcc] sm:$0xf]
        %v330 = vld [vmem:[%s276 + $0xd0] sm:$0xf]
        %v331 = vld [vmem:[%s276 + $0xd4] sm:$0x1]
        %v368 = vunpack.c.l.b16 %v278
        %v369 = vunpack.c.l.b16 %v279
        %v370 = vunpack.c.l.b16 %v281
        %v371 = vunpack.c.l.b16 %v282
        %v372 = vunpack.c.l.b16 %v284
        %v373 = vunpack.c.l.b16 %v285
        %v374 = vunpack.c.l.b16 %v287
        %v375 = vunpack.c.l.b16 %v288
        %v376 = vunpack.c.l.b16 %v290
        %v377 = vunpack.c.l.b16 %v291
        %v378 = vunpack.c.l.b16 %v293
        %v379 = vunpack.c.l.b16 %v294
        %v380 = vunpack.c.l.b16 %v296
        %v381 = vunpack.c.l.b16 %v297
        %v382 = vunpack.c.l.b16 %v299
        %v383 = vunpack.c.l.b16 %v300
        %v384 = vunpack.c.l.b16 %v302
        %v385 = vunpack.c.l.b16 %v303
        %v386 = vunpack.c.l.b16 %v305
        %v387 = vunpack.c.l.b16 %v306
        %v388 = vunpack.c.l.b16 %v308
        %v389 = vunpack.c.l.b16 %v309
        %v390 = vunpack.c.l.b16 %v311
        %v391 = vunpack.c.l.b16 %v312
        %v392 = vunpack.c.l.b16 %v314
        %v393 = vunpack.c.l.b16 %v315
        %v394 = vunpack.c.l.b16 %v317
        %v395 = vunpack.c.l.b16 %v318
        %v396 = vunpack.c.l.b16 %v320
        %v397 = vunpack.c.l.b16 %v321
        %v398 = vunpack.c.l.b16 %v323
        %v399 = vunpack.c.l.b16 %v324
        %v400 = vunpack.c.l.b16 %v326
        %v401 = vunpack.c.l.b16 %v327
        %v402 = vunpack.c.l.b16 %v329
        %v403 = vunpack.c.l.b16 %v330
        %v404 = vpack.c.b16 %v369, %v368
        %v405 = vpack.c.b16 %v371, %v370
        %v406 = vpack.c.b16 %v373, %v372
        %v407 = vpack.c.b16 %v375, %v374
        %v408 = vpack.c.b16 %v377, %v376
        %v409 = vpack.c.b16 %v379, %v378
        %v410 = vpack.c.b16 %v381, %v380
        %v411 = vpack.c.b16 %v383, %v382
        %v412 = vpack.c.b16 %v385, %v384
        %v413 = vpack.c.b16 %v387, %v386
        %v414 = vpack.c.b16 %v389, %v388
        %v415 = vpack.c.b16 %v391, %v390
        %v416 = vpack.c.b16 %v393, %v392
        %v417 = vpack.c.b16 %v395, %v394
        %v418 = vpack.c.b16 %v397, %v396
        %v419 = vpack.c.b16 %v399, %v398
        %v420 = vpack.c.b16 %v401, %v400
        %v421 = vpack.c.b16 %v403, %v402
        %v440 = vunpack.c.l.b16 %v280
        %v441 = vunpack.c.l.b16 %v283
        %v442 = vunpack.c.l.b16 %v286
        %v443 = vunpack.c.l.b16 %v289
        %v444 = vunpack.c.l.b16 %v292
        %v445 = vunpack.c.l.b16 %v295
        %v446 = vunpack.c.l.b16 %v298
        %v447 = vunpack.c.l.b16 %v301
        %v448 = vunpack.c.l.b16 %v304
        %v449 = vunpack.c.l.b16 %v307
        %v450 = vunpack.c.l.b16 %v310
        %v451 = vunpack.c.l.b16 %v313
        %v452 = vunpack.c.l.b16 %v316
        %v453 = vunpack.c.l.b16 %v319
        %v454 = vunpack.c.l.b16 %v322
        %v455 = vunpack.c.l.b16 %v325
        %v456 = vunpack.c.l.b16 %v328
        %v457 = vunpack.c.l.b16 %v331
        %v458 = vpack.c.b16 %v440, %v440
        %v459 = vpack.c.b16 %v441, %v441
        %v460 = vpack.c.b16 %v442, %v442
        %v461 = vpack.c.b16 %v443, %v443
        %v462 = vpack.c.b16 %v444, %v444
        %v463 = vpack.c.b16 %v445, %v445
        %v464 = vpack.c.b16 %v446, %v446
        %v465 = vpack.c.b16 %v447, %v447
        %v466 = vpack.c.b16 %v448, %v448
        %v467 = vpack.c.b16 %v449, %v449
        %v468 = vpack.c.b16 %v450, %v450
        %v469 = vpack.c.b16 %v451, %v451
        %v470 = vpack.c.b16 %v452, %v452
        %v471 = vpack.c.b16 %v453, %v453
        %v472 = vpack.c.b16 %v454, %v454
        %v473 = vpack.c.b16 %v455, %v455
        %v474 = vpack.c.b16 %v456, %v456
        %v475 = vpack.c.b16 %v457, %v457
        %vm476 = vsmask.f32 7424
        %v478 = vshrl.u32 %v404, 16
        %v480 = vshll.u32 %v404, 16
        %v482 = vrot.slane %v480, 1
        %v483 = vor.u32 %v478, %v482
        %v485 = vshll.u32 %v458, 16
        %v487 = vrot.slane %v485, 1
        %v488 = vsel %vm476, %v483, %v487
        %v490 = vshrl.u32 %v405, 16
        %v492 = vshll.u32 %v405, 16
        %v494 = vrot.slane %v492, 1
        %v495 = vor.u32 %v490, %v494
        %v497 = vshll.u32 %v459, 16
        %v499 = vrot.slane %v497, 1
        %v500 = vsel %vm476, %v495, %v499
        %v502 = vshrl.u32 %v406, 16
        %v504 = vshll.u32 %v406, 16
        %v506 = vrot.slane %v504, 1
        %v507 = vor.u32 %v502, %v506
        %v509 = vshll.u32 %v460, 16
        %v511 = vrot.slane %v509, 1
        %v512 = vsel %vm476, %v507, %v511
        %v514 = vshrl.u32 %v407, 16
        %v516 = vshll.u32 %v407, 16
        %v518 = vrot.slane %v516, 1
        %v519 = vor.u32 %v514, %v518
        %v521 = vshll.u32 %v461, 16
        %v523 = vrot.slane %v521, 1
        %v524 = vsel %vm476, %v519, %v523
        %v526 = vshrl.u32 %v408, 16
        %v528 = vshll.u32 %v408, 16
        %v530 = vrot.slane %v528, 1
        %v531 = vor.u32 %v526, %v530
        %v533 = vshll.u32 %v462, 16
        %v535 = vrot.slane %v533, 1
        %v536 = vsel %vm476, %v531, %v535
        %v538 = vshrl.u32 %v409, 16
        %v540 = vshll.u32 %v409, 16
        %v542 = vrot.slane %v540, 1
        %v543 = vor.u32 %v538, %v542
        %v545 = vshll.u32 %v463, 16
        %v547 = vrot.slane %v545, 1
        %v548 = vsel %vm476, %v543, %v547
        %v550 = vshrl.u32 %v410, 16
        %v552 = vshll.u32 %v410, 16
        %v554 = vrot.slane %v552, 1
        %v555 = vor.u32 %v550, %v554
        %v557 = vshll.u32 %v464, 16
        %v559 = vrot.slane %v557, 1
        %v560 = vsel %vm476, %v555, %v559
        %v562 = vshrl.u32 %v411, 16
        %v564 = vshll.u32 %v411, 16
        %v566 = vrot.slane %v564, 1
        %v567 = vor.u32 %v562, %v566
        %v569 = vshll.u32 %v465, 16
        %v571 = vrot.slane %v569, 1
        %v572 = vsel %vm476, %v567, %v571
        %v574 = vshrl.u32 %v412, 16
        %v576 = vshll.u32 %v412, 16
        %v578 = vrot.slane %v576, 1
        %v579 = vor.u32 %v574, %v578
        %v581 = vshll.u32 %v466, 16
        %v583 = vrot.slane %v581, 1
        %v584 = vsel %vm476, %v579, %v583
        %v586 = vshrl.u32 %v413, 16
        %v588 = vshll.u32 %v413, 16
        %v590 = vrot.slane %v588, 1
        %v591 = vor.u32 %v586, %v590
        %v593 = vshll.u32 %v467, 16
        %v595 = vrot.slane %v593, 1
        %v596 = vsel %vm476, %v591, %v595
        %v598 = vshrl.u32 %v414, 16
        %v600 = vshll.u32 %v414, 16
        %v602 = vrot.slane %v600, 1
        %v603 = vor.u32 %v598, %v602
        %v605 = vshll.u32 %v468, 16
        %v607 = vrot.slane %v605, 1
        %v608 = vsel %vm476, %v603, %v607
        %v610 = vshrl.u32 %v415, 16
        %v612 = vshll.u32 %v415, 16
        %v614 = vrot.slane %v612, 1
        %v615 = vor.u32 %v610, %v614
        %v617 = vshll.u32 %v469, 16
        %v619 = vrot.slane %v617, 1
        %v620 = vsel %vm476, %v615, %v619
        %v622 = vshrl.u32 %v416, 16
        %v624 = vshll.u32 %v416, 16
        %v626 = vrot.slane %v624, 1
        %v627 = vor.u32 %v622, %v626
        %v629 = vshll.u32 %v470, 16
        %v631 = vrot.slane %v629, 1
        %v632 = vsel %vm476, %v627, %v631
        %v634 = vshrl.u32 %v417, 16
        %v636 = vshll.u32 %v417, 16
        %v638 = vrot.slane %v636, 1
        %v639 = vor.u32 %v634, %v638
        %v641 = vshll.u32 %v471, 16
        %v643 = vrot.slane %v641, 1
        %v644 = vsel %vm476, %v639, %v643
        %v646 = vshrl.u32 %v418, 16
        %v648 = vshll.u32 %v418, 16
        %v650 = vrot.slane %v648, 1
        %v651 = vor.u32 %v646, %v650
        %v653 = vshll.u32 %v472, 16
        %v655 = vrot.slane %v653, 1
        %v656 = vsel %vm476, %v651, %v655
        %v658 = vshrl.u32 %v419, 16
        %v660 = vshll.u32 %v419, 16
        %v662 = vrot.slane %v660, 1
        %v663 = vor.u32 %v658, %v662
        %v665 = vshll.u32 %v473, 16
        %v667 = vrot.slane %v665, 1
        %v668 = vsel %vm476, %v663, %v667
        %v670 = vshrl.u32 %v420, 16
        %v672 = vshll.u32 %v420, 16
        %v674 = vrot.slane %v672, 1
        %v675 = vor.u32 %v670, %v674
        %v677 = vshll.u32 %v474, 16
        %v679 = vrot.slane %v677, 1
        %v680 = vsel %vm476, %v675, %v679
        %v682 = vshrl.u32 %v421, 16
        %v684 = vshll.u32 %v421, 16
        %v686 = vrot.slane %v684, 1
        %v687 = vor.u32 %v682, %v686
        %v689 = vshll.u32 %v475, 16
        %v691 = vrot.slane %v689, 1
        %v692 = vsel %vm476, %v687, %v691
        %693 = vrot.lane.b32.xlu0 %v488, 64
        %v694 = vpop.permute.xlu0 %693
        %695 = vrot.lane.b32.xlu0 %v500, 64
        %v696 = vpop.permute.xlu0 %695
        %697 = vrot.lane.b32.xlu0 %v512, 64
        %v698 = vpop.permute.xlu0 %697
        %699 = vrot.lane.b32.xlu0 %v524, 64
        %v700 = vpop.permute.xlu0 %699
        %701 = vrot.lane.b32.xlu0 %v536, 64
        %v702 = vpop.permute.xlu0 %701
        %703 = vrot.lane.b32.xlu0 %v548, 64
        %v704 = vpop.permute.xlu0 %703
        %705 = vrot.lane.b32.xlu0 %v560, 64
        %v706 = vpop.permute.xlu0 %705
        %707 = vrot.lane.b32.xlu0 %v572, 64
        %v708 = vpop.permute.xlu0 %707
        %709 = vrot.lane.b32.xlu0 %v584, 64
        %v710 = vpop.permute.xlu0 %709
        %711 = vrot.lane.b32.xlu0 %v596, 64
        %v712 = vpop.permute.xlu0 %711
        %713 = vrot.lane.b32.xlu0 %v608, 64
        %v714 = vpop.permute.xlu0 %713
        %715 = vrot.lane.b32.xlu0 %v620, 64
        %v716 = vpop.permute.xlu0 %715
        %717 = vrot.lane.b32.xlu0 %v632, 64
        %v718 = vpop.permute.xlu0 %717
        %719 = vrot.lane.b32.xlu0 %v644, 64
        %v720 = vpop.permute.xlu0 %719
        %721 = vrot.lane.b32.xlu0 %v656, 64
        %v722 = vpop.permute.xlu0 %721
        %723 = vrot.lane.b32.xlu0 %v668, 64
        %v724 = vpop.permute.xlu0 %723
        %725 = vrot.lane.b32.xlu0 %v680, 64
        %v726 = vpop.permute.xlu0 %725
        %727 = vrot.lane.b32.xlu0 %v692, 64
        %v728 = vpop.permute.xlu0 %727
        %vm729 = vcmask 1046528
        %v730 = vrot.slane %v404, 1
        %v731 = vrot.slane %v458, 1
        %v732 = vsel %vm729, %v730, %v731
        %v733 = vrot.slane %v405, 1
        %v734 = vrot.slane %v459, 1
        %v735 = vsel %vm729, %v733, %v734
        %v736 = vrot.slane %v406, 1
        %v737 = vrot.slane %v460, 1
        %v738 = vsel %vm729, %v736, %v737
        %v739 = vrot.slane %v407, 1
        %v740 = vrot.slane %v461, 1
        %v741 = vsel %vm729, %v739, %v740
        %v742 = vrot.slane %v408, 1
        %v743 = vrot.slane %v462, 1
        %v744 = vsel %vm729, %v742, %v743
        %v745 = vrot.slane %v409, 1
        %v746 = vrot.slane %v463, 1
        %v747 = vsel %vm729, %v745, %v746
        %v748 = vrot.slane %v410, 1
        %v749 = vrot.slane %v464, 1
        %v750 = vsel %vm729, %v748, %v749
        %v751 = vrot.slane %v411, 1
        %v752 = vrot.slane %v465, 1
        %v753 = vsel %vm729, %v751, %v752
        %v754 = vrot.slane %v412, 1
        %v755 = vrot.slane %v466, 1
        %v756 = vsel %vm729, %v754, %v755
        %v757 = vrot.slane %v413, 1
        %v758 = vrot.slane %v467, 1
        %v759 = vsel %vm729, %v757, %v758
        %v760 = vrot.slane %v414, 1
        %v761 = vrot.slane %v468, 1
        %v762 = vsel %vm729, %v760, %v761
        %v763 = vrot.slane %v415, 1
        %v764 = vrot.slane %v469, 1
        %v765 = vsel %vm729, %v763, %v764
        %v766 = vrot.slane %v416, 1
        %v767 = vrot.slane %v470, 1
        %v768 = vsel %vm729, %v766, %v767
        %v769 = vrot.slane %v417, 1
        %v770 = vrot.slane %v471, 1
        %v771 = vsel %vm729, %v769, %v770
        %v772 = vrot.slane %v418, 1
        %v773 = vrot.slane %v472, 1
        %v774 = vsel %vm729, %v772, %v773
        %v775 = vrot.slane %v419, 1
        %v776 = vrot.slane %v473, 1
        %v777 = vsel %vm729, %v775, %v776
        %v778 = vrot.slane %v420, 1
        %v779 = vrot.slane %v474, 1
        %v780 = vsel %vm729, %v778, %v779
        %v781 = vrot.slane %v421, 1
        %v782 = vrot.slane %v475, 1
        %v783 = vsel %vm729, %v781, %v782
        %vm784 = vcmask 523264
        %v786 = vsel %vm784, %v404, %v694
        %v789 = vsel %vm784, %v405, %v696
        %v792 = vsel %vm784, %v406, %v698
        %v795 = vsel %vm784, %v407, %v700
        %v798 = vsel %vm784, %v408, %v702
        %v801 = vsel %vm784, %v409, %v704
        %v804 = vsel %vm784, %v410, %v706
        %v807 = vsel %vm784, %v411, %v708
        %v810 = vsel %vm784, %v412, %v710
        %v813 = vsel %vm784, %v413, %v712
        %v816 = vsel %vm784, %v414, %v714
        %v819 = vsel %vm784, %v415, %v716
        %v822 = vsel %vm784, %v416, %v718
        %v825 = vsel %vm784, %v417, %v720
        %v828 = vsel %vm784, %v418, %v722
        %v831 = vsel %vm784, %v419, %v724
        %v834 = vsel %vm784, %v420, %v726
        %v837 = vsel %vm784, %v421, %v728
        %839 = vst.msk [vmem:[#allocation2] sm:$0xff] %vm784, 0.0
        %840 = vst.msk [vmem:[#allocation2 + $0x8] sm:$0xff] %vm784, 0.0
        %841 = vst.msk [vmem:[#allocation2 + $0x10] sm:$0xff] %vm784, 0.0
        %842 = vst.msk [vmem:[#allocation2 + $0x18] sm:$0xff] %vm784, 0.0
        %843 = vst.msk [vmem:[#allocation2 + $0x20] sm:$0xff] %vm784, 0.0
        %844 = vst.msk [vmem:[#allocation2 + $0x28] sm:$0xff] %vm784, 0.0
        %845 = vst.msk [vmem:[#allocation2 + $0x30] sm:$0xff] %vm784, 0.0
        %846 = vst.msk [vmem:[#allocation2 + $0x38] sm:$0xff] %vm784, 0.0
        %847 = vst.msk [vmem:[#allocation2 + $0x40] sm:$0xff] %vm784, 0.0
        %848 = vst.msk [vmem:[#allocation2 + $0x48] sm:$0xff] %vm784, 0.0
        %849 = vst.msk [vmem:[#allocation2 + $0x50] sm:$0xff] %vm784, 0.0
        %850 = vst.msk [vmem:[#allocation2 + $0x58] sm:$0xff] %vm784, 0.0
        %851 = vst.msk [vmem:[#allocation2 + $0x60] sm:$0xff] %vm784, 0.0
        %852 = vst.msk [vmem:[#allocation2 + $0x68] sm:$0xff] %vm784, 0.0
        %853 = vst.msk [vmem:[#allocation2 + $0x70] sm:$0xff] %vm784, 0.0
        %854 = vst.msk [vmem:[#allocation2 + $0x78] sm:$0xff] %vm784, 0.0
        %855 = vst.msk [vmem:[#allocation2 + $0x80] sm:$0xff] %vm784, 0.0
        %856 = vst.msk [vmem:[#allocation2 + $0x88] sm:$0xff] %vm784, 0.0
        %857 = vst.msk [vmem:[#allocation2 + $0x90] sm:$0xff] %vm784, 0.0
        %858 = vst.msk [vmem:[#allocation2 + $0x98] sm:$0xff] %vm784, 0.0
        %859 = vst.msk [vmem:[#allocation2 + $0xa0] sm:$0xff] %vm784, 0.0
        %860 = vst.msk [vmem:[#allocation2 + $0xa8] sm:$0xff] %vm784, 0.0
        %861 = vst.msk [vmem:[#allocation2 + $0xb0] sm:$0xff] %vm784, 0.0
        %862 = vst.msk [vmem:[#allocation2 + $0xb8] sm:$0xff] %vm784, 0.0
        %863 = vst.msk [vmem:[#allocation2 + $0xc0] sm:$0xff] %vm784, 0.0
        %864 = vst.msk [vmem:[#allocation2 + $0xc8] sm:$0xff] %vm784, 0.0
        %865 = vst.msk [vmem:[#allocation2 + $0xd0] sm:$0xff] %vm784, 0.0
        %866 = vst.msk [vmem:[#allocation2 + $0xd8] sm:$0xff] %vm784, 0.0
        %867 = vst.msk [vmem:[#allocation2 + $0xe0] sm:$0xff] %vm784, 0.0
        %868 = vst.msk [vmem:[#allocation2 + $0xe8] sm:$0xff] %vm784, 0.0
        %869 = vst.msk [vmem:[#allocation2 + $0xf0] sm:$0xff] %vm784, 0.0
        %870 = vst.msk [vmem:[#allocation2 + $0xf8] sm:$0xff] %vm784, 0.0
        %v871 = vld [vmem:[#allocation2] sm:$0xff]
        %v872 = vld [vmem:[#allocation2 + $0x8] sm:$0xff]
        %v873 = vld [vmem:[#allocation2 + $0x10] sm:$0xff]
        %v874 = vld [vmem:[#allocation2 + $0x18] sm:$0xff]
        %v875 = vld [vmem:[#allocation2 + $0x20] sm:$0xff]
        %v876 = vld [vmem:[#allocation2 + $0x28] sm:$0xff]
        %v877 = vld [vmem:[#allocation2 + $0x30] sm:$0xff]
        %v878 = vld [vmem:[#allocation2 + $0x38] sm:$0xff]
        %v879 = vld [vmem:[#allocation2 + $0x40] sm:$0xff]
        %v880 = vld [vmem:[#allocation2 + $0x48] sm:$0xff]
        %v881 = vld [vmem:[#allocation2 + $0x50] sm:$0xff]
        %v882 = vld [vmem:[#allocation2 + $0x58] sm:$0xff]
        %v883 = vld [vmem:[#allocation2 + $0x60] sm:$0xff]
        %v884 = vld [vmem:[#allocation2 + $0x68] sm:$0xff]
        %v885 = vld [vmem:[#allocation2 + $0x70] sm:$0xff]
        %v886 = vld [vmem:[#allocation2 + $0x78] sm:$0xff]
        %v887 = vld [vmem:[#allocation2 + $0x80] sm:$0xff]
        %v888 = vld [vmem:[#allocation2 + $0x88] sm:$0xff]
        %v889 = vld [vmem:[#allocation2 + $0x90] sm:$0xff]
        %v890 = vld [vmem:[#allocation2 + $0x98] sm:$0xff]
        %v891 = vld [vmem:[#allocation2 + $0xa0] sm:$0xff]
        %v892 = vld [vmem:[#allocation2 + $0xa8] sm:$0xff]
        %v893 = vld [vmem:[#allocation2 + $0xb0] sm:$0xff]
        %v894 = vld [vmem:[#allocation2 + $0xb8] sm:$0xff]
        %v895 = vld [vmem:[#allocation2 + $0xc0] sm:$0xff]
        %v896 = vld [vmem:[#allocation2 + $0xc8] sm:$0xff]
        %v897 = vld [vmem:[#allocation2 + $0xd0] sm:$0xff]
        %v898 = vld [vmem:[#allocation2 + $0xd8] sm:$0xff]
        %v899 = vld [vmem:[#allocation2 + $0xe0] sm:$0xff]
        %v900 = vld [vmem:[#allocation2 + $0xe8] sm:$0xff]
        %v901 = vld [vmem:[#allocation2 + $0xf0] sm:$0xff]
        %v902 = vld [vmem:[#allocation2 + $0xf8] sm:$0xff]
        %v903 = vld [vmem:[%s1] sm:$0xf]
        %v904 = vld [vmem:[%s1 + $0x4] sm:$0xf]
        %v905 = vld [vmem:[%s1 + $0x8] sm:$0xf]
        %v906 = vld [vmem:[%s1 + $0xc] sm:$0xf]
        %v907 = vld [vmem:[%s1 + $0x10] sm:$0xf]
        %v908 = vld [vmem:[%s1 + $0x14] sm:$0xf]
        %v909 = vld [vmem:[%s1 + $0x18] sm:$0xf]
        %v910 = vld [vmem:[%s1 + $0x1c] sm:$0xf]
        %v911 = vld [vmem:[%s1 + $0x20] sm:$0xf]
        %v912 = vld [vmem:[%s1 + $0x24] sm:$0xf]
        %v913 = vld [vmem:[%s1 + $0x28] sm:$0xf]
        %v914 = vld [vmem:[%s1 + $0x2c] sm:$0xf]
        %v915 = vld [vmem:[%s1 + $0x30] sm:$0xf]
        %v916 = vld [vmem:[%s1 + $0x34] sm:$0xf]
        %v917 = vld [vmem:[%s1 + $0x38] sm:$0xf]
        %v918 = vld [vmem:[%s1 + $0x3c] sm:$0xf]
        %v919 = vld [vmem:[%s1 + $0x40] sm:$0xf]
        %v920 = vld [vmem:[%s1 + $0x44] sm:$0xf]
        %v921 = vld [vmem:[%s1 + $0x48] sm:$0xf]
        %v922 = vld [vmem:[%s1 + $0x4c] sm:$0xf]
        %v923 = vld [vmem:[%s1 + $0x50] sm:$0xf]
        %v924 = vld [vmem:[%s1 + $0x54] sm:$0xf]
        %v925 = vld [vmem:[%s1 + $0x58] sm:$0xf]
        %v926 = vld [vmem:[%s1 + $0x5c] sm:$0xf]
        %v951 = vunpack.c.l.b16 %v903
        %v952 = vunpack.c.l.b16 %v904
        %v953 = vunpack.c.l.b16 %v905
        %v954 = vunpack.c.l.b16 %v906
        %v955 = vunpack.c.l.b16 %v907
        %v956 = vunpack.c.l.b16 %v908
        %v957 = vunpack.c.l.b16 %v909
        %v958 = vunpack.c.l.b16 %v910
        %v959 = vunpack.c.l.b16 %v911
        %v960 = vunpack.c.l.b16 %v912
        %v961 = vunpack.c.l.b16 %v913
        %v962 = vunpack.c.l.b16 %v914
        %v963 = vunpack.c.l.b16 %v915
        %v964 = vunpack.c.l.b16 %v916
        %v965 = vunpack.c.l.b16 %v917
        %v966 = vunpack.c.l.b16 %v918
        %v967 = vunpack.c.l.b16 %v919
        %v968 = vunpack.c.l.b16 %v920
        %v969 = vunpack.c.l.b16 %v921
        %v970 = vunpack.c.l.b16 %v922
        %v971 = vunpack.c.l.b16 %v923
        %v972 = vunpack.c.l.b16 %v924
        %v973 = vunpack.c.l.b16 %v925
        %v974 = vunpack.c.l.b16 %v926
        %v975 = vpack.c.b16 %v952, %v951
        %v976 = vpack.c.b16 %v954, %v953
        %v977 = vpack.c.b16 %v956, %v955
        %v978 = vpack.c.b16 %v958, %v957
        %v979 = vpack.c.b16 %v960, %v959
        %v980 = vpack.c.b16 %v962, %v961
        %v981 = vpack.c.b16 %v964, %v963
        %v982 = vpack.c.b16 %v966, %v965
        %v983 = vpack.c.b16 %v968, %v967
        %v984 = vpack.c.b16 %v970, %v969
        %v985 = vpack.c.b16 %v972, %v971
        %v986 = vpack.c.b16 %v974, %v973
        %v1000 = vsel %vm784, %v732, 0
        %v1003 = vsel %vm784, %v735, 0
        %v1006 = vsel %vm784, %v738, 0
        %v1009 = vsel %vm784, %v741, 0
        %v1012 = vsel %vm784, %v744, 0
        %v1015 = vsel %vm784, %v747, 0
        %v1018 = vsel %vm784, %v750, 0
        %v1021 = vsel %vm784, %v753, 0
        %v1024 = vsel %vm784, %v756, 0
        %v1027 = vsel %vm784, %v759, 0
        %v1030 = vsel %vm784, %v762, 0
        %v1033 = vsel %vm784, %v765, 0
        %v1036 = vsel %vm784, %v768, 0
        %v1039 = vsel %vm784, %v771, 0
        %v1042 = vsel %vm784, %v774, 0
        %v1045 = vsel %vm784, %v777, 0
        %1047 = vmatprep.subr.bf16.mxu0 0
        %1048 = vmatpush1.bf16.msra.mxu0 %v982
        %1049 = vmatprep.subr.bf16.mxu0 0
        %1050 = vmatpush1.bf16.msra.mxu0 %v981
        %1051 = vmatprep.subr.bf16.mxu0 0
        %1052 = vmatpush1.bf16.msra.mxu0 %v980
        %1053 = vmatprep.subr.bf16.mxu0 0
        %1054 = vmatpush1.bf16.msra.mxu0 %v979
        %1055 = vmatprep.subr.bf16.mxu0 0
        %1056 = vmatpush1.bf16.msra.mxu0 %v978
        %1057 = vmatprep.subr.bf16.mxu0 0
        %1058 = vmatpush1.bf16.msra.mxu0 %v977
        %1059 = vmatprep.subr.bf16.mxu0 0
        %1060 = vmatpush1.bf16.msra.mxu0 %v976
        %1061 = vmatprep.subr.bf16.mxu0 0
        %1062 = vmatpush1.bf16.msra.mxu0 %v975
        %1063 = vmatprep.subr.bf16.mxu0 0
        %1064 = vmatpush2.bf16.msra.mxu0 0
        %1065 = vmatprep.subr.bf16.mxu0 0
        %1066 = vmatpush2.bf16.msra.mxu0 0
        %1067 = vmatprep.subr.bf16.mxu0 0
        %1068 = vmatpush2.bf16.msra.mxu0 0
        %1069 = vmatprep.subr.bf16.mxu0 0
        %1070 = vmatpush2.bf16.msra.mxu0 0
        %1071 = vmatprep.subr.bf16.mxu0 0
        %1072 = vmatpush2.bf16.msra.mxu0 %v986
        %1073 = vmatprep.subr.bf16.mxu0 0
        %1074 = vmatpush2.bf16.msra.mxu0 %v985
        %1075 = vmatprep.subr.bf16.mxu0 0
        %1076 = vmatpush2.bf16.msra.mxu0 %v984
        %1077 = vmatprep.subr.bf16.mxu0 0
        %1078 = vmatpush2.bf16.msra.mxu0 %v983
        %1079 = vmatprep.mubr.bf16.mxu0 %v1000
        %1080 = vmatmul.mubr.bf16.gmra.mxu0 %v786
        %v1081 = vpop.f32.mrf.mxu0
        %v1082 = vadd.f32 0.0, %v1081
        %v1083 = vpop.f32.mrf.mxu0
        %v1084 = vpop.f32.mrf.mxu0
        %v1085 = vadd.f32 0.0, %v1084
        %v1086 = vpop.f32.mrf.mxu0
        %1087 = vmatprep.mubr.bf16.mxu0 %v1003
        %1088 = vmatmul.mubr.bf16.gmra.mxu0 %v789
        %v1089 = vpop.f32.mrf.mxu0
        %v1090 = vadd.f32 0.0, %v1089
        %v1091 = vpop.f32.mrf.mxu0
        %v1092 = vpop.f32.mrf.mxu0
        %v1093 = vadd.f32 0.0, %v1092
        %v1094 = vpop.f32.mrf.mxu0
        %1095 = vmatprep.mubr.bf16.mxu0 %v1006
        %1096 = vmatmul.mubr.bf16.gmra.mxu0 %v792
        %v1097 = vpop.f32.mrf.mxu0
        %v1098 = vadd.f32 0.0, %v1097
        %v1099 = vpop.f32.mrf.mxu0
        %v1100 = vpop.f32.mrf.mxu0
        %v1101 = vadd.f32 0.0, %v1100
        %v1102 = vpop.f32.mrf.mxu0
        %1103 = vmatprep.mubr.bf16.mxu0 %v1009
        %1104 = vmatmul.mubr.bf16.gmra.mxu0 %v795
        %v1105 = vpop.f32.mrf.mxu0
        %v1106 = vadd.f32 0.0, %v1105
        %v1107 = vpop.f32.mrf.mxu0
        %v1108 = vpop.f32.mrf.mxu0
        %v1109 = vadd.f32 0.0, %v1108
        %v1110 = vpop.f32.mrf.mxu0
        %1111 = vmatprep.mubr.bf16.mxu0 %v1012
        %1112 = vmatmul.mubr.bf16.gmra.mxu0 %v798
        %v1113 = vpop.f32.mrf.mxu0
        %v1114 = vadd.f32 0.0, %v1113
        %v1115 = vpop.f32.mrf.mxu0
        %v1116 = vpop.f32.mrf.mxu0
        %v1117 = vadd.f32 0.0, %v1116
        %v1118 = vpop.f32.mrf.mxu0
        %1119 = vmatprep.mubr.bf16.mxu0 %v1015
        %1120 = vmatmul.mubr.bf16.gmra.mxu0 %v801
        %v1121 = vpop.f32.mrf.mxu0
        %v1122 = vadd.f32 0.0, %v1121
        %v1123 = vpop.f32.mrf.mxu0
        %v1124 = vpop.f32.mrf.mxu0
        %v1125 = vadd.f32 0.0, %v1124
        %v1126 = vpop.f32.mrf.mxu0
        %1127 = vmatprep.mubr.bf16.mxu0 %v1018
        %1128 = vmatmul.mubr.bf16.gmra.mxu0 %v804
        %v1129 = vpop.f32.mrf.mxu0
        %v1130 = vadd.f32 0.0, %v1129
        %v1131 = vpop.f32.mrf.mxu0
        %v1132 = vpop.f32.mrf.mxu0
        %v1133 = vadd.f32 0.0, %v1132
        %v1134 = vpop.f32.mrf.mxu0
        %1135 = vmatprep.mubr.bf16.mxu0 %v1021
        %1136 = vmatmul.mubr.bf16.gmra.mxu0 %v807
        %v1137 = vpop.f32.mrf.mxu0
        %v1138 = vadd.f32 0.0, %v1137
        %v1139 = vpop.f32.mrf.mxu0
        %v1140 = vpop.f32.mrf.mxu0
        %v1141 = vadd.f32 0.0, %v1140
        %v1142 = vpop.f32.mrf.mxu0
        %1143 = vmatprep.mubr.bf16.mxu0 %v1024
        %1144 = vmatmul.mubr.bf16.gmra.mxu0 %v810
        %v1145 = vpop.f32.mrf.mxu0
        %v1146 = vadd.f32 0.0, %v1145
        %v1147 = vpop.f32.mrf.mxu0
        %v1148 = vpop.f32.mrf.mxu0
        %v1149 = vadd.f32 0.0, %v1148
        %v1150 = vpop.f32.mrf.mxu0
        %1151 = vmatprep.mubr.bf16.mxu0 %v1027
        %1152 = vmatmul.mubr.bf16.gmra.mxu0 %v813
        %v1153 = vpop.f32.mrf.mxu0
        %v1154 = vadd.f32 0.0, %v1153
        %v1155 = vpop.f32.mrf.mxu0
        %v1156 = vpop.f32.mrf.mxu0
        %v1157 = vadd.f32 0.0, %v1156
        %v1158 = vpop.f32.mrf.mxu0
        %1159 = vmatprep.mubr.bf16.mxu0 %v1030
        %1160 = vmatmul.mubr.bf16.gmra.mxu0 %v816
        %v1161 = vpop.f32.mrf.mxu0
        %v1162 = vadd.f32 0.0, %v1161
        %v1163 = vpop.f32.mrf.mxu0
        %v1164 = vpop.f32.mrf.mxu0
        %v1165 = vadd.f32 0.0, %v1164
        %v1166 = vpop.f32.mrf.mxu0
        %1167 = vmatprep.mubr.bf16.mxu0 %v1033
        %1168 = vmatmul.mubr.bf16.gmra.mxu0 %v819
        %v1169 = vpop.f32.mrf.mxu0
        %v1170 = vadd.f32 0.0, %v1169
        %v1171 = vpop.f32.mrf.mxu0
        %v1172 = vpop.f32.mrf.mxu0
        %v1173 = vadd.f32 0.0, %v1172
        %v1174 = vpop.f32.mrf.mxu0
        %1175 = vmatprep.mubr.bf16.mxu0 %v1036
        %1176 = vmatmul.mubr.bf16.gmra.mxu0 %v822
        %v1177 = vpop.f32.mrf.mxu0
        %v1178 = vadd.f32 0.0, %v1177
        %v1179 = vpop.f32.mrf.mxu0
        %v1180 = vpop.f32.mrf.mxu0
        %v1181 = vadd.f32 0.0, %v1180
        %v1182 = vpop.f32.mrf.mxu0
        %1183 = vmatprep.mubr.bf16.mxu0 %v1039
        %1184 = vmatmul.mubr.bf16.gmra.mxu0 %v825
        %v1185 = vpop.f32.mrf.mxu0
        %v1186 = vadd.f32 0.0, %v1185
        %v1187 = vpop.f32.mrf.mxu0
        %v1188 = vpop.f32.mrf.mxu0
        %v1189 = vadd.f32 0.0, %v1188
        %v1190 = vpop.f32.mrf.mxu0
        %1191 = vmatprep.mubr.bf16.mxu0 %v1042
        %1192 = vmatmul.mubr.bf16.gmra.mxu0 %v828
        %v1193 = vpop.f32.mrf.mxu0
        %v1194 = vadd.f32 0.0, %v1193
        %v1195 = vpop.f32.mrf.mxu0
        %v1196 = vpop.f32.mrf.mxu0
        %v1197 = vadd.f32 0.0, %v1196
        %v1198 = vpop.f32.mrf.mxu0
        %1199 = vmatprep.mubr.bf16.mxu0 %v1045
        %1200 = vmatmul.mubr.bf16.gmra.mxu0 %v831
        %v1201 = vpop.f32.mrf.mxu0
        %v1202 = vadd.f32 0.0, %v1201
        %v1203 = vpop.f32.mrf.mxu0
        %v1204 = vpop.f32.mrf.mxu0
        %v1205 = vadd.f32 0.0, %v1204
        %v1206 = vpop.f32.mrf.mxu0
        %1207 = vdwg.mxu0
        %v1208 = vadd.f32 %v871, %v1082
        %v1209 = vadd.f32 %v872, %v1085
        %v1210 = vadd.f32 %v873, %v1090
        %v1211 = vadd.f32 %v874, %v1093
        %v1212 = vadd.f32 %v875, %v1098
        %v1213 = vadd.f32 %v876, %v1101
        %v1214 = vadd.f32 %v877, %v1106
        %v1215 = vadd.f32 %v878, %v1109
        %v1216 = vadd.f32 %v879, %v1114
        %v1217 = vadd.f32 %v880, %v1117
        %v1218 = vadd.f32 %v881, %v1122
        %v1219 = vadd.f32 %v882, %v1125
        %v1220 = vadd.f32 %v883, %v1130
        %v1221 = vadd.f32 %v884, %v1133
        %v1222 = vadd.f32 %v885, %v1138
        %v1223 = vadd.f32 %v886, %v1141
        %v1224 = vadd.f32 %v887, %v1146
        %v1225 = vadd.f32 %v888, %v1149
        %v1226 = vadd.f32 %v889, %v1154
        %v1227 = vadd.f32 %v890, %v1157
        %v1228 = vadd.f32 %v891, %v1162
        %v1229 = vadd.f32 %v892, %v1165
        %v1230 = vadd.f32 %v893, %v1170
        %v1231 = vadd.f32 %v894, %v1173
        %v1232 = vadd.f32 %v895, %v1178
        %v1233 = vadd.f32 %v896, %v1181
        %v1234 = vadd.f32 %v897, %v1186
        %v1235 = vadd.f32 %v898, %v1189
        %v1236 = vadd.f32 %v899, %v1194
        %v1237 = vadd.f32 %v900, %v1197
        %v1238 = vadd.f32 %v901, %v1202
        %v1239 = vadd.f32 %v902, %v1205
        %1240 = vst.msk [vmem:[#allocation2] sm:$0xff] %vm784, %v1208
        %1241 = vst.msk [vmem:[#allocation2 + $0x8] sm:$0xff] %vm784, %v1209
        %1242 = vst.msk [vmem:[#allocation2 + $0x10] sm:$0xff] %vm784, %v1210
        %1243 = vst.msk [vmem:[#allocation2 + $0x18] sm:$0xff] %vm784, %v1211
        %1244 = vst.msk [vmem:[#allocation2 + $0x20] sm:$0xff] %vm784, %v1212
        %1245 = vst.msk [vmem:[#allocation2 + $0x28] sm:$0xff] %vm784, %v1213
        %1246 = vst.msk [vmem:[#allocation2 + $0x30] sm:$0xff] %vm784, %v1214
        %1247 = vst.msk [vmem:[#allocation2 + $0x38] sm:$0xff] %vm784, %v1215
        %1248 = vst.msk [vmem:[#allocation2 + $0x40] sm:$0xff] %vm784, %v1216
        %1249 = vst.msk [vmem:[#allocation2 + $0x48] sm:$0xff] %vm784, %v1217
        %1250 = vst.msk [vmem:[#allocation2 + $0x50] sm:$0xff] %vm784, %v1218
        %1251 = vst.msk [vmem:[#allocation2 + $0x58] sm:$0xff] %vm784, %v1219
        %1252 = vst.msk [vmem:[#allocation2 + $0x60] sm:$0xff] %vm784, %v1220
        %1253 = vst.msk [vmem:[#allocation2 + $0x68] sm:$0xff] %vm784, %v1221
        %1254 = vst.msk [vmem:[#allocation2 + $0x70] sm:$0xff] %vm784, %v1222
        %1255 = vst.msk [vmem:[#allocation2 + $0x78] sm:$0xff] %vm784, %v1223
        %1256 = vst.msk [vmem:[#allocation2 + $0x80] sm:$0xff] %vm784, %v1224
        %1257 = vst.msk [vmem:[#allocation2 + $0x88] sm:$0xff] %vm784, %v1225
        %1258 = vst.msk [vmem:[#allocation2 + $0x90] sm:$0xff] %vm784, %v1226
        %1259 = vst.msk [vmem:[#allocation2 + $0x98] sm:$0xff] %vm784, %v1227
        %1260 = vst.msk [vmem:[#allocation2 + $0xa0] sm:$0xff] %vm784, %v1228
        %1261 = vst.msk [vmem:[#allocation2 + $0xa8] sm:$0xff] %vm784, %v1229
        %1262 = vst.msk [vmem:[#allocation2 + $0xb0] sm:$0xff] %vm784, %v1230
        %1263 = vst.msk [vmem:[#allocation2 + $0xb8] sm:$0xff] %vm784, %v1231
        %1264 = vst.msk [vmem:[#allocation2 + $0xc0] sm:$0xff] %vm784, %v1232
        %1265 = vst.msk [vmem:[#allocation2 + $0xc8] sm:$0xff] %vm784, %v1233
        %1266 = vst.msk [vmem:[#allocation2 + $0xd0] sm:$0xff] %vm784, %v1234
        %1267 = vst.msk [vmem:[#allocation2 + $0xd8] sm:$0xff] %vm784, %v1235
        %1268 = vst.msk [vmem:[#allocation2 + $0xe0] sm:$0xff] %vm784, %v1236
        %1269 = vst.msk [vmem:[#allocation2 + $0xe8] sm:$0xff] %vm784, %v1237
        %1270 = vst.msk [vmem:[#allocation2 + $0xf0] sm:$0xff] %vm784, %v1238
        %1271 = vst.msk [vmem:[#allocation2 + $0xf8] sm:$0xff] %vm784, %v1239
        %v1272 = vld [vmem:[#allocation2] sm:$0xff]
        %v1273 = vld [vmem:[#allocation2 + $0x8] sm:$0xff]
        %v1274 = vld [vmem:[#allocation2 + $0x10] sm:$0xff]
        %v1275 = vld [vmem:[#allocation2 + $0x18] sm:$0xff]
        %v1276 = vld [vmem:[#allocation2 + $0x20] sm:$0xff]
        %v1277 = vld [vmem:[#allocation2 + $0x28] sm:$0xff]
        %v1278 = vld [vmem:[#allocation2 + $0x30] sm:$0xff]
        %v1279 = vld [vmem:[#allocation2 + $0x38] sm:$0xff]
        %v1280 = vld [vmem:[#allocation2 + $0x40] sm:$0xff]
        %v1281 = vld [vmem:[#allocation2 + $0x48] sm:$0xff]
        %v1282 = vld [vmem:[#allocation2 + $0x50] sm:$0xff]
        %v1283 = vld [vmem:[#allocation2 + $0x58] sm:$0xff]
        %v1284 = vld [vmem:[#allocation2 + $0x60] sm:$0xff]
        %v1285 = vld [vmem:[#allocation2 + $0x68] sm:$0xff]
        %v1286 = vld [vmem:[#allocation2 + $0x70] sm:$0xff]
        %v1287 = vld [vmem:[#allocation2 + $0x78] sm:$0xff]
        %v1288 = vld [vmem:[#allocation2 + $0x80] sm:$0xff]
        %v1289 = vld [vmem:[#allocation2 + $0x88] sm:$0xff]
        %v1290 = vld [vmem:[#allocation2 + $0x90] sm:$0xff]
        %v1291 = vld [vmem:[#allocation2 + $0x98] sm:$0xff]
        %v1292 = vld [vmem:[#allocation2 + $0xa0] sm:$0xff]
        %v1293 = vld [vmem:[#allocation2 + $0xa8] sm:$0xff]
        %v1294 = vld [vmem:[#allocation2 + $0xb0] sm:$0xff]
        %v1295 = vld [vmem:[#allocation2 + $0xb8] sm:$0xff]
        %v1296 = vld [vmem:[#allocation2 + $0xc0] sm:$0xff]
        %v1297 = vld [vmem:[#allocation2 + $0xc8] sm:$0xff]
        %v1298 = vld [vmem:[#allocation2 + $0xd0] sm:$0xff]
        %v1299 = vld [vmem:[#allocation2 + $0xd8] sm:$0xff]
        %v1300 = vld [vmem:[#allocation2 + $0xe0] sm:$0xff]
        %v1301 = vld [vmem:[#allocation2 + $0xe8] sm:$0xff]
        %v1302 = vld [vmem:[#allocation2 + $0xf0] sm:$0xff]
        %v1303 = vld [vmem:[#allocation2 + $0xf8] sm:$0xff]
        %s1304 = scalar_lea.vmem %s1, 96
        %v1305 = vld [vmem:[%s1304] sm:$0xf]
        %v1306 = vld [vmem:[%s1304 + $0x4] sm:$0xf]
        %v1307 = vld [vmem:[%s1304 + $0x8] sm:$0xf]
        %v1308 = vld [vmem:[%s1304 + $0xc] sm:$0xf]
        %v1309 = vld [vmem:[%s1304 + $0x10] sm:$0xf]
        %v1310 = vld [vmem:[%s1304 + $0x14] sm:$0xf]
        %v1311 = vld [vmem:[%s1304 + $0x18] sm:$0xf]
        %v1312 = vld [vmem:[%s1304 + $0x1c] sm:$0xf]
        %v1313 = vld [vmem:[%s1304 + $0x20] sm:$0xf]
        %v1314 = vld [vmem:[%s1304 + $0x24] sm:$0xf]
        %v1315 = vld [vmem:[%s1304 + $0x28] sm:$0xf]
        %v1316 = vld [vmem:[%s1304 + $0x2c] sm:$0xf]
        %v1317 = vld [vmem:[%s1304 + $0x30] sm:$0xf]
        %v1318 = vld [vmem:[%s1304 + $0x34] sm:$0xf]
        %v1319 = vld [vmem:[%s1304 + $0x38] sm:$0xf]
        %v1320 = vld [vmem:[%s1304 + $0x3c] sm:$0xf]
        %v1321 = vld [vmem:[%s1304 + $0x40] sm:$0xf]
        %v1322 = vld [vmem:[%s1304 + $0x44] sm:$0xf]
        %v1323 = vld [vmem:[%s1304 + $0x48] sm:$0xf]
        %v1324 = vld [vmem:[%s1304 + $0x4c] sm:$0xf]
        %v1325 = vld [vmem:[%s1304 + $0x50] sm:$0xf]
        %v1326 = vld [vmem:[%s1304 + $0x54] sm:$0xf]
        %v1327 = vld [vmem:[%s1304 + $0x58] sm:$0xf]
        %v1328 = vld [vmem:[%s1304 + $0x5c] sm:$0xf]
        %v1353 = vunpack.c.l.b16 %v1305
        %v1354 = vunpack.c.l.b16 %v1306
        %v1355 = vunpack.c.l.b16 %v1307
        %v1356 = vunpack.c.l.b16 %v1308
        %v1357 = vunpack.c.l.b16 %v1309
        %v1358 = vunpack.c.l.b16 %v1310
        %v1359 = vunpack.c.l.b16 %v1311
        %v1360 = vunpack.c.l.b16 %v1312
        %v1361 = vunpack.c.l.b16 %v1313
        %v1362 = vunpack.c.l.b16 %v1314
        %v1363 = vunpack.c.l.b16 %v1315
        %v1364 = vunpack.c.l.b16 %v1316
        %v1365 = vunpack.c.l.b16 %v1317
        %v1366 = vunpack.c.l.b16 %v1318
        %v1367 = vunpack.c.l.b16 %v1319
        %v1368 = vunpack.c.l.b16 %v1320
        %v1369 = vunpack.c.l.b16 %v1321
        %v1370 = vunpack.c.l.b16 %v1322
        %v1371 = vunpack.c.l.b16 %v1323
        %v1372 = vunpack.c.l.b16 %v1324
        %v1373 = vunpack.c.l.b16 %v1325
        %v1374 = vunpack.c.l.b16 %v1326
        %v1375 = vunpack.c.l.b16 %v1327
        %v1376 = vunpack.c.l.b16 %v1328
        %v1377 = vpack.c.b16 %v1354, %v1353
        %v1378 = vpack.c.b16 %v1356, %v1355
        %v1379 = vpack.c.b16 %v1358, %v1357
        %v1380 = vpack.c.b16 %v1360, %v1359
        %v1381 = vpack.c.b16 %v1362, %v1361
        %v1382 = vpack.c.b16 %v1364, %v1363
        %v1383 = vpack.c.b16 %v1366, %v1365
        %v1384 = vpack.c.b16 %v1368, %v1367
        %v1385 = vpack.c.b16 %v1370, %v1369
        %v1386 = vpack.c.b16 %v1372, %v1371
        %v1387 = vpack.c.b16 %v1374, %v1373
        %v1388 = vpack.c.b16 %v1376, %v1375
        %v1402 = vsel %vm784, %v780, 0
        %1404 = vmatprep.subr.bf16.mxu0 0
        %1405 = vmatpush1.bf16.msra.mxu0 %v1384
        %1406 = vmatprep.subr.bf16.mxu0 0
        %1407 = vmatpush1.bf16.msra.mxu0 %v1383
        %1408 = vmatprep.subr.bf16.mxu0 0
        %1409 = vmatpush1.bf16.msra.mxu0 %v1382
        %1410 = vmatprep.subr.bf16.mxu0 0
        %1411 = vmatpush1.bf16.msra.mxu0 %v1381
        %1412 = vmatprep.subr.bf16.mxu0 0
        %1413 = vmatpush1.bf16.msra.mxu0 %v1380
        %1414 = vmatprep.subr.bf16.mxu0 0
        %1415 = vmatpush1.bf16.msra.mxu0 %v1379
        %1416 = vmatprep.subr.bf16.mxu0 0
        %1417 = vmatpush1.bf16.msra.mxu0 %v1378
        %1418 = vmatprep.subr.bf16.mxu0 0
        %1419 = vmatpush1.bf16.msra.mxu0 %v1377
        %1420 = vmatprep.subr.bf16.mxu0 0
        %1421 = vmatpush2.bf16.msra.mxu0 0
        %1422 = vmatprep.subr.bf16.mxu0 0
        %1423 = vmatpush2.bf16.msra.mxu0 0
        %1424 = vmatprep.subr.bf16.mxu0 0
        %1425 = vmatpush2.bf16.msra.mxu0 0
        %1426 = vmatprep.subr.bf16.mxu0 0
        %1427 = vmatpush2.bf16.msra.mxu0 0
        %1428 = vmatprep.subr.bf16.mxu0 0
        %1429 = vmatpush2.bf16.msra.mxu0 %v1388
        %1430 = vmatprep.subr.bf16.mxu0 0
        %1431 = vmatpush2.bf16.msra.mxu0 %v1387
        %1432 = vmatprep.subr.bf16.mxu0 0
        %1433 = vmatpush2.bf16.msra.mxu0 %v1386
        %1434 = vmatprep.subr.bf16.mxu0 0
        %1435 = vmatpush2.bf16.msra.mxu0 %v1385
        %1436 = vmatprep.mubr.bf16.mxu0 %v1003
        %1437 = vmatmul.mubr.bf16.gmra.mxu0 %v789
        %v1438 = vpop.f32.mrf.mxu0
        %v1439 = vadd.f32 0.0, %v1438
        %v1440 = vpop.f32.mrf.mxu0
        %v1441 = vpop.f32.mrf.mxu0
        %v1442 = vadd.f32 0.0, %v1441
        %v1443 = vpop.f32.mrf.mxu0
        %1444 = vmatprep.mubr.bf16.mxu0 %v1006
        %1445 = vmatmul.mubr.bf16.gmra.mxu0 %v792
        %v1446 = vpop.f32.mrf.mxu0
        %v1447 = vadd.f32 0.0, %v1446
        %v1448 = vpop.f32.mrf.mxu0
        %v1449 = vpop.f32.mrf.mxu0
        %v1450 = vadd.f32 0.0, %v1449
        %v1451 = vpop.f32.mrf.mxu0
        %1452 = vmatprep.mubr.bf16.mxu0 %v1009
        %1453 = vmatmul.mubr.bf16.gmra.mxu0 %v795
        %v1454 = vpop.f32.mrf.mxu0
        %v1455 = vadd.f32 0.0, %v1454
        %v1456 = vpop.f32.mrf.mxu0
        %v1457 = vpop.f32.mrf.mxu0
        %v1458 = vadd.f32 0.0, %v1457
        %v1459 = vpop.f32.mrf.mxu0
        %1460 = vmatprep.mubr.bf16.mxu0 %v1012
        %1461 = vmatmul.mubr.bf16.gmra.mxu0 %v798
        %v1462 = vpop.f32.mrf.mxu0
        %v1463 = vadd.f32 0.0, %v1462
        %v1464 = vpop.f32.mrf.mxu0
        %v1465 = vpop.f32.mrf.mxu0
        %v1466 = vadd.f32 0.0, %v1465
        %v1467 = vpop.f32.mrf.mxu0
        %1468 = vmatprep.mubr.bf16.mxu0 %v1015
        %1469 = vmatmul.mubr.bf16.gmra.mxu0 %v801
        %v1470 = vpop.f32.mrf.mxu0
        %v1471 = vadd.f32 0.0, %v1470
        %v1472 = vpop.f32.mrf.mxu0
        %v1473 = vpop.f32.mrf.mxu0
        %v1474 = vadd.f32 0.0, %v1473
        %v1475 = vpop.f32.mrf.mxu0
        %1476 = vmatprep.mubr.bf16.mxu0 %v1018
        %1477 = vmatmul.mubr.bf16.gmra.mxu0 %v804
        %v1478 = vpop.f32.mrf.mxu0
        %v1479 = vadd.f32 0.0, %v1478
        %v1480 = vpop.f32.mrf.mxu0
        %v1481 = vpop.f32.mrf.mxu0
        %v1482 = vadd.f32 0.0, %v1481
        %v1483 = vpop.f32.mrf.mxu0
        %1484 = vmatprep.mubr.bf16.mxu0 %v1021
        %1485 = vmatmul.mubr.bf16.gmra.mxu0 %v807
        %v1486 = vpop.f32.mrf.mxu0
        %v1487 = vadd.f32 0.0, %v1486
        %v1488 = vpop.f32.mrf.mxu0
        %v1489 = vpop.f32.mrf.mxu0
        %v1490 = vadd.f32 0.0, %v1489
        %v1491 = vpop.f32.mrf.mxu0
        %1492 = vmatprep.mubr.bf16.mxu0 %v1024
        %1493 = vmatmul.mubr.bf16.gmra.mxu0 %v810
        %v1494 = vpop.f32.mrf.mxu0
        %v1495 = vadd.f32 0.0, %v1494
        %v1496 = vpop.f32.mrf.mxu0
        %v1497 = vpop.f32.mrf.mxu0
        %v1498 = vadd.f32 0.0, %v1497
        %v1499 = vpop.f32.mrf.mxu0
        %1500 = vmatprep.mubr.bf16.mxu0 %v1027
        %1501 = vmatmul.mubr.bf16.gmra.mxu0 %v813
        %v1502 = vpop.f32.mrf.mxu0
        %v1503 = vadd.f32 0.0, %v1502
        %v1504 = vpop.f32.mrf.mxu0
        %v1505 = vpop.f32.mrf.mxu0
        %v1506 = vadd.f32 0.0, %v1505
        %v1507 = vpop.f32.mrf.mxu0
        %1508 = vmatprep.mubr.bf16.mxu0 %v1030
        %1509 = vmatmul.mubr.bf16.gmra.mxu0 %v816
        %v1510 = vpop.f32.mrf.mxu0
        %v1511 = vadd.f32 0.0, %v1510
        %v1512 = vpop.f32.mrf.mxu0
        %v1513 = vpop.f32.mrf.mxu0
        %v1514 = vadd.f32 0.0, %v1513
        %v1515 = vpop.f32.mrf.mxu0
        %1516 = vmatprep.mubr.bf16.mxu0 %v1033
        %1517 = vmatmul.mubr.bf16.gmra.mxu0 %v819
        %v1518 = vpop.f32.mrf.mxu0
        %v1519 = vadd.f32 0.0, %v1518
        %v1520 = vpop.f32.mrf.mxu0
        %v1521 = vpop.f32.mrf.mxu0
        %v1522 = vadd.f32 0.0, %v1521
        %v1523 = vpop.f32.mrf.mxu0
        %1524 = vmatprep.mubr.bf16.mxu0 %v1036
        %1525 = vmatmul.mubr.bf16.gmra.mxu0 %v822
        %v1526 = vpop.f32.mrf.mxu0
        %v1527 = vadd.f32 0.0, %v1526
        %v1528 = vpop.f32.mrf.mxu0
        %v1529 = vpop.f32.mrf.mxu0
        %v1530 = vadd.f32 0.0, %v1529
        %v1531 = vpop.f32.mrf.mxu0
        %1532 = vmatprep.mubr.bf16.mxu0 %v1039
        %1533 = vmatmul.mubr.bf16.gmra.mxu0 %v825
        %v1534 = vpop.f32.mrf.mxu0
        %v1535 = vadd.f32 0.0, %v1534
        %v1536 = vpop.f32.mrf.mxu0
        %v1537 = vpop.f32.mrf.mxu0
        %v1538 = vadd.f32 0.0, %v1537
        %v1539 = vpop.f32.mrf.mxu0
        %1540 = vmatprep.mubr.bf16.mxu0 %v1042
        %1541 = vmatmul.mubr.bf16.gmra.mxu0 %v828
        %v1542 = vpop.f32.mrf.mxu0
        %v1543 = vadd.f32 0.0, %v1542
        %v1544 = vpop.f32.mrf.mxu0
        %v1545 = vpop.f32.mrf.mxu0
        %v1546 = vadd.f32 0.0, %v1545
        %v1547 = vpop.f32.mrf.mxu0
        %1548 = vmatprep.mubr.bf16.mxu0 %v1045
        %1549 = vmatmul.mubr.bf16.gmra.mxu0 %v831
        %v1550 = vpop.f32.mrf.mxu0
        %v1551 = vadd.f32 0.0, %v1550
        %v1552 = vpop.f32.mrf.mxu0
        %v1553 = vpop.f32.mrf.mxu0
        %v1554 = vadd.f32 0.0, %v1553
        %v1555 = vpop.f32.mrf.mxu0
        %1556 = vmatprep.mubr.bf16.mxu0 %v1402
        %1557 = vmatmul.mubr.bf16.gmra.mxu0 %v834
        %v1558 = vpop.f32.mrf.mxu0
        %v1559 = vadd.f32 0.0, %v1558
        %v1560 = vpop.f32.mrf.mxu0
        %v1561 = vpop.f32.mrf.mxu0
        %v1562 = vadd.f32 0.0, %v1561
        %v1563 = vpop.f32.mrf.mxu0
        %1564 = vdwg.mxu0
        %v1565 = vadd.f32 %v1272, %v1439
        %v1566 = vadd.f32 %v1273, %v1442
        %v1567 = vadd.f32 %v1274, %v1447
        %v1568 = vadd.f32 %v1275, %v1450
        %v1569 = vadd.f32 %v1276, %v1455
        %v1570 = vadd.f32 %v1277, %v1458
        %v1571 = vadd.f32 %v1278, %v1463
        %v1572 = vadd.f32 %v1279, %v1466
        %v1573 = vadd.f32 %v1280, %v1471
        %v1574 = vadd.f32 %v1281, %v1474
        %v1575 = vadd.f32 %v1282, %v1479
        %v1576 = vadd.f32 %v1283, %v1482
        %v1577 = vadd.f32 %v1284, %v1487
        %v1578 = vadd.f32 %v1285, %v1490
        %v1579 = vadd.f32 %v1286, %v1495
        %v1580 = vadd.f32 %v1287, %v1498
        %v1581 = vadd.f32 %v1288, %v1503
        %v1582 = vadd.f32 %v1289, %v1506
        %v1583 = vadd.f32 %v1290, %v1511
        %v1584 = vadd.f32 %v1291, %v1514
        %v1585 = vadd.f32 %v1292, %v1519
        %v1586 = vadd.f32 %v1293, %v1522
        %v1587 = vadd.f32 %v1294, %v1527
        %v1588 = vadd.f32 %v1295, %v1530
        %v1589 = vadd.f32 %v1296, %v1535
        %v1590 = vadd.f32 %v1297, %v1538
        %v1591 = vadd.f32 %v1298, %v1543
        %v1592 = vadd.f32 %v1299, %v1546
        %v1593 = vadd.f32 %v1300, %v1551
        %v1594 = vadd.f32 %v1301, %v1554
        %v1595 = vadd.f32 %v1302, %v1559
        %v1596 = vadd.f32 %v1303, %v1562
        %1597 = vst.msk [vmem:[#allocation2] sm:$0xff] %vm784, %v1565
        %1598 = vst.msk [vmem:[#allocation2 + $0x8] sm:$0xff] %vm784, %v1566
        %1599 = vst.msk [vmem:[#allocation2 + $0x10] sm:$0xff] %vm784, %v1567
        %1600 = vst.msk [vmem:[#allocation2 + $0x18] sm:$0xff] %vm784, %v1568
        %1601 = vst.msk [vmem:[#allocation2 + $0x20] sm:$0xff] %vm784, %v1569
        %1602 = vst.msk [vmem:[#allocation2 + $0x28] sm:$0xff] %vm784, %v1570
        %1603 = vst.msk [vmem:[#allocation2 + $0x30] sm:$0xff] %vm784, %v1571
        %1604 = vst.msk [vmem:[#allocation2 + $0x38] sm:$0xff] %vm784, %v1572
        %1605 = vst.msk [vmem:[#allocation2 + $0x40] sm:$0xff] %vm784, %v1573
        %1606 = vst.msk [vmem:[#allocation2 + $0x48] sm:$0xff] %vm784, %v1574
        %1607 = vst.msk [vmem:[#allocation2 + $0x50] sm:$0xff] %vm784, %v1575
        %1608 = vst.msk [vmem:[#allocation2 + $0x58] sm:$0xff] %vm784, %v1576
        %1609 = vst.msk [vmem:[#allocation2 + $0x60] sm:$0xff] %vm784, %v1577
        %1610 = vst.msk [vmem:[#allocation2 + $0x68] sm:$0xff] %vm784, %v1578
        %1611 = vst.msk [vmem:[#allocation2 + $0x70] sm:$0xff] %vm784, %v1579
        %1612 = vst.msk [vmem:[#allocation2 + $0x78] sm:$0xff] %vm784, %v1580
        %1613 = vst.msk [vmem:[#allocation2 + $0x80] sm:$0xff] %vm784, %v1581
        %1614 = vst.msk [vmem:[#allocation2 + $0x88] sm:$0xff] %vm784, %v1582
        %1615 = vst.msk [vmem:[#allocation2 + $0x90] sm:$0xff] %vm784, %v1583
        %1616 = vst.msk [vmem:[#allocation2 + $0x98] sm:$0xff] %vm784, %v1584
        %1617 = vst.msk [vmem:[#allocation2 + $0xa0] sm:$0xff] %vm784, %v1585
        %1618 = vst.msk [vmem:[#allocation2 + $0xa8] sm:$0xff] %vm784, %v1586
        %1619 = vst.msk [vmem:[#allocation2 + $0xb0] sm:$0xff] %vm784, %v1587
        %1620 = vst.msk [vmem:[#allocation2 + $0xb8] sm:$0xff] %vm784, %v1588
        %1621 = vst.msk [vmem:[#allocation2 + $0xc0] sm:$0xff] %vm784, %v1589
        %1622 = vst.msk [vmem:[#allocation2 + $0xc8] sm:$0xff] %vm784, %v1590
        %1623 = vst.msk [vmem:[#allocation2 + $0xd0] sm:$0xff] %vm784, %v1591
        %1624 = vst.msk [vmem:[#allocation2 + $0xd8] sm:$0xff] %vm784, %v1592
        %1625 = vst.msk [vmem:[#allocation2 + $0xe0] sm:$0xff] %vm784, %v1593
        %1626 = vst.msk [vmem:[#allocation2 + $0xe8] sm:$0xff] %vm784, %v1594
        %1627 = vst.msk [vmem:[#allocation2 + $0xf0] sm:$0xff] %vm784, %v1595
        %1628 = vst.msk [vmem:[#allocation2 + $0xf8] sm:$0xff] %vm784, %v1596
        %v1629 = vld [vmem:[#allocation2] sm:$0xff]
        %v1630 = vld [vmem:[#allocation2 + $0x8] sm:$0xff]
        %v1631 = vld [vmem:[#allocation2 + $0x10] sm:$0xff]
        %v1632 = vld [vmem:[#allocation2 + $0x18] sm:$0xff]
        %v1633 = vld [vmem:[#allocation2 + $0x20] sm:$0xff]
        %v1634 = vld [vmem:[#allocation2 + $0x28] sm:$0xff]
        %v1635 = vld [vmem:[#allocation2 + $0x30] sm:$0xff]
        %v1636 = vld [vmem:[#allocation2 + $0x38] sm:$0xff]
        %v1637 = vld [vmem:[#allocation2 + $0x40] sm:$0xff]
        %v1638 = vld [vmem:[#allocation2 + $0x48] sm:$0xff]
        %v1639 = vld [vmem:[#allocation2 + $0x50] sm:$0xff]
        %v1640 = vld [vmem:[#allocation2 + $0x58] sm:$0xff]
        %v1641 = vld [vmem:[#allocation2 + $0x60] sm:$0xff]
        %v1642 = vld [vmem:[#allocation2 + $0x68] sm:$0xff]
        %v1643 = vld [vmem:[#allocation2 + $0x70] sm:$0xff]
        %v1644 = vld [vmem:[#allocation2 + $0x78] sm:$0xff]
        %v1645 = vld [vmem:[#allocation2 + $0x80] sm:$0xff]
        %v1646 = vld [vmem:[#allocation2 + $0x88] sm:$0xff]
        %v1647 = vld [vmem:[#allocation2 + $0x90] sm:$0xff]
        %v1648 = vld [vmem:[#allocation2 + $0x98] sm:$0xff]
        %v1649 = vld [vmem:[#allocation2 + $0xa0] sm:$0xff]
        %v1650 = vld [vmem:[#allocation2 + $0xa8] sm:$0xff]
        %v1651 = vld [vmem:[#allocation2 + $0xb0] sm:$0xff]
        %v1652 = vld [vmem:[#allocation2 + $0xb8] sm:$0xff]
        %v1653 = vld [vmem:[#allocation2 + $0xc0] sm:$0xff]
        %v1654 = vld [vmem:[#allocation2 + $0xc8] sm:$0xff]
        %v1655 = vld [vmem:[#allocation2 + $0xd0] sm:$0xff]
        %v1656 = vld [vmem:[#allocation2 + $0xd8] sm:$0xff]
        %v1657 = vld [vmem:[#allocation2 + $0xe0] sm:$0xff]
        %v1658 = vld [vmem:[#allocation2 + $0xe8] sm:$0xff]
        %v1659 = vld [vmem:[#allocation2 + $0xf0] sm:$0xff]
        %v1660 = vld [vmem:[#allocation2 + $0xf8] sm:$0xff]
        %s1661 = scalar_lea.vmem %s1, 192
        %v1662 = vld [vmem:[%s1661] sm:$0xf]
        %v1663 = vld [vmem:[%s1661 + $0x4] sm:$0xf]
        %v1664 = vld [vmem:[%s1661 + $0x8] sm:$0xf]
        %v1665 = vld [vmem:[%s1661 + $0xc] sm:$0xf]
        %v1666 = vld [vmem:[%s1661 + $0x10] sm:$0xf]
        %v1667 = vld [vmem:[%s1661 + $0x14] sm:$0xf]
        %v1668 = vld [vmem:[%s1661 + $0x18] sm:$0xf]
        %v1669 = vld [vmem:[%s1661 + $0x1c] sm:$0xf]
        %v1670 = vld [vmem:[%s1661 + $0x20] sm:$0xf]
        %v1671 = vld [vmem:[%s1661 + $0x24] sm:$0xf]
        %v1672 = vld [vmem:[%s1661 + $0x28] sm:$0xf]
        %v1673 = vld [vmem:[%s1661 + $0x2c] sm:$0xf]
        %v1674 = vld [vmem:[%s1661 + $0x30] sm:$0xf]
        %v1675 = vld [vmem:[%s1661 + $0x34] sm:$0xf]
        %v1676 = vld [vmem:[%s1661 + $0x38] sm:$0xf]
        %v1677 = vld [vmem:[%s1661 + $0x3c] sm:$0xf]
        %v1678 = vld [vmem:[%s1661 + $0x40] sm:$0xf]
        %v1679 = vld [vmem:[%s1661 + $0x44] sm:$0xf]
        %v1680 = vld [vmem:[%s1661 + $0x48] sm:$0xf]
        %v1681 = vld [vmem:[%s1661 + $0x4c] sm:$0xf]
        %v1682 = vld [vmem:[%s1661 + $0x50] sm:$0xf]
        %v1683 = vld [vmem:[%s1661 + $0x54] sm:$0xf]
        %v1684 = vld [vmem:[%s1661 + $0x58] sm:$0xf]
        %v1685 = vld [vmem:[%s1661 + $0x5c] sm:$0xf]
        %v1710 = vunpack.c.l.b16 %v1662
        %v1711 = vunpack.c.l.b16 %v1663
        %v1712 = vunpack.c.l.b16 %v1664
        %v1713 = vunpack.c.l.b16 %v1665
        %v1714 = vunpack.c.l.b16 %v1666
        %v1715 = vunpack.c.l.b16 %v1667
        %v1716 = vunpack.c.l.b16 %v1668
        %v1717 = vunpack.c.l.b16 %v1669
        %v1718 = vunpack.c.l.b16 %v1670
        %v1719 = vunpack.c.l.b16 %v1671
        %v1720 = vunpack.c.l.b16 %v1672
        %v1721 = vunpack.c.l.b16 %v1673
        %v1722 = vunpack.c.l.b16 %v1674
        %v1723 = vunpack.c.l.b16 %v1675
        %v1724 = vunpack.c.l.b16 %v1676
        %v1725 = vunpack.c.l.b16 %v1677
        %v1726 = vunpack.c.l.b16 %v1678
        %v1727 = vunpack.c.l.b16 %v1679
        %v1728 = vunpack.c.l.b16 %v1680
        %v1729 = vunpack.c.l.b16 %v1681
        %v1730 = vunpack.c.l.b16 %v1682
        %v1731 = vunpack.c.l.b16 %v1683
        %v1732 = vunpack.c.l.b16 %v1684
        %v1733 = vunpack.c.l.b16 %v1685
        %v1734 = vpack.c.b16 %v1711, %v1710
        %v1735 = vpack.c.b16 %v1713, %v1712
        %v1736 = vpack.c.b16 %v1715, %v1714
        %v1737 = vpack.c.b16 %v1717, %v1716
        %v1738 = vpack.c.b16 %v1719, %v1718
        %v1739 = vpack.c.b16 %v1721, %v1720
        %v1740 = vpack.c.b16 %v1723, %v1722
        %v1741 = vpack.c.b16 %v1725, %v1724
        %v1742 = vpack.c.b16 %v1727, %v1726
        %v1743 = vpack.c.b16 %v1729, %v1728
        %v1744 = vpack.c.b16 %v1731, %v1730
        %v1745 = vpack.c.b16 %v1733, %v1732
        %v1759 = vsel %vm784, %v783, 0
        %1761 = vmatprep.subr.bf16.mxu0 0
        %1762 = vmatpush1.bf16.msra.mxu0 %v1741
        %1763 = vmatprep.subr.bf16.mxu0 0
        %1764 = vmatpush1.bf16.msra.mxu0 %v1740
        %1765 = vmatprep.subr.bf16.mxu0 0
        %1766 = vmatpush1.bf16.msra.mxu0 %v1739
        %1767 = vmatprep.subr.bf16.mxu0 0
        %1768 = vmatpush1.bf16.msra.mxu0 %v1738
        %1769 = vmatprep.subr.bf16.mxu0 0
        %1770 = vmatpush1.bf16.msra.mxu0 %v1737
        %1771 = vmatprep.subr.bf16.mxu0 0
        %1772 = vmatpush1.bf16.msra.mxu0 %v1736
        %1773 = vmatprep.subr.bf16.mxu0 0
        %1774 = vmatpush1.bf16.msra.mxu0 %v1735
        %1775 = vmatprep.subr.bf16.mxu0 0
        %1776 = vmatpush1.bf16.msra.mxu0 %v1734
        %1777 = vmatprep.subr.bf16.mxu0 0
        %1778 = vmatpush2.bf16.msra.mxu0 0
        %1779 = vmatprep.subr.bf16.mxu0 0
        %1780 = vmatpush2.bf16.msra.mxu0 0
        %1781 = vmatprep.subr.bf16.mxu0 0
        %1782 = vmatpush2.bf16.msra.mxu0 0
        %1783 = vmatprep.subr.bf16.mxu0 0
        %1784 = vmatpush2.bf16.msra.mxu0 0
        %1785 = vmatprep.subr.bf16.mxu0 0
        %1786 = vmatpush2.bf16.msra.mxu0 %v1745
        %1787 = vmatprep.subr.bf16.mxu0 0
        %1788 = vmatpush2.bf16.msra.mxu0 %v1744
        %1789 = vmatprep.subr.bf16.mxu0 0
        %1790 = vmatpush2.bf16.msra.mxu0 %v1743
        %1791 = vmatprep.subr.bf16.mxu0 0
        %1792 = vmatpush2.bf16.msra.mxu0 %v1742
        %1793 = vmatprep.mubr.bf16.mxu0 %v1006
        %1794 = vmatmul.mubr.bf16.gmra.mxu0 %v792
        %v1795 = vpop.f32.mrf.mxu0
        %v1796 = vadd.f32 0.0, %v1795
        %v1797 = vpop.f32.mrf.mxu0
        %v1798 = vpop.f32.mrf.mxu0
        %v1799 = vadd.f32 0.0, %v1798
        %v1800 = vpop.f32.mrf.mxu0
        %1801 = vmatprep.mubr.bf16.mxu0 %v1009
        %1802 = vmatmul.mubr.bf16.gmra.mxu0 %v795
        %v1803 = vpop.f32.mrf.mxu0
        %v1804 = vadd.f32 0.0, %v1803
        %v1805 = vpop.f32.mrf.mxu0
        %v1806 = vpop.f32.mrf.mxu0
        %v1807 = vadd.f32 0.0, %v1806
        %v1808 = vpop.f32.mrf.mxu0
        %1809 = vmatprep.mubr.bf16.mxu0 %v1012
        %1810 = vmatmul.mubr.bf16.gmra.mxu0 %v798
        %v1811 = vpop.f32.mrf.mxu0
        %v1812 = vadd.f32 0.0, %v1811
        %v1813 = vpop.f32.mrf.mxu0
        %v1814 = vpop.f32.mrf.mxu0
        %v1815 = vadd.f32 0.0, %v1814
        %v1816 = vpop.f32.mrf.mxu0
        %1817 = vmatprep.mubr.bf16.mxu0 %v1015
        %1818 = vmatmul.mubr.bf16.gmra.mxu0 %v801
        %v1819 = vpop.f32.mrf.mxu0
        %v1820 = vadd.f32 0.0, %v1819
        %v1821 = vpop.f32.mrf.mxu0
        %v1822 = vpop.f32.mrf.mxu0
        %v1823 = vadd.f32 0.0, %v1822
        %v1824 = vpop.f32.mrf.mxu0
        %1825 = vmatprep.mubr.bf16.mxu0 %v1018
        %1826 = vmatmul.mubr.bf16.gmra.mxu0 %v804
        %v1827 = vpop.f32.mrf.mxu0
        %v1828 = vadd.f32 0.0, %v1827
        %v1829 = vpop.f32.mrf.mxu0
        %v1830 = vpop.f32.mrf.mxu0
        %v1831 = vadd.f32 0.0, %v1830
        %v1832 = vpop.f32.mrf.mxu0
        %1833 = vmatprep.mubr.bf16.mxu0 %v1021
        %1834 = vmatmul.mubr.bf16.gmra.mxu0 %v807
        %v1835 = vpop.f32.mrf.mxu0
        %v1836 = vadd.f32 0.0, %v1835
        %v1837 = vpop.f32.mrf.mxu0
        %v1838 = vpop.f32.mrf.mxu0
        %v1839 = vadd.f32 0.0, %v1838
        %v1840 = vpop.f32.mrf.mxu0
        %1841 = vmatprep.mubr.bf16.mxu0 %v1024
        %1842 = vmatmul.mubr.bf16.gmra.mxu0 %v810
        %v1843 = vpop.f32.mrf.mxu0
        %v1844 = vadd.f32 0.0, %v1843
        %v1845 = vpop.f32.mrf.mxu0
        %v1846 = vpop.f32.mrf.mxu0
        %v1847 = vadd.f32 0.0, %v1846
        %v1848 = vpop.f32.mrf.mxu0
        %1849 = vmatprep.mubr.bf16.mxu0 %v1027
        %1850 = vmatmul.mubr.bf16.gmra.mxu0 %v813
        %v1851 = vpop.f32.mrf.mxu0
        %v1852 = vadd.f32 0.0, %v1851
        %v1853 = vpop.f32.mrf.mxu0
        %v1854 = vpop.f32.mrf.mxu0
        %v1855 = vadd.f32 0.0, %v1854
        %v1856 = vpop.f32.mrf.mxu0
        %1857 = vmatprep.mubr.bf16.mxu0 %v1030
        %1858 = vmatmul.mubr.bf16.gmra.mxu0 %v816
        %v1859 = vpop.f32.mrf.mxu0
        %v1860 = vadd.f32 0.0, %v1859
        %v1861 = vpop.f32.mrf.mxu0
        %v1862 = vpop.f32.mrf.mxu0
        %v1863 = vadd.f32 0.0, %v1862
        %v1864 = vpop.f32.mrf.mxu0
        %1865 = vmatprep.mubr.bf16.mxu0 %v1033
        %1866 = vmatmul.mubr.bf16.gmra.mxu0 %v819
        %v1867 = vpop.f32.mrf.mxu0
        %v1868 = vadd.f32 0.0, %v1867
        %v1869 = vpop.f32.mrf.mxu0
        %v1870 = vpop.f32.mrf.mxu0
        %v1871 = vadd.f32 0.0, %v1870
        %v1872 = vpop.f32.mrf.mxu0
        %1873 = vmatprep.mubr.bf16.mxu0 %v1036
        %1874 = vmatmul.mubr.bf16.gmra.mxu0 %v822
        %v1875 = vpop.f32.mrf.mxu0
        %v1876 = vadd.f32 0.0, %v1875
        %v1877 = vpop.f32.mrf.mxu0
        %v1878 = vpop.f32.mrf.mxu0
        %v1879 = vadd.f32 0.0, %v1878
        %v1880 = vpop.f32.mrf.mxu0
        %1881 = vmatprep.mubr.bf16.mxu0 %v1039
        %1882 = vmatmul.mubr.bf16.gmra.mxu0 %v825
        %v1883 = vpop.f32.mrf.mxu0
        %v1884 = vadd.f32 0.0, %v1883
        %v1885 = vpop.f32.mrf.mxu0
        %v1886 = vpop.f32.mrf.mxu0
        %v1887 = vadd.f32 0.0, %v1886
        %v1888 = vpop.f32.mrf.mxu0
        %1889 = vmatprep.mubr.bf16.mxu0 %v1042
        %1890 = vmatmul.mubr.bf16.gmra.mxu0 %v828
        %v1891 = vpop.f32.mrf.mxu0
        %v1892 = vadd.f32 0.0, %v1891
        %v1893 = vpop.f32.mrf.mxu0
        %v1894 = vpop.f32.mrf.mxu0
        %v1895 = vadd.f32 0.0, %v1894
        %v1896 = vpop.f32.mrf.mxu0
        %1897 = vmatprep.mubr.bf16.mxu0 %v1045
        %1898 = vmatmul.mubr.bf16.gmra.mxu0 %v831
        %v1899 = vpop.f32.mrf.mxu0
        %v1900 = vadd.f32 0.0, %v1899
        %v1901 = vpop.f32.mrf.mxu0
        %v1902 = vpop.f32.mrf.mxu0
        %v1903 = vadd.f32 0.0, %v1902
        %v1904 = vpop.f32.mrf.mxu0
        %1905 = vmatprep.mubr.bf16.mxu0 %v1402
        %1906 = vmatmul.mubr.bf16.gmra.mxu0 %v834
        %v1907 = vpop.f32.mrf.mxu0
        %v1908 = vadd.f32 0.0, %v1907
        %v1909 = vpop.f32.mrf.mxu0
        %v1910 = vpop.f32.mrf.mxu0
        %v1911 = vadd.f32 0.0, %v1910
        %v1912 = vpop.f32.mrf.mxu0
        %1913 = vmatprep.mubr.bf16.mxu0 %v1759
        %1914 = vmatmul.mubr.bf16.gmra.mxu0 %v837
        %v1915 = vpop.f32.mrf.mxu0
        %v1916 = vadd.f32 0.0, %v1915
        %v1917 = vpop.f32.mrf.mxu0
        %v1918 = vpop.f32.mrf.mxu0
        %v1919 = vadd.f32 0.0, %v1918
        %v1920 = vpop.f32.mrf.mxu0
        %1921 = vdwg.mxu0
        %v1922 = vadd.f32 %v1629, %v1796
        %v1923 = vadd.f32 %v1630, %v1799
        %v1924 = vadd.f32 %v1631, %v1804
        %v1925 = vadd.f32 %v1632, %v1807
        %v1926 = vadd.f32 %v1633, %v1812
        %v1927 = vadd.f32 %v1634, %v1815
        %v1928 = vadd.f32 %v1635, %v1820
        %v1929 = vadd.f32 %v1636, %v1823
        %v1930 = vadd.f32 %v1637, %v1828
        %v1931 = vadd.f32 %v1638, %v1831
        %v1932 = vadd.f32 %v1639, %v1836
        %v1933 = vadd.f32 %v1640, %v1839
        %v1934 = vadd.f32 %v1641, %v1844
        %v1935 = vadd.f32 %v1642, %v1847
        %v1936 = vadd.f32 %v1643, %v1852
        %v1937 = vadd.f32 %v1644, %v1855
        %v1938 = vadd.f32 %v1645, %v1860
        %v1939 = vadd.f32 %v1646, %v1863
        %v1940 = vadd.f32 %v1647, %v1868
        %v1941 = vadd.f32 %v1648, %v1871
        %v1942 = vadd.f32 %v1649, %v1876
        %v1943 = vadd.f32 %v1650, %v1879
        %v1944 = vadd.f32 %v1651, %v1884
        %v1945 = vadd.f32 %v1652, %v1887
        %v1946 = vadd.f32 %v1653, %v1892
        %v1947 = vadd.f32 %v1654, %v1895
        %v1948 = vadd.f32 %v1655, %v1900
        %v1949 = vadd.f32 %v1656, %v1903
        %v1950 = vadd.f32 %v1657, %v1908
        %v1951 = vadd.f32 %v1658, %v1911
        %v1952 = vadd.f32 %v1659, %v1916
        %v1953 = vadd.f32 %v1660, %v1919
        %1954 = vst.msk [vmem:[#allocation2] sm:$0xff] %vm784, %v1922
        %1955 = vst.msk [vmem:[#allocation2 + $0x8] sm:$0xff] %vm784, %v1923
        %1956 = vst.msk [vmem:[#allocation2 + $0x10] sm:$0xff] %vm784, %v1924
        %1957 = vst.msk [vmem:[#allocation2 + $0x18] sm:$0xff] %vm784, %v1925
        %1958 = vst.msk [vmem:[#allocation2 + $0x20] sm:$0xff] %vm784, %v1926
        %1959 = vst.msk [vmem:[#allocation2 + $0x28] sm:$0xff] %vm784, %v1927
        %1960 = vst.msk [vmem:[#allocation2 + $0x30] sm:$0xff] %vm784, %v1928
        %1961 = vst.msk [vmem:[#allocation2 + $0x38] sm:$0xff] %vm784, %v1929
        %1962 = vst.msk [vmem:[#allocation2 + $0x40] sm:$0xff] %vm784, %v1930
        %1963 = vst.msk [vmem:[#allocation2 + $0x48] sm:$0xff] %vm784, %v1931
        %1964 = vst.msk [vmem:[#allocation2 + $0x50] sm:$0xff] %vm784, %v1932
        %1965 = vst.msk [vmem:[#allocation2 + $0x58] sm:$0xff] %vm784, %v1933
        %1966 = vst.msk [vmem:[#allocation2 + $0x60] sm:$0xff] %vm784, %v1934
        %1967 = vst.msk [vmem:[#allocation2 + $0x68] sm:$0xff] %vm784, %v1935
        %1968 = vst.msk [vmem:[#allocation2 + $0x70] sm:$0xff] %vm784, %v1936
        %1969 = vst.msk [vmem:[#allocation2 + $0x78] sm:$0xff] %vm784, %v1937
        %1970 = vst.msk [vmem:[#allocation2 + $0x80] sm:$0xff] %vm784, %v1938
        %1971 = vst.msk [vmem:[#allocation2 + $0x88] sm:$0xff] %vm784, %v1939
        %1972 = vst.msk [vmem:[#allocation2 + $0x90] sm:$0xff] %vm784, %v1940
        %1973 = vst.msk [vmem:[#allocation2 + $0x98] sm:$0xff] %vm784, %v1941
        %1974 = vst.msk [vmem:[#allocation2 + $0xa0] sm:$0xff] %vm784, %v1942
        %1975 = vst.msk [vmem:[#allocation2 + $0xa8] sm:$0xff] %vm784, %v1943
        %1976 = vst.msk [vmem:[#allocation2 + $0xb0] sm:$0xff] %vm784, %v1944
        %1977 = vst.msk [vmem:[#allocation2 + $0xb8] sm:$0xff] %vm784, %v1945
        %1978 = vst.msk [vmem:[#allocation2 + $0xc0] sm:$0xff] %vm784, %v1946
        %1979 = vst.msk [vmem:[#allocation2 + $0xc8] sm:$0xff] %vm784, %v1947
        %1980 = vst.msk [vmem:[#allocation2 + $0xd0] sm:$0xff] %vm784, %v1948
        %1981 = vst.msk [vmem:[#allocation2 + $0xd8] sm:$0xff] %vm784, %v1949
        %1982 = vst.msk [vmem:[#allocation2 + $0xe0] sm:$0xff] %vm784, %v1950
        %1983 = vst.msk [vmem:[#allocation2 + $0xe8] sm:$0xff] %vm784, %v1951
        %1984 = vst.msk [vmem:[#allocation2 + $0xf0] sm:$0xff] %vm784, %v1952
        %1985 = vst.msk [vmem:[#allocation2 + $0xf8] sm:$0xff] %vm784, %v1953
        %v1986 = vld [vmem:[#allocation2] sm:$0xff]
        %v1987 = vld [vmem:[#allocation2 + $0x8] sm:$0xff]
        %v1988 = vld [vmem:[#allocation2 + $0x10] sm:$0xff]
        %v1989 = vld [vmem:[#allocation2 + $0x18] sm:$0xff]
        %v1990 = vld [vmem:[#allocation2 + $0x20] sm:$0xff]
        %v1991 = vld [vmem:[#allocation2 + $0x28] sm:$0xff]
        %v1992 = vld [vmem:[#allocation2 + $0x30] sm:$0xff]
        %v1993 = vld [vmem:[#allocation2 + $0x38] sm:$0xff]
        %v1994 = vld [vmem:[#allocation2 + $0x40] sm:$0xff]
        %v1995 = vld [vmem:[#allocation2 + $0x48] sm:$0xff]
        %v1996 = vld [vmem:[#allocation2 + $0x50] sm:$0xff]
        %v1997 = vld [vmem:[#allocation2 + $0x58] sm:$0xff]
        %v1998 = vld [vmem:[#allocation2 + $0x60] sm:$0xff]
        %v1999 = vld [vmem:[#allocation2 + $0x68] sm:$0xff]
        %v2000 = vld [vmem:[#allocation2 + $0x70] sm:$0xff]
        %v2001 = vld [vmem:[#allocation2 + $0x78] sm:$0xff]
        %v2002 = vld [vmem:[#allocation2 + $0x80] sm:$0xff]
        %v2003 = vld [vmem:[#allocation2 + $0x88] sm:$0xff]
        %v2004 = vld [vmem:[#allocation2 + $0x90] sm:$0xff]
        %v2005 = vld [vmem:[#allocation2 + $0x98] sm:$0xff]
        %v2006 = vld [vmem:[#allocation2 + $0xa0] sm:$0xff]
        %v2007 = vld [vmem:[#allocation2 + $0xa8] sm:$0xff]
        %v2008 = vld [vmem:[#allocation2 + $0xb0] sm:$0xff]
        %v2009 = vld [vmem:[#allocation2 + $0xb8] sm:$0xff]
        %v2010 = vld [vmem:[#allocation2 + $0xc0] sm:$0xff]
        %v2011 = vld [vmem:[#allocation2 + $0xc8] sm:$0xff]
        %v2012 = vld [vmem:[#allocation2 + $0xd0] sm:$0xff]
        %v2013 = vld [vmem:[#allocation2 + $0xd8] sm:$0xff]
        %v2014 = vld [vmem:[#allocation2 + $0xe0] sm:$0xff]
        %v2015 = vld [vmem:[#allocation2 + $0xe8] sm:$0xff]
        %v2016 = vld [vmem:[#allocation2 + $0xf0] sm:$0xff]
        %v2017 = vld [vmem:[#allocation2 + $0xf8] sm:$0xff]
        %v2018 = vld [vmem:[%s2] sm:$0x1]
        %v2020 = vlaneseq
        %v2021 = vshrl.u32 %v2020, 7
        %v2022 = vsub.s32 0, %v2021
        %v2023 = vrot.slane %v2018, %v2022
        %v2025 = vmul.f32 %v1986, %v2023
        %v2026 = vmul.f32 %v1987, %v2023
        %v2027 = vmul.f32 %v1988, %v2023
        %v2028 = vmul.f32 %v1989, %v2023
        %v2029 = vmul.f32 %v1990, %v2023
        %v2030 = vmul.f32 %v1991, %v2023
        %v2031 = vmul.f32 %v1992, %v2023
        %v2032 = vmul.f32 %v1993, %v2023
        %v2033 = vmul.f32 %v1994, %v2023
        %v2034 = vmul.f32 %v1995, %v2023
        %v2035 = vmul.f32 %v1996, %v2023
        %v2036 = vmul.f32 %v1997, %v2023
        %v2037 = vmul.f32 %v1998, %v2023
        %v2038 = vmul.f32 %v1999, %v2023
        %v2039 = vmul.f32 %v2000, %v2023
        %v2040 = vmul.f32 %v2001, %v2023
        %v2041 = vmul.f32 %v2002, %v2023
        %v2042 = vmul.f32 %v2003, %v2023
        %v2043 = vmul.f32 %v2004, %v2023
        %v2044 = vmul.f32 %v2005, %v2023
        %v2045 = vmul.f32 %v2006, %v2023
        %v2046 = vmul.f32 %v2007, %v2023
        %v2047 = vmul.f32 %v2008, %v2023
        %v2048 = vmul.f32 %v2009, %v2023
        %v2049 = vmul.f32 %v2010, %v2023
        %v2050 = vmul.f32 %v2011, %v2023
        %v2051 = vmul.f32 %v2012, %v2023
        %v2052 = vmul.f32 %v2013, %v2023
        %v2053 = vmul.f32 %v2014, %v2023
        %v2054 = vmul.f32 %v2015, %v2023
        %v2055 = vmul.f32 %v2016, %v2023
        %v2056 = vmul.f32 %v2017, %v2023
        %v2057 = vld [vmem:[%s3] sm:$0x1]
        %v2059 = vlaneseq
        %v2060 = vshrl.u32 %v2059, 7
        %v2061 = vsub.s32 0, %v2060
        %v2062 = vrot.slane %v2057, %v2061
        %v2064 = vadd.f32 %v2025, %v2062
        %v2065 = vadd.f32 %v2026, %v2062
        %v2066 = vadd.f32 %v2027, %v2062
        %v2067 = vadd.f32 %v2028, %v2062
        %v2068 = vadd.f32 %v2029, %v2062
        %v2069 = vadd.f32 %v2030, %v2062
        %v2070 = vadd.f32 %v2031, %v2062
        %v2071 = vadd.f32 %v2032, %v2062
        %v2072 = vadd.f32 %v2033, %v2062
        %v2073 = vadd.f32 %v2034, %v2062
        %v2074 = vadd.f32 %v2035, %v2062
        %v2075 = vadd.f32 %v2036, %v2062
        %v2076 = vadd.f32 %v2037, %v2062
        %v2077 = vadd.f32 %v2038, %v2062
        %v2078 = vadd.f32 %v2039, %v2062
        %v2079 = vadd.f32 %v2040, %v2062
        %v2080 = vadd.f32 %v2041, %v2062
        %v2081 = vadd.f32 %v2042, %v2062
        %v2082 = vadd.f32 %v2043, %v2062
        %v2083 = vadd.f32 %v2044, %v2062
        %v2084 = vadd.f32 %v2045, %v2062
        %v2085 = vadd.f32 %v2046, %v2062
        %v2086 = vadd.f32 %v2047, %v2062
        %v2087 = vadd.f32 %v2048, %v2062
        %v2088 = vadd.f32 %v2049, %v2062
        %v2089 = vadd.f32 %v2050, %v2062
        %v2090 = vadd.f32 %v2051, %v2062
        %v2091 = vadd.f32 %v2052, %v2062
        %v2092 = vadd.f32 %v2053, %v2062
        %v2093 = vadd.f32 %v2054, %v2062
        %v2094 = vadd.f32 %v2055, %v2062
        %v2095 = vadd.f32 %v2056, %v2062
        %v2096 = vmax.f32 %v2064, 0.0
        %v2097 = vmax.f32 %v2065, 0.0
        %v2098 = vmax.f32 %v2066, 0.0
        %v2099 = vmax.f32 %v2067, 0.0
        %v2100 = vmax.f32 %v2068, 0.0
        %v2101 = vmax.f32 %v2069, 0.0
        %v2102 = vmax.f32 %v2070, 0.0
        %v2103 = vmax.f32 %v2071, 0.0
        %v2104 = vmax.f32 %v2072, 0.0
        %v2105 = vmax.f32 %v2073, 0.0
        %v2106 = vmax.f32 %v2074, 0.0
        %v2107 = vmax.f32 %v2075, 0.0
        %v2108 = vmax.f32 %v2076, 0.0
        %v2109 = vmax.f32 %v2077, 0.0
        %v2110 = vmax.f32 %v2078, 0.0
        %v2111 = vmax.f32 %v2079, 0.0
        %v2112 = vmax.f32 %v2080, 0.0
        %v2113 = vmax.f32 %v2081, 0.0
        %v2114 = vmax.f32 %v2082, 0.0
        %v2115 = vmax.f32 %v2083, 0.0
        %v2116 = vmax.f32 %v2084, 0.0
        %v2117 = vmax.f32 %v2085, 0.0
        %v2118 = vmax.f32 %v2086, 0.0
        %v2119 = vmax.f32 %v2087, 0.0
        %v2120 = vmax.f32 %v2088, 0.0
        %v2121 = vmax.f32 %v2089, 0.0
        %v2122 = vmax.f32 %v2090, 0.0
        %v2123 = vmax.f32 %v2091, 0.0
        %v2124 = vmax.f32 %v2092, 0.0
        %v2125 = vmax.f32 %v2093, 0.0
        %v2126 = vmax.f32 %v2094, 0.0
        %v2127 = vmax.f32 %v2095, 0.0
        %2128 = vst.msk [vmem:[#allocation3] sm:$0xff] %vm784, 0.0
        %2129 = vst.msk [vmem:[#allocation3 + $0x8] sm:$0xff] %vm784, 0.0
        %vm2130 = vcmask 517120
        %2131 = vst.msk [vmem:[#allocation3 + $0x10] sm:$0x3] %vm2130, 0.0
        %2132 = vst.msk [vmem:[#allocation3 + $0x18] sm:$0xff] %vm784, 0.0
        %2133 = vst.msk [vmem:[#allocation3 + $0x20] sm:$0xff] %vm784, 0.0
        %2134 = vst.msk [vmem:[#allocation3 + $0x28] sm:$0x3] %vm2130, 0.0
        %2135 = vst.msk [vmem:[#allocation3 + $0x30] sm:$0xff] %vm784, 0.0
        %2136 = vst.msk [vmem:[#allocation3 + $0x38] sm:$0xff] %vm784, 0.0
        %2137 = vst.msk [vmem:[#allocation3 + $0x40] sm:$0x3] %vm2130, 0.0
        %2138 = vst.msk [vmem:[#allocation3 + $0x48] sm:$0xff] %vm784, 0.0
        %2139 = vst.msk [vmem:[#allocation3 + $0x50] sm:$0xff] %vm784, 0.0
        %2140 = vst.msk [vmem:[#allocation3 + $0x58] sm:$0x3] %vm2130, 0.0
        %2141 = vst.msk [vmem:[#allocation3 + $0x60] sm:$0xff] %vm784, 0.0
        %2142 = vst.msk [vmem:[#allocation3 + $0x68] sm:$0xff] %vm784, 0.0
        %2143 = vst.msk [vmem:[#allocation3 + $0x70] sm:$0x3] %vm2130, 0.0
        %2144 = vst.msk [vmem:[#allocation3 + $0x78] sm:$0xff] %vm784, 0.0
        %2145 = vst.msk [vmem:[#allocation3 + $0x80] sm:$0xff] %vm784, 0.0
        %2146 = vst.msk [vmem:[#allocation3 + $0x88] sm:$0x3] %vm2130, 0.0
        %2147 = vst.msk [vmem:[#allocation3 + $0x90] sm:$0xff] %vm784, 0.0
        %2148 = vst.msk [vmem:[#allocation3 + $0x98] sm:$0xff] %vm784, 0.0
        %2149 = vst.msk [vmem:[#allocation3 + $0xa0] sm:$0x3] %vm2130, 0.0
        %2150 = vst.msk [vmem:[#allocation3 + $0xa8] sm:$0xff] %vm784, 0.0
        %2151 = vst.msk [vmem:[#allocation3 + $0xb0] sm:$0xff] %vm784, 0.0
        %2152 = vst.msk [vmem:[#allocation3 + $0xb8] sm:$0x3] %vm2130, 0.0
        %2153 = vst.msk [vmem:[#allocation3 + $0xc0] sm:$0xff] %vm784, 0.0
        %2154 = vst.msk [vmem:[#allocation3 + $0xc8] sm:$0xff] %vm784, 0.0
        %2155 = vst.msk [vmem:[#allocation3 + $0xd0] sm:$0x3] %vm2130, 0.0
        %2156 = vst.msk [vmem:[#allocation3 + $0xd8] sm:$0xff] %vm784, 0.0
        %2157 = vst.msk [vmem:[#allocation3 + $0xe0] sm:$0xff] %vm784, 0.0
        %2158 = vst.msk [vmem:[#allocation3 + $0xe8] sm:$0x3] %vm2130, 0.0
        %2159 = vst.msk [vmem:[#allocation3 + $0xf0] sm:$0xff] %vm784, 0.0
        %2160 = vst.msk [vmem:[#allocation3 + $0xf8] sm:$0xff] %vm784, 0.0
        %2161 = vst.msk [vmem:[#allocation3 + $0x100] sm:$0x3] %vm2130, 0.0
        %2162 = vst.msk [vmem:[#allocation3 + $0x108] sm:$0xff] %vm784, 0.0
        %2163 = vst.msk [vmem:[#allocation3 + $0x110] sm:$0xff] %vm784, 0.0
        %2164 = vst.msk [vmem:[#allocation3 + $0x118] sm:$0x3] %vm2130, 0.0
        %2165 = vst.msk [vmem:[#allocation3 + $0x120] sm:$0xff] %vm784, 0.0
        %2166 = vst.msk [vmem:[#allocation3 + $0x128] sm:$0xff] %vm784, 0.0
        %2167 = vst.msk [vmem:[#allocation3 + $0x130] sm:$0x3] %vm2130, 0.0
        %2168 = vst.msk [vmem:[#allocation3 + $0x138] sm:$0xff] %vm784, 0.0
        %2169 = vst.msk [vmem:[#allocation3 + $0x140] sm:$0xff] %vm784, 0.0
        %2170 = vst.msk [vmem:[#allocation3 + $0x148] sm:$0x3] %vm2130, 0.0
        %2171 = vst.msk [vmem:[#allocation3 + $0x150] sm:$0xff] %vm784, 0.0
        %2172 = vst.msk [vmem:[#allocation3 + $0x158] sm:$0xff] %vm784, 0.0
        %2173 = vst.msk [vmem:[#allocation3 + $0x160] sm:$0x3] %vm2130, 0.0
        %2174 = vst.msk [vmem:[#allocation3 + $0x168] sm:$0xff] %vm784, 0.0
        %2175 = vst.msk [vmem:[#allocation3 + $0x170] sm:$0xff] %vm784, 0.0
        %2176 = vst.msk [vmem:[#allocation3 + $0x178] sm:$0x3] %vm2130, 0.0
        %2177 = vst.msk [vmem:[#allocation3 + $0x180] sm:$0xff] %vm784, 0.0
        %2178 = vst.msk [vmem:[#allocation3 + $0x188] sm:$0xff] %vm784, 0.0
        %2179 = vst.msk [vmem:[#allocation3 + $0x190] sm:$0x3] %vm2130, 0.0
        %2180 = vst.msk [vmem:[#allocation3 + $0x198] sm:$0xff] %vm784, 0.0
        %2181 = vst.msk [vmem:[#allocation3 + $0x1a0] sm:$0xff] %vm784, 0.0
        %2182 = vst.msk [vmem:[#allocation3 + $0x1a8] sm:$0x3] %vm2130, 0.0
        %s2183 = scalar_lea.vmem [#allocation3], 24
        %2184 = vst.msk [vmem:[%s2183 + $0x1] sm:$0xff] %vm784, %v2096
        %2185 = vst.msk [vmem:[%s2183 + $0x9] sm:$0xff] %vm784, %v2097
        %2186 = vst.msk [vmem:[%s2183 + $0x19] sm:$0xff] %vm784, %v2098
        %2187 = vst.msk [vmem:[%s2183 + $0x21] sm:$0xff] %vm784, %v2099
        %2188 = vst.msk [vmem:[%s2183 + $0x31] sm:$0xff] %vm784, %v2100
        %2189 = vst.msk [vmem:[%s2183 + $0x39] sm:$0xff] %vm784, %v2101
        %2190 = vst.msk [vmem:[%s2183 + $0x49] sm:$0xff] %vm784, %v2102
        %2191 = vst.msk [vmem:[%s2183 + $0x51] sm:$0xff] %vm784, %v2103
        %2192 = vst.msk [vmem:[%s2183 + $0x61] sm:$0xff] %vm784, %v2104
        %2193 = vst.msk [vmem:[%s2183 + $0x69] sm:$0xff] %vm784, %v2105
        %2194 = vst.msk [vmem:[%s2183 + $0x79] sm:$0xff] %vm784, %v2106
        %2195 = vst.msk [vmem:[%s2183 + $0x81] sm:$0xff] %vm784, %v2107
        %2196 = vst.msk [vmem:[%s2183 + $0x91] sm:$0xff] %vm784, %v2108
        %2197 = vst.msk [vmem:[%s2183 + $0x99] sm:$0xff] %vm784, %v2109
        %2198 = vst.msk [vmem:[%s2183 + $0xa9] sm:$0xff] %vm784, %v2110
        %2199 = vst.msk [vmem:[%s2183 + $0xb1] sm:$0xff] %vm784, %v2111
        %2200 = vst.msk [vmem:[%s2183 + $0xc1] sm:$0xff] %vm784, %v2112
        %2201 = vst.msk [vmem:[%s2183 + $0xc9] sm:$0xff] %vm784, %v2113
        %2202 = vst.msk [vmem:[%s2183 + $0xd9] sm:$0xff] %vm784, %v2114
        %2203 = vst.msk [vmem:[%s2183 + $0xe1] sm:$0xff] %vm784, %v2115
        %2204 = vst.msk [vmem:[%s2183 + $0xf1] sm:$0xff] %vm784, %v2116
        %2205 = vst.msk [vmem:[%s2183 + $0xf9] sm:$0xff] %vm784, %v2117
        %2206 = vst.msk [vmem:[%s2183 + $0x109] sm:$0xff] %vm784, %v2118
        %2207 = vst.msk [vmem:[%s2183 + $0x111] sm:$0xff] %vm784, %v2119
        %2208 = vst.msk [vmem:[%s2183 + $0x121] sm:$0xff] %vm784, %v2120
        %2209 = vst.msk [vmem:[%s2183 + $0x129] sm:$0xff] %vm784, %v2121
        %2210 = vst.msk [vmem:[%s2183 + $0x139] sm:$0xff] %vm784, %v2122
        %2211 = vst.msk [vmem:[%s2183 + $0x141] sm:$0xff] %vm784, %v2123
        %2212 = vst.msk [vmem:[%s2183 + $0x151] sm:$0xff] %vm784, %v2124
        %2213 = vst.msk [vmem:[%s2183 + $0x159] sm:$0xff] %vm784, %v2125
        %2214 = vst.msk [vmem:[%s2183 + $0x169] sm:$0xff] %vm784, %v2126
        %2215 = vst.msk [vmem:[%s2183 + $0x171] sm:$0xff] %vm784, %v2127
        %v2216 = vld [vmem:[%s276 + $0xc] sm:$0xf]
        %v2217 = vld [vmem:[%s276 + $0x10] sm:$0xf]
        %v2218 = vld [vmem:[%s276 + $0x14] sm:$0x1]
        %v2219 = vld [vmem:[%s276 + $0x18] sm:$0xf]
        %v2220 = vld [vmem:[%s276 + $0x1c] sm:$0xf]
        %v2221 = vld [vmem:[%s276 + $0x20] sm:$0x1]
        %v2222 = vld [vmem:[%s276 + $0x24] sm:$0xf]
        %v2223 = vld [vmem:[%s276 + $0x28] sm:$0xf]
        %v2224 = vld [vmem:[%s276 + $0x2c] sm:$0x1]
        %v2225 = vld [vmem:[%s276 + $0x30] sm:$0xf]
        %v2226 = vld [vmem:[%s276 + $0x34] sm:$0xf]
        %v2227 = vld [vmem:[%s276 + $0x38] sm:$0x1]
        %v2228 = vld [vmem:[%s276 + $0x3c] sm:$0xf]
        %v2229 = vld [vmem:[%s276 + $0x40] sm:$0xf]
        %v2230 = vld [vmem:[%s276 + $0x44] sm:$0x1]
        %v2231 = vld [vmem:[%s276 + $0x48] sm:$0xf]
        %v2232 = vld [vmem:[%s276 + $0x4c] sm:$0xf]
        %v2233 = vld [vmem:[%s276 + $0x50] sm:$0x1]
        %v2234 = vld [vmem:[%s276 + $0x54] sm:$0xf]
        %v2235 = vld [vmem:[%s276 + $0x58] sm:$0xf]
        %v2236 = vld [vmem:[%s276 + $0x5c] sm:$0x1]
        %v2237 = vld [vmem:[%s276 + $0x60] sm:$0xf]
        %v2238 = vld [vmem:[%s276 + $0x64] sm:$0xf]
        %v2239 = vld [vmem:[%s276 + $0x68] sm:$0x1]
        %v2240 = vld [vmem:[%s276 + $0x6c] sm:$0xf]
        %v2241 = vld [vmem:[%s276 + $0x70] sm:$0xf]
        %v2242 = vld [vmem:[%s276 + $0x74] sm:$0x1]
        %v2243 = vld [vmem:[%s276 + $0x78] sm:$0xf]
        %v2244 = vld [vmem:[%s276 + $0x7c] sm:$0xf]
        %v2245 = vld [vmem:[%s276 + $0x80] sm:$0x1]
        %v2246 = vld [vmem:[%s276 + $0x84] sm:$0xf]
        %v2247 = vld [vmem:[%s276 + $0x88] sm:$0xf]
        %v2248 = vld [vmem:[%s276 + $0x8c] sm:$0x1]
        %v2249 = vld [vmem:[%s276 + $0x90] sm:$0xf]
        %v2250 = vld [vmem:[%s276 + $0x94] sm:$0xf]
        %v2251 = vld [vmem:[%s276 + $0x98] sm:$0x1]
        %v2252 = vld [vmem:[%s276 + $0x9c] sm:$0xf]
        %v2253 = vld [vmem:[%s276 + $0xa0] sm:$0xf]
        %v2254 = vld [vmem:[%s276 + $0xa4] sm:$0x1]
        %v2255 = vld [vmem:[%s276 + $0xa8] sm:$0xf]
        %v2256 = vld [vmem:[%s276 + $0xac] sm:$0xf]
        %v2257 = vld [vmem:[%s276 + $0xb0] sm:$0x1]
        %v2258 = vld [vmem:[%s276 + $0xb4] sm:$0xf]
        %v2259 = vld [vmem:[%s276 + $0xb8] sm:$0xf]
        %v2260 = vld [vmem:[%s276 + $0xbc] sm:$0x1]
        %v2261 = vld [vmem:[%s276 + $0xc0] sm:$0xf]
        %v2262 = vld [vmem:[%s276 + $0xc4] sm:$0xf]
        %v2263 = vld [vmem:[%s276 + $0xc8] sm:$0x1]
        %vm2264 = vsmask.f32 3328
        %vm2265 = vsmask.f32 7440
        %vm2266 = vmor %vm2264, %vm2265
        %v2268 = vshrl.u32 %v2216, 16
        %v2270 = vrot.slane %v2268, 4
        %v2271 = vshll.u32 %v2216, 16
        %v2273 = vrot.slane %v2271, 5
        %v2274 = vor.u32 %v2270, %v2273
        %v2275 = vrot.slane %v2274, 4
        %v2277 = vshll.u32 %v2217, 16
        %v2279 = vrot.slane %v2277, 5
        %v2280 = vsel %vm2266, %v2275, %v2279
        %v2281 = vshrl.u32 %v2217, 16
        %v2283 = vrot.slane %v2281, 4
        %v2284 = vor.u32 %v2283, %v2279
        %v2285 = vrot.slane %v2284, 4
        %v2287 = vshll.u32 %v2218, 16
        %v2289 = vrot.slane %v2287, 5
        %v2290 = vsel %vm2266, %v2285, %v2289
        %v2292 = vshrl.u32 %v2219, 16
        %v2294 = vrot.slane %v2292, 4
        %v2295 = vshll.u32 %v2219, 16
        %v2297 = vrot.slane %v2295, 5
        %v2298 = vor.u32 %v2294, %v2297
        %v2299 = vrot.slane %v2298, 4
        %v2301 = vshll.u32 %v2220, 16
        %v2303 = vrot.slane %v2301, 5
        %v2304 = vsel %vm2266, %v2299, %v2303
        %v2305 = vshrl.u32 %v2220, 16
        %v2307 = vrot.slane %v2305, 4
        %v2308 = vor.u32 %v2307, %v2303
        %v2309 = vrot.slane %v2308, 4
        %v2311 = vshll.u32 %v2221, 16
        %v2313 = vrot.slane %v2311, 5
        %v2314 = vsel %vm2266, %v2309, %v2313
        %v2316 = vshrl.u32 %v2222, 16
        %v2318 = vrot.slane %v2316, 4
        %v2319 = vshll.u32 %v2222, 16
        %v2321 = vrot.slane %v2319, 5
        %v2322 = vor.u32 %v2318, %v2321
        %v2323 = vrot.slane %v2322, 4
        %v2325 = vshll.u32 %v2223, 16
        %v2327 = vrot.slane %v2325, 5
        %v2328 = vsel %vm2266, %v2323, %v2327
        %v2329 = vshrl.u32 %v2223, 16
        %v2331 = vrot.slane %v2329, 4
        %v2332 = vor.u32 %v2331, %v2327
        %v2333 = vrot.slane %v2332, 4
        %v2335 = vshll.u32 %v2224, 16
        %v2337 = vrot.slane %v2335, 5
        %v2338 = vsel %vm2266, %v2333, %v2337
        %v2340 = vshrl.u32 %v2225, 16
        %v2342 = vrot.slane %v2340, 4
        %v2343 = vshll.u32 %v2225, 16
        %v2345 = vrot.slane %v2343, 5
        %v2346 = vor.u32 %v2342, %v2345
        %v2347 = vrot.slane %v2346, 4
        %v2349 = vshll.u32 %v2226, 16
        %v2351 = vrot.slane %v2349, 5
        %v2352 = vsel %vm2266, %v2347, %v2351
        %v2353 = vshrl.u32 %v2226, 16
        %v2355 = vrot.slane %v2353, 4
        %v2356 = vor.u32 %v2355, %v2351
        %v2357 = vrot.slane %v2356, 4
        %v2359 = vshll.u32 %v2227, 16
        %v2361 = vrot.slane %v2359, 5
        %v2362 = vsel %vm2266, %v2357, %v2361
        %v2364 = vshrl.u32 %v2228, 16
        %v2366 = vrot.slane %v2364, 4
        %v2367 = vshll.u32 %v2228, 16
        %v2369 = vrot.slane %v2367, 5
        %v2370 = vor.u32 %v2366, %v2369
        %v2371 = vrot.slane %v2370, 4
        %v2373 = vshll.u32 %v2229, 16
        %v2375 = vrot.slane %v2373, 5
        %v2376 = vsel %vm2266, %v2371, %v2375
        %v2377 = vshrl.u32 %v2229, 16
        %v2379 = vrot.slane %v2377, 4
        %v2380 = vor.u32 %v2379, %v2375
        %v2381 = vrot.slane %v2380, 4
        %v2383 = vshll.u32 %v2230, 16
        %v2385 = vrot.slane %v2383, 5
        %v2386 = vsel %vm2266, %v2381, %v2385
        %v2388 = vshrl.u32 %v2231, 16
        %v2390 = vrot.slane %v2388, 4
        %v2391 = vshll.u32 %v2231, 16
        %v2393 = vrot.slane %v2391, 5
        %v2394 = vor.u32 %v2390, %v2393
        %v2395 = vrot.slane %v2394, 4
        %v2397 = vshll.u32 %v2232, 16
        %v2399 = vrot.slane %v2397, 5
        %v2400 = vsel %vm2266, %v2395, %v2399
        %v2401 = vshrl.u32 %v2232, 16
        %v2403 = vrot.slane %v2401, 4
        %v2404 = vor.u32 %v2403, %v2399
        %v2405 = vrot.slane %v2404, 4
        %v2407 = vshll.u32 %v2233, 16
        %v2409 = vrot.slane %v2407, 5
        %v2410 = vsel %vm2266, %v2405, %v2409
        %v2412 = vshrl.u32 %v2234, 16
        %v2414 = vrot.slane %v2412, 4
        %v2415 = vshll.u32 %v2234, 16
        %v2417 = vrot.slane %v2415, 5
        %v2418 = vor.u32 %v2414, %v2417
        %v2419 = vrot.slane %v2418, 4
        %v2421 = vshll.u32 %v2235, 16
        %v2423 = vrot.slane %v2421, 5
        %v2424 = vsel %vm2266, %v2419, %v2423
        %v2425 = vshrl.u32 %v2235, 16
        %v2427 = vrot.slane %v2425, 4
        %v2428 = vor.u32 %v2427, %v2423
        %v2429 = vrot.slane %v2428, 4
        %v2431 = vshll.u32 %v2236, 16
        %v2433 = vrot.slane %v2431, 5
        %v2434 = vsel %vm2266, %v2429, %v2433
        %v2436 = vshrl.u32 %v2237, 16
        %v2438 = vrot.slane %v2436, 4
        %v2439 = vshll.u32 %v2237, 16
        %v2441 = vrot.slane %v2439, 5
        %v2442 = vor.u32 %v2438, %v2441
        %v2443 = vrot.slane %v2442, 4
        %v2445 = vshll.u32 %v2238, 16
        %v2447 = vrot.slane %v2445, 5
        %v2448 = vsel %vm2266, %v2443, %v2447
        %v2449 = vshrl.u32 %v2238, 16
        %v2451 = vrot.slane %v2449, 4
        %v2452 = vor.u32 %v2451, %v2447
        %v2453 = vrot.slane %v2452, 4
        %v2455 = vshll.u32 %v2239, 16
        %v2457 = vrot.slane %v2455, 5
        %v2458 = vsel %vm2266, %v2453, %v2457
        %v2460 = vshrl.u32 %v2240, 16
        %v2462 = vrot.slane %v2460, 4
        %v2463 = vshll.u32 %v2240, 16
        %v2465 = vrot.slane %v2463, 5
        %v2466 = vor.u32 %v2462, %v2465
        %v2467 = vrot.slane %v2466, 4
        %v2469 = vshll.u32 %v2241, 16
        %v2471 = vrot.slane %v2469, 5
        %v2472 = vsel %vm2266, %v2467, %v2471
        %v2473 = vshrl.u32 %v2241, 16
        %v2475 = vrot.slane %v2473, 4
        %v2476 = vor.u32 %v2475, %v2471
        %v2477 = vrot.slane %v2476, 4
        %v2479 = vshll.u32 %v2242, 16
        %v2481 = vrot.slane %v2479, 5
        %v2482 = vsel %vm2266, %v2477, %v2481
        %v2484 = vshrl.u32 %v2243, 16
        %v2486 = vrot.slane %v2484, 4
        %v2487 = vshll.u32 %v2243, 16
        %v2489 = vrot.slane %v2487, 5
        %v2490 = vor.u32 %v2486, %v2489
        %v2491 = vrot.slane %v2490, 4
        %v2493 = vshll.u32 %v2244, 16
        %v2495 = vrot.slane %v2493, 5
        %v2496 = vsel %vm2266, %v2491, %v2495
        %v2497 = vshrl.u32 %v2244, 16
        %v2499 = vrot.slane %v2497, 4
        %v2500 = vor.u32 %v2499, %v2495
        %v2501 = vrot.slane %v2500, 4
        %v2503 = vshll.u32 %v2245, 16
        %v2505 = vrot.slane %v2503, 5
        %v2506 = vsel %vm2266, %v2501, %v2505
        %v2508 = vshrl.u32 %v2246, 16
        %v2510 = vrot.slane %v2508, 4
        %v2511 = vshll.u32 %v2246, 16
        %v2513 = vrot.slane %v2511, 5
        %v2514 = vor.u32 %v2510, %v2513
        %v2515 = vrot.slane %v2514, 4
        %v2517 = vshll.u32 %v2247, 16
        %v2519 = vrot.slane %v2517, 5
        %v2520 = vsel %vm2266, %v2515, %v2519
        %v2521 = vshrl.u32 %v2247, 16
        %v2523 = vrot.slane %v2521, 4
        %v2524 = vor.u32 %v2523, %v2519
        %v2525 = vrot.slane %v2524, 4
        %v2527 = vshll.u32 %v2248, 16
        %v2529 = vrot.slane %v2527, 5
        %v2530 = vsel %vm2266, %v2525, %v2529
        %v2532 = vshrl.u32 %v2249, 16
        %v2534 = vrot.slane %v2532, 4
        %v2535 = vshll.u32 %v2249, 16
        %v2537 = vrot.slane %v2535, 5
        %v2538 = vor.u32 %v2534, %v2537
        %v2539 = vrot.slane %v2538, 4
        %v2541 = vshll.u32 %v2250, 16
        %v2543 = vrot.slane %v2541, 5
        %v2544 = vsel %vm2266, %v2539, %v2543
        %v2545 = vshrl.u32 %v2250, 16
        %v2547 = vrot.slane %v2545, 4
        %v2548 = vor.u32 %v2547, %v2543
        %v2549 = vrot.slane %v2548, 4
        %v2551 = vshll.u32 %v2251, 16
        %v2553 = vrot.slane %v2551, 5
        %v2554 = vsel %vm2266, %v2549, %v2553
        %v2556 = vshrl.u32 %v2252, 16
        %v2558 = vrot.slane %v2556, 4
        %v2559 = vshll.u32 %v2252, 16
        %v2561 = vrot.slane %v2559, 5
        %v2562 = vor.u32 %v2558, %v2561
        %v2563 = vrot.slane %v2562, 4
        %v2565 = vshll.u32 %v2253, 16
        %v2567 = vrot.slane %v2565, 5
        %v2568 = vsel %vm2266, %v2563, %v2567
        %v2569 = vshrl.u32 %v2253, 16
        %v2571 = vrot.slane %v2569, 4
        %v2572 = vor.u32 %v2571, %v2567
        %v2573 = vrot.slane %v2572, 4
        %v2575 = vshll.u32 %v2254, 16
        %v2577 = vrot.slane %v2575, 5
        %v2578 = vsel %vm2266, %v2573, %v2577
        %v2580 = vshrl.u32 %v2255, 16
        %v2582 = vrot.slane %v2580, 4
        %v2583 = vshll.u32 %v2255, 16
        %v2585 = vrot.slane %v2583, 5
        %v2586 = vor.u32 %v2582, %v2585
        %v2587 = vrot.slane %v2586, 4
        %v2589 = vshll.u32 %v2256, 16
        %v2591 = vrot.slane %v2589, 5
        %v2592 = vsel %vm2266, %v2587, %v2591
        %v2593 = vshrl.u32 %v2256, 16
        %v2595 = vrot.slane %v2593, 4
        %v2596 = vor.u32 %v2595, %v2591
        %v2597 = vrot.slane %v2596, 4
        %v2599 = vshll.u32 %v2257, 16
        %v2601 = vrot.slane %v2599, 5
        %v2602 = vsel %vm2266, %v2597, %v2601
        %v2604 = vshrl.u32 %v2258, 16
        %v2606 = vrot.slane %v2604, 4
        %v2607 = vshll.u32 %v2258, 16
        %v2609 = vrot.slane %v2607, 5
        %v2610 = vor.u32 %v2606, %v2609
        %v2611 = vrot.slane %v2610, 4
        %v2613 = vshll.u32 %v2259, 16
        %v2615 = vrot.slane %v2613, 5
        %v2616 = vsel %vm2266, %v2611, %v2615
        %v2617 = vshrl.u32 %v2259, 16
        %v2619 = vrot.slane %v2617, 4
        %v2620 = vor.u32 %v2619, %v2615
        %v2621 = vrot.slane %v2620, 4
        %v2623 = vshll.u32 %v2260, 16
        %v2625 = vrot.slane %v2623, 5
        %v2626 = vsel %vm2266, %v2621, %v2625
        %v2628 = vshrl.u32 %v2261, 16
        %v2630 = vrot.slane %v2628, 4
        %v2631 = vshll.u32 %v2261, 16
        %v2633 = vrot.slane %v2631, 5
        %v2634 = vor.u32 %v2630, %v2633
        %v2635 = vrot.slane %v2634, 4
        %v2637 = vshll.u32 %v2262, 16
        %v2639 = vrot.slane %v2637, 5
        %v2640 = vsel %vm2266, %v2635, %v2639
        %v2641 = vshrl.u32 %v2262, 16
        %v2643 = vrot.slane %v2641, 4
        %v2644 = vor.u32 %v2643, %v2639
        %v2645 = vrot.slane %v2644, 4
        %v2647 = vshll.u32 %v2263, 16
        %v2649 = vrot.slane %v2647, 5
        %v2650 = vsel %vm2266, %v2645, %v2649
        %v2683 = vunpack.c.l.bf16 %v2280
        %v2684 = vunpack.c.l.bf16 %v2290
        %v2685 = vunpack.c.l.bf16 %v2304
        %v2686 = vunpack.c.l.bf16 %v2314
        %v2687 = vunpack.c.l.bf16 %v2328
        %v2688 = vunpack.c.l.bf16 %v2338
        %v2689 = vunpack.c.l.bf16 %v2352
        %v2690 = vunpack.c.l.bf16 %v2362
        %v2691 = vunpack.c.l.bf16 %v2376
        %v2692 = vunpack.c.l.bf16 %v2386
        %v2693 = vunpack.c.l.bf16 %v2400
        %v2694 = vunpack.c.l.bf16 %v2410
        %v2695 = vunpack.c.l.bf16 %v2424
        %v2696 = vunpack.c.l.bf16 %v2434
        %v2697 = vunpack.c.l.bf16 %v2448
        %v2698 = vunpack.c.l.bf16 %v2458
        %v2699 = vunpack.c.l.bf16 %v2472
        %v2700 = vunpack.c.l.bf16 %v2482
        %v2701 = vunpack.c.l.bf16 %v2496
        %v2702 = vunpack.c.l.bf16 %v2506
        %v2703 = vunpack.c.l.bf16 %v2520
        %v2704 = vunpack.c.l.bf16 %v2530
        %v2705 = vunpack.c.l.bf16 %v2544
        %v2706 = vunpack.c.l.bf16 %v2554
        %v2707 = vunpack.c.l.bf16 %v2568
        %v2708 = vunpack.c.l.bf16 %v2578
        %v2709 = vunpack.c.l.bf16 %v2592
        %v2710 = vunpack.c.l.bf16 %v2602
        %v2711 = vunpack.c.l.bf16 %v2616
        %v2712 = vunpack.c.l.bf16 %v2626
        %v2713 = vunpack.c.l.bf16 %v2640
        %v2714 = vunpack.c.l.bf16 %v2650
        %v2715 = vld [vmem:[#allocation3] sm:$0xff]
        %v2716 = vld [vmem:[#allocation3 + $0x8] sm:$0xff]
        %v2717 = vld [vmem:[#allocation3 + $0x10] sm:$0x3]
        %v2718 = vld [vmem:[#allocation3 + $0x18] sm:$0xff]
        %v2719 = vld [vmem:[#allocation3 + $0x20] sm:$0xff]
        %v2720 = vld [vmem:[#allocation3 + $0x28] sm:$0x3]
        %v2721 = vld [vmem:[#allocation3 + $0x30] sm:$0xff]
        %v2722 = vld [vmem:[#allocation3 + $0x38] sm:$0xff]
        %v2723 = vld [vmem:[#allocation3 + $0x40] sm:$0x3]
        %v2724 = vld [vmem:[#allocation3 + $0x48] sm:$0xff]
        %v2725 = vld [vmem:[#allocation3 + $0x50] sm:$0xff]
        %v2726 = vld [vmem:[#allocation3 + $0x58] sm:$0x3]
        %v2727 = vld [vmem:[#allocation3 + $0x60] sm:$0xff]
        %v2728 = vld [vmem:[#allocation3 + $0x68] sm:$0xff]
        %v2729 = vld [vmem:[#allocation3 + $0x70] sm:$0x3]
        %v2730 = vld [vmem:[#allocation3 + $0x78] sm:$0xff]
        %v2731 = vld [vmem:[#allocation3 + $0x80] sm:$0xff]
        %v2732 = vld [vmem:[#allocation3 + $0x88] sm:$0x3]
        %v2733 = vld [vmem:[#allocation3 + $0x90] sm:$0xff]
        %v2734 = vld [vmem:[#allocation3 + $0x98] sm:$0xff]
        %v2735 = vld [vmem:[#allocation3 + $0xa0] sm:$0x3]
        %v2736 = vld [vmem:[#allocation3 + $0xa8] sm:$0xff]
        %v2737 = vld [vmem:[#allocation3 + $0xb0] sm:$0xff]
        %v2738 = vld [vmem:[#allocation3 + $0xb8] sm:$0x3]
        %v2739 = vld [vmem:[#allocation3 + $0xc0] sm:$0xff]
        %v2740 = vld [vmem:[#allocation3 + $0xc8] sm:$0xff]
        %v2741 = vld [vmem:[#allocation3 + $0xd0] sm:$0x3]
        %v2742 = vld [vmem:[#allocation3 + $0xd8] sm:$0xff]
        %v2743 = vld [vmem:[#allocation3 + $0xe0] sm:$0xff]
        %v2744 = vld [vmem:[#allocation3 + $0xe8] sm:$0x3]
        %v2745 = vld [vmem:[#allocation3 + $0xf0] sm:$0xff]
        %v2746 = vld [vmem:[#allocation3 + $0xf8] sm:$0xff]
        %v2747 = vld [vmem:[#allocation3 + $0x100] sm:$0x3]
        %v2748 = vld [vmem:[#allocation3 + $0x108] sm:$0xff]
        %v2749 = vld [vmem:[#allocation3 + $0x110] sm:$0xff]
        %v2750 = vld [vmem:[#allocation3 + $0x118] sm:$0x3]
        %v2751 = vld [vmem:[#allocation3 + $0x120] sm:$0xff]
        %v2752 = vld [vmem:[#allocation3 + $0x128] sm:$0xff]
        %v2753 = vld [vmem:[#allocation3 + $0x130] sm:$0x3]
        %v2754 = vld [vmem:[#allocation3 + $0x138] sm:$0xff]
        %v2755 = vld [vmem:[#allocation3 + $0x140] sm:$0xff]
        %v2756 = vld [vmem:[#allocation3 + $0x148] sm:$0x3]
        %v2757 = vld [vmem:[#allocation3 + $0x150] sm:$0xff]
        %v2758 = vld [vmem:[#allocation3 + $0x158] sm:$0xff]
        %v2759 = vld [vmem:[#allocation3 + $0x160] sm:$0x3]
        %v2760 = vld [vmem:[#allocation3 + $0x168] sm:$0xff]
        %v2761 = vld [vmem:[#allocation3 + $0x170] sm:$0xff]
        %v2762 = vld [vmem:[#allocation3 + $0x178] sm:$0x3]
        %v2763 = vld [vmem:[#allocation3 + $0x180] sm:$0xff]
        %v2764 = vld [vmem:[#allocation3 + $0x188] sm:$0xff]
        %v2765 = vld [vmem:[#allocation3 + $0x190] sm:$0x3]
        %v2766 = vld [vmem:[#allocation3 + $0x198] sm:$0xff]
        %v2767 = vld [vmem:[#allocation3 + $0x1a0] sm:$0xff]
        %v2768 = vld [vmem:[#allocation3 + $0x1a8] sm:$0x3]
        %vm2823 = vcmask 1046528
        %v2824 = vrot.slane %v2715, 1
        %v2825 = vrot.slane %v2716, 1
        %v2826 = vsel %vm2823, %v2824, %v2825
        %v2827 = vrot.slane %v2717, 1
        %v2828 = vsel %vm2823, %v2825, %v2827
        %v2829 = vrot.slane %v2718, 1
        %v2830 = vrot.slane %v2719, 1
        %v2831 = vsel %vm2823, %v2829, %v2830
        %v2832 = vrot.slane %v2720, 1
        %v2833 = vsel %vm2823, %v2830, %v2832
        %v2834 = vrot.slane %v2721, 1
        %v2835 = vrot.slane %v2722, 1
        %v2836 = vsel %vm2823, %v2834, %v2835
        %v2837 = vrot.slane %v2723, 1
        %v2838 = vsel %vm2823, %v2835, %v2837
        %v2839 = vrot.slane %v2724, 1
        %v2840 = vrot.slane %v2725, 1
        %v2841 = vsel %vm2823, %v2839, %v2840
        %v2842 = vrot.slane %v2726, 1
        %v2843 = vsel %vm2823, %v2840, %v2842
        %v2844 = vrot.slane %v2727, 1
        %v2845 = vrot.slane %v2728, 1
        %v2846 = vsel %vm2823, %v2844, %v2845
        %v2847 = vrot.slane %v2729, 1
        %v2848 = vsel %vm2823, %v2845, %v2847
        %v2849 = vrot.slane %v2730, 1
        %v2850 = vrot.slane %v2731, 1
        %v2851 = vsel %vm2823, %v2849, %v2850
        %v2852 = vrot.slane %v2732, 1
        %v2853 = vsel %vm2823, %v2850, %v2852
        %v2854 = vrot.slane %v2733, 1
        %v2855 = vrot.slane %v2734, 1
        %v2856 = vsel %vm2823, %v2854, %v2855
        %v2857 = vrot.slane %v2735, 1
        %v2858 = vsel %vm2823, %v2855, %v2857
        %v2859 = vrot.slane %v2736, 1
        %v2860 = vrot.slane %v2737, 1
        %v2861 = vsel %vm2823, %v2859, %v2860
        %v2862 = vrot.slane %v2738, 1
        %v2863 = vsel %vm2823, %v2860, %v2862
        %v2864 = vrot.slane %v2739, 1
        %v2865 = vrot.slane %v2740, 1
        %v2866 = vsel %vm2823, %v2864, %v2865
        %v2867 = vrot.slane %v2741, 1
        %v2868 = vsel %vm2823, %v2865, %v2867
        %v2869 = vrot.slane %v2742, 1
        %v2870 = vrot.slane %v2743, 1
        %v2871 = vsel %vm2823, %v2869, %v2870
        %v2872 = vrot.slane %v2744, 1
        %v2873 = vsel %vm2823, %v2870, %v2872
        %v2874 = vrot.slane %v2745, 1
        %v2875 = vrot.slane %v2746, 1
        %v2876 = vsel %vm2823, %v2874, %v2875
        %v2877 = vrot.slane %v2747, 1
        %v2878 = vsel %vm2823, %v2875, %v2877
        %v2879 = vrot.slane %v2748, 1
        %v2880 = vrot.slane %v2749, 1
        %v2881 = vsel %vm2823, %v2879, %v2880
        %v2882 = vrot.slane %v2750, 1
        %v2883 = vsel %vm2823, %v2880, %v2882
        %v2884 = vrot.slane %v2751, 1
        %v2885 = vrot.slane %v2752, 1
        %v2886 = vsel %vm2823, %v2884, %v2885
        %v2887 = vrot.slane %v2753, 1
        %v2888 = vsel %vm2823, %v2885, %v2887
        %v2889 = vrot.slane %v2754, 1
        %v2890 = vrot.slane %v2755, 1
        %v2891 = vsel %vm2823, %v2889, %v2890
        %v2892 = vrot.slane %v2756, 1
        %v2893 = vsel %vm2823, %v2890, %v2892
        %v2894 = vrot.slane %v2757, 1
        %v2895 = vrot.slane %v2758, 1
        %v2896 = vsel %vm2823, %v2894, %v2895
        %v2897 = vrot.slane %v2759, 1
        %v2898 = vsel %vm2823, %v2895, %v2897
        %v2899 = vrot.slane %v2760, 1
        %v2900 = vrot.slane %v2761, 1
        %v2901 = vsel %vm2823, %v2899, %v2900
        %v2902 = vrot.slane %v2762, 1
        %v2903 = vsel %vm2823, %v2900, %v2902
        %v2904 = vrot.slane %v2763, 1
        %v2905 = vrot.slane %v2764, 1
        %v2906 = vsel %vm2823, %v2904, %v2905
        %v2907 = vrot.slane %v2765, 1
        %v2908 = vsel %vm2823, %v2905, %v2907
        %v2909 = vrot.slane %v2766, 1
        %v2910 = vrot.slane %v2767, 1
        %v2911 = vsel %vm2823, %v2909, %v2910
        %v2912 = vrot.slane %v2768, 1
        %v2913 = vsel %vm2823, %v2910, %v2912
        %2914 = vrot.lane.b32.xlu0 %v2826, 64
        %v2915 = vpop.permute.xlu0 %2914
        %2916 = vrot.lane.b32.xlu0 %v2828, 64
        %v2917 = vpop.permute.xlu0 %2916
        %2918 = vrot.lane.b32.xlu0 %v2831, 64
        %v2919 = vpop.permute.xlu0 %2918
        %2920 = vrot.lane.b32.xlu0 %v2833, 64
        %v2921 = vpop.permute.xlu0 %2920
        %2922 = vrot.lane.b32.xlu0 %v2836, 64
        %v2923 = vpop.permute.xlu0 %2922
        %2924 = vrot.lane.b32.xlu0 %v2838, 64
        %v2925 = vpop.permute.xlu0 %2924
        %2926 = vrot.lane.b32.xlu0 %v2841, 64
        %v2927 = vpop.permute.xlu0 %2926
        %2928 = vrot.lane.b32.xlu0 %v2843, 64
        %v2929 = vpop.permute.xlu0 %2928
        %2930 = vrot.lane.b32.xlu0 %v2846, 64
        %v2931 = vpop.permute.xlu0 %2930
        %2932 = vrot.lane.b32.xlu0 %v2848, 64
        %v2933 = vpop.permute.xlu0 %2932
        %2934 = vrot.lane.b32.xlu0 %v2851, 64
        %v2935 = vpop.permute.xlu0 %2934
        %2936 = vrot.lane.b32.xlu0 %v2853, 64
        %v2937 = vpop.permute.xlu0 %2936
        %2938 = vrot.lane.b32.xlu0 %v2856, 64
        %v2939 = vpop.permute.xlu0 %2938
        %2940 = vrot.lane.b32.xlu0 %v2858, 64
        %v2941 = vpop.permute.xlu0 %2940
        %2942 = vrot.lane.b32.xlu0 %v2861, 64
        %v2943 = vpop.permute.xlu0 %2942
        %2944 = vrot.lane.b32.xlu0 %v2863, 64
        %v2945 = vpop.permute.xlu0 %2944
        %2946 = vrot.lane.b32.xlu0 %v2866, 64
        %v2947 = vpop.permute.xlu0 %2946
        %2948 = vrot.lane.b32.xlu0 %v2868, 64
        %v2949 = vpop.permute.xlu0 %2948
        %2950 = vrot.lane.b32.xlu0 %v2871, 64
        %v2951 = vpop.permute.xlu0 %2950
        %2952 = vrot.lane.b32.xlu0 %v2873, 64
        %v2953 = vpop.permute.xlu0 %2952
        %2954 = vrot.lane.b32.xlu0 %v2876, 64
        %v2955 = vpop.permute.xlu0 %2954
        %2956 = vrot.lane.b32.xlu0 %v2878, 64
        %v2957 = vpop.permute.xlu0 %2956
        %2958 = vrot.lane.b32.xlu0 %v2881, 64
        %v2959 = vpop.permute.xlu0 %2958
        %2960 = vrot.lane.b32.xlu0 %v2883, 64
        %v2961 = vpop.permute.xlu0 %2960
        %2962 = vrot.lane.b32.xlu0 %v2886, 64
        %v2963 = vpop.permute.xlu0 %2962
        %2964 = vrot.lane.b32.xlu0 %v2888, 64
        %v2965 = vpop.permute.xlu0 %2964
        %2966 = vrot.lane.b32.xlu0 %v2891, 64
        %v2967 = vpop.permute.xlu0 %2966
        %2968 = vrot.lane.b32.xlu0 %v2893, 64
        %v2969 = vpop.permute.xlu0 %2968
        %2970 = vrot.lane.b32.xlu0 %v2896, 64
        %v2971 = vpop.permute.xlu0 %2970
        %2972 = vrot.lane.b32.xlu0 %v2898, 64
        %v2973 = vpop.permute.xlu0 %2972
        %2974 = vrot.lane.b32.xlu0 %v2901, 64
        %v2975 = vpop.permute.xlu0 %2974
        %2976 = vrot.lane.b32.xlu0 %v2903, 64
        %v2977 = vpop.permute.xlu0 %2976
        %2978 = vrot.lane.b32.xlu0 %v2906, 64
        %v2979 = vpop.permute.xlu0 %2978
        %2980 = vrot.lane.b32.xlu0 %v2908, 64
        %v2981 = vpop.permute.xlu0 %2980
        %2982 = vrot.lane.b32.xlu0 %v2911, 64
        %v2983 = vpop.permute.xlu0 %2982
        %2984 = vrot.lane.b32.xlu0 %v2913, 64
        %v2985 = vpop.permute.xlu0 %2984
        %vm3022 = vcmask 1045504
        %v3023 = vrot.slane %v2715, 2
        %v3024 = vrot.slane %v2716, 2
        %v3025 = vsel %vm3022, %v3023, %v3024
        %v3026 = vrot.slane %v2717, 2
        %v3027 = vsel %vm3022, %v3024, %v3026
        %v3028 = vrot.slane %v2718, 2
        %v3029 = vrot.slane %v2719, 2
        %v3030 = vsel %vm3022, %v3028, %v3029
        %v3031 = vrot.slane %v2720, 2
        %v3032 = vsel %vm3022, %v3029, %v3031
        %v3033 = vrot.slane %v2721, 2
        %v3034 = vrot.slane %v2722, 2
        %v3035 = vsel %vm3022, %v3033, %v3034
        %v3036 = vrot.slane %v2723, 2
        %v3037 = vsel %vm3022, %v3034, %v3036
        %v3038 = vrot.slane %v2724, 2
        %v3039 = vrot.slane %v2725, 2
        %v3040 = vsel %vm3022, %v3038, %v3039
        %v3041 = vrot.slane %v2726, 2
        %v3042 = vsel %vm3022, %v3039, %v3041
        %v3043 = vrot.slane %v2727, 2
        %v3044 = vrot.slane %v2728, 2
        %v3045 = vsel %vm3022, %v3043, %v3044
        %v3046 = vrot.slane %v2729, 2
        %v3047 = vsel %vm3022, %v3044, %v3046
        %v3048 = vrot.slane %v2730, 2
        %v3049 = vrot.slane %v2731, 2
        %v3050 = vsel %vm3022, %v3048, %v3049
        %v3051 = vrot.slane %v2732, 2
        %v3052 = vsel %vm3022, %v3049, %v3051
        %v3053 = vrot.slane %v2733, 2
        %v3054 = vrot.slane %v2734, 2
        %v3055 = vsel %vm3022, %v3053, %v3054
        %v3056 = vrot.slane %v2735, 2
        %v3057 = vsel %vm3022, %v3054, %v3056
        %v3058 = vrot.slane %v2736, 2
        %v3059 = vrot.slane %v2737, 2
        %v3060 = vsel %vm3022, %v3058, %v3059
        %v3061 = vrot.slane %v2738, 2
        %v3062 = vsel %vm3022, %v3059, %v3061
        %v3063 = vrot.slane %v2739, 2
        %v3064 = vrot.slane %v2740, 2
        %v3065 = vsel %vm3022, %v3063, %v3064
        %v3066 = vrot.slane %v2741, 2
        %v3067 = vsel %vm3022, %v3064, %v3066
        %v3068 = vrot.slane %v2742, 2
        %v3069 = vrot.slane %v2743, 2
        %v3070 = vsel %vm3022, %v3068, %v3069
        %v3071 = vrot.slane %v2744, 2
        %v3072 = vsel %vm3022, %v3069, %v3071
        %v3073 = vrot.slane %v2745, 2
        %v3074 = vrot.slane %v2746, 2
        %v3075 = vsel %vm3022, %v3073, %v3074
        %v3076 = vrot.slane %v2747, 2
        %v3077 = vsel %vm3022, %v3074, %v3076
        %v3078 = vrot.slane %v2748, 2
        %v3079 = vrot.slane %v2749, 2
        %v3080 = vsel %vm3022, %v3078, %v3079
        %v3081 = vrot.slane %v2750, 2
        %v3082 = vsel %vm3022, %v3079, %v3081
        %v3083 = vrot.slane %v2751, 2
        %v3084 = vrot.slane %v2752, 2
        %v3085 = vsel %vm3022, %v3083, %v3084
        %v3086 = vrot.slane %v2753, 2
        %v3087 = vsel %vm3022, %v3084, %v3086
        %v3088 = vrot.slane %v2754, 2
        %v3089 = vrot.slane %v2755, 2
        %v3090 = vsel %vm3022, %v3088, %v3089
        %v3091 = vrot.slane %v2756, 2
        %v3092 = vsel %vm3022, %v3089, %v3091
        %v3093 = vrot.slane %v2757, 2
        %v3094 = vrot.slane %v2758, 2
        %v3095 = vsel %vm3022, %v3093, %v3094
        %v3096 = vrot.slane %v2759, 2
        %v3097 = vsel %vm3022, %v3094, %v3096
        %v3098 = vrot.slane %v2760, 2
        %v3099 = vrot.slane %v2761, 2
        %v3100 = vsel %vm3022, %v3098, %v3099
        %v3101 = vrot.slane %v2762, 2
        %v3102 = vsel %vm3022, %v3099, %v3101
        %v3103 = vrot.slane %v2763, 2
        %v3104 = vrot.slane %v2764, 2
        %v3105 = vsel %vm3022, %v3103, %v3104
        %v3106 = vrot.slane %v2765, 2
        %v3107 = vsel %vm3022, %v3104, %v3106
        %v3108 = vrot.slane %v2766, 2
        %v3109 = vrot.slane %v2767, 2
        %v3110 = vsel %vm3022, %v3108, %v3109
        %v3111 = vrot.slane %v2768, 2
        %v3112 = vsel %vm3022, %v3109, %v3111
        %v3149 = vsel %vm784, %v2715, %v2915
        %v3150 = vsel %vm784, %v2716, %v2917
        %v3151 = vsel %vm784, %v2718, %v2919
        %v3152 = vsel %vm784, %v2719, %v2921
        %v3153 = vsel %vm784, %v2721, %v2923
        %v3154 = vsel %vm784, %v2722, %v2925
        %v3155 = vsel %vm784, %v2724, %v2927
        %v3156 = vsel %vm784, %v2725, %v2929
        %v3157 = vsel %vm784, %v2727, %v2931
        %v3158 = vsel %vm784, %v2728, %v2933
        %v3159 = vsel %vm784, %v2730, %v2935
        %v3160 = vsel %vm784, %v2731, %v2937
        %v3161 = vsel %vm784, %v2733, %v2939
        %v3162 = vsel %vm784, %v2734, %v2941
        %v3163 = vsel %vm784, %v2736, %v2943
        %v3164 = vsel %vm784, %v2737, %v2945
        %v3165 = vsel %vm784, %v2739, %v2947
        %v3166 = vsel %vm784, %v2740, %v2949
        %v3167 = vsel %vm784, %v2742, %v2951
        %v3168 = vsel %vm784, %v2743, %v2953
        %v3169 = vsel %vm784, %v2745, %v2955
        %v3170 = vsel %vm784, %v2746, %v2957
        %v3171 = vsel %vm784, %v2748, %v2959
        %v3172 = vsel %vm784, %v2749, %v2961
        %v3173 = vsel %vm784, %v2751, %v2963
        %v3174 = vsel %vm784, %v2752, %v2965
        %v3175 = vsel %vm784, %v2754, %v2967
        %v3176 = vsel %vm784, %v2755, %v2969
        %v3177 = vsel %vm784, %v2757, %v2971
        %v3178 = vsel %vm784, %v2758, %v2973
        %v3179 = vsel %vm784, %v2760, %v2975
        %v3180 = vsel %vm784, %v2761, %v2977
        %v3181 = vsel %vm784, %v2763, %v2979
        %v3182 = vsel %vm784, %v2764, %v2981
        %v3183 = vsel %vm784, %v2766, %v2983
        %v3184 = vsel %vm784, %v2767, %v2985
        %v3185 = vpack.c.bf16 %v3150, %v3149
        %v3186 = vpack.c.bf16 %v3027, %v3025
        %v3187 = vpack.c.bf16 %v3152, %v3151
        %v3188 = vpack.c.bf16 %v3032, %v3030
        %v3189 = vpack.c.bf16 %v3154, %v3153
        %v3190 = vpack.c.bf16 %v3037, %v3035
        %v3191 = vpack.c.bf16 %v3156, %v3155
        %v3192 = vpack.c.bf16 %v3042, %v3040
        %v3193 = vpack.c.bf16 %v3158, %v3157
        %v3194 = vpack.c.bf16 %v3047, %v3045
        %v3195 = vpack.c.bf16 %v3160, %v3159
        %v3196 = vpack.c.bf16 %v3052, %v3050
        %v3197 = vpack.c.bf16 %v3162, %v3161
        %v3198 = vpack.c.bf16 %v3057, %v3055
        %v3199 = vpack.c.bf16 %v3164, %v3163
        %v3200 = vpack.c.bf16 %v3062, %v3060
        %v3201 = vpack.c.bf16 %v3166, %v3165
        %v3202 = vpack.c.bf16 %v3067, %v3065
        %v3203 = vpack.c.bf16 %v3168, %v3167
        %v3204 = vpack.c.bf16 %v3072, %v3070
        %v3205 = vpack.c.bf16 %v3170, %v3169
        %v3206 = vpack.c.bf16 %v3077, %v3075
        %v3207 = vpack.c.bf16 %v3172, %v3171
        %v3208 = vpack.c.bf16 %v3082, %v3080
        %v3209 = vpack.c.bf16 %v3174, %v3173
        %v3210 = vpack.c.bf16 %v3087, %v3085
        %v3211 = vpack.c.bf16 %v3176, %v3175
        %v3212 = vpack.c.bf16 %v3092, %v3090
        %v3213 = vpack.c.bf16 %v3178, %v3177
        %v3214 = vpack.c.bf16 %v3097, %v3095
        %v3215 = vpack.c.bf16 %v3180, %v3179
        %v3216 = vpack.c.bf16 %v3102, %v3100
        %v3217 = vpack.c.bf16 %v3182, %v3181
        %v3218 = vpack.c.bf16 %v3107, %v3105
        %v3219 = vpack.c.bf16 %v3184, %v3183
        %v3220 = vpack.c.bf16 %v3112, %v3110
        %3221 = vst.msk [vmem:[#allocation4] sm:$0xff] %vm784, 0.0
        %3222 = vst.msk [vmem:[#allocation4 + $0x8] sm:$0xff] %vm784, 0.0
        %3223 = vst.msk [vmem:[#allocation4 + $0x10] sm:$0xff] %vm784, 0.0
        %3224 = vst.msk [vmem:[#allocation4 + $0x18] sm:$0xff] %vm784, 0.0
        %3225 = vst.msk [vmem:[#allocation4 + $0x20] sm:$0xff] %vm784, 0.0
        %3226 = vst.msk [vmem:[#allocation4 + $0x28] sm:$0xff] %vm784, 0.0
        %3227 = vst.msk [vmem:[#allocation4 + $0x30] sm:$0xff] %vm784, 0.0
        %3228 = vst.msk [vmem:[#allocation4 + $0x38] sm:$0xff] %vm784, 0.0
        %3229 = vst.msk [vmem:[#allocation4 + $0x40] sm:$0xff] %vm784, 0.0
        %3230 = vst.msk [vmem:[#allocation4 + $0x48] sm:$0xff] %vm784, 0.0
        %3231 = vst.msk [vmem:[#allocation4 + $0x50] sm:$0xff] %vm784, 0.0
        %3232 = vst.msk [vmem:[#allocation4 + $0x58] sm:$0xff] %vm784, 0.0
        %3233 = vst.msk [vmem:[#allocation4 + $0x60] sm:$0xff] %vm784, 0.0
        %3234 = vst.msk [vmem:[#allocation4 + $0x68] sm:$0xff] %vm784, 0.0
        %3235 = vst.msk [vmem:[#allocation4 + $0x70] sm:$0xff] %vm784, 0.0
        %3236 = vst.msk [vmem:[#allocation4 + $0x78] sm:$0xff] %vm784, 0.0
        %3237 = vst.msk [vmem:[#allocation4 + $0x80] sm:$0xff] %vm784, 0.0
        %3238 = vst.msk [vmem:[#allocation4 + $0x88] sm:$0xff] %vm784, 0.0
        %3239 = vst.msk [vmem:[#allocation4 + $0x90] sm:$0xff] %vm784, 0.0
        %3240 = vst.msk [vmem:[#allocation4 + $0x98] sm:$0xff] %vm784, 0.0
        %3241 = vst.msk [vmem:[#allocation4 + $0xa0] sm:$0xff] %vm784, 0.0
        %3242 = vst.msk [vmem:[#allocation4 + $0xa8] sm:$0xff] %vm784, 0.0
        %3243 = vst.msk [vmem:[#allocation4 + $0xb0] sm:$0xff] %vm784, 0.0
        %3244 = vst.msk [vmem:[#allocation4 + $0xb8] sm:$0xff] %vm784, 0.0
        %3245 = vst.msk [vmem:[#allocation4 + $0xc0] sm:$0xff] %vm784, 0.0
        %3246 = vst.msk [vmem:[#allocation4 + $0xc8] sm:$0xff] %vm784, 0.0
        %3247 = vst.msk [vmem:[#allocation4 + $0xd0] sm:$0xff] %vm784, 0.0
        %3248 = vst.msk [vmem:[#allocation4 + $0xd8] sm:$0xff] %vm784, 0.0
        %3249 = vst.msk [vmem:[#allocation4 + $0xe0] sm:$0xff] %vm784, 0.0
        %3250 = vst.msk [vmem:[#allocation4 + $0xe8] sm:$0xff] %vm784, 0.0
        %3251 = vst.msk [vmem:[#allocation4 + $0xf0] sm:$0xff] %vm784, 0.0
        %3252 = vst.msk [vmem:[#allocation4 + $0xf8] sm:$0xff] %vm784, 0.0
        %v3253 = vld [vmem:[#allocation4] sm:$0xff]
        %v3254 = vld [vmem:[#allocation4 + $0x8] sm:$0xff]
        %v3255 = vld [vmem:[#allocation4 + $0x10] sm:$0xff]
        %v3256 = vld [vmem:[#allocation4 + $0x18] sm:$0xff]
        %v3257 = vld [vmem:[#allocation4 + $0x20] sm:$0xff]
        %v3258 = vld [vmem:[#allocation4 + $0x28] sm:$0xff]
        %v3259 = vld [vmem:[#allocation4 + $0x30] sm:$0xff]
        %v3260 = vld [vmem:[#allocation4 + $0x38] sm:$0xff]
        %v3261 = vld [vmem:[#allocation4 + $0x40] sm:$0xff]
        %v3262 = vld [vmem:[#allocation4 + $0x48] sm:$0xff]
        %v3263 = vld [vmem:[#allocation4 + $0x50] sm:$0xff]
        %v3264 = vld [vmem:[#allocation4 + $0x58] sm:$0xff]
        %v3265 = vld [vmem:[#allocation4 + $0x60] sm:$0xff]
        %v3266 = vld [vmem:[#allocation4 + $0x68] sm:$0xff]
        %v3267 = vld [vmem:[#allocation4 + $0x70] sm:$0xff]
        %v3268 = vld [vmem:[#allocation4 + $0x78] sm:$0xff]
        %v3269 = vld [vmem:[#allocation4 + $0x80] sm:$0xff]
        %v3270 = vld [vmem:[#allocation4 + $0x88] sm:$0xff]
        %v3271 = vld [vmem:[#allocation4 + $0x90] sm:$0xff]
        %v3272 = vld [vmem:[#allocation4 + $0x98] sm:$0xff]
        %v3273 = vld [vmem:[#allocation4 + $0xa0] sm:$0xff]
        %v3274 = vld [vmem:[#allocation4 + $0xa8] sm:$0xff]
        %v3275 = vld [vmem:[#allocation4 + $0xb0] sm:$0xff]
        %v3276 = vld [vmem:[#allocation4 + $0xb8] sm:$0xff]
        %v3277 = vld [vmem:[#allocation4 + $0xc0] sm:$0xff]
        %v3278 = vld [vmem:[#allocation4 + $0xc8] sm:$0xff]
        %v3279 = vld [vmem:[#allocation4 + $0xd0] sm:$0xff]
        %v3280 = vld [vmem:[#allocation4 + $0xd8] sm:$0xff]
        %v3281 = vld [vmem:[#allocation4 + $0xe0] sm:$0xff]
        %v3282 = vld [vmem:[#allocation4 + $0xe8] sm:$0xff]
        %v3283 = vld [vmem:[#allocation4 + $0xf0] sm:$0xff]
        %v3284 = vld [vmem:[#allocation4 + $0xf8] sm:$0xff]
        %v3285 = vld [vmem:[%s4] sm:$0xf]
        %v3286 = vld [vmem:[%s4 + $0x4] sm:$0xf]
        %v3287 = vld [vmem:[%s4 + $0x8] sm:$0xf]
        %v3288 = vld [vmem:[%s4 + $0xc] sm:$0xf]
        %v3289 = vld [vmem:[%s4 + $0x10] sm:$0xf]
        %v3290 = vld [vmem:[%s4 + $0x14] sm:$0xf]
        %v3291 = vld [vmem:[%s4 + $0x18] sm:$0xf]
        %v3292 = vld [vmem:[%s4 + $0x1c] sm:$0xf]
        %v3293 = vld [vmem:[%s4 + $0x20] sm:$0xf]
        %v3294 = vld [vmem:[%s4 + $0x24] sm:$0xf]
        %v3295 = vld [vmem:[%s4 + $0x28] sm:$0xf]
        %v3296 = vld [vmem:[%s4 + $0x2c] sm:$0xf]
        %v3297 = vld [vmem:[%s4 + $0x30] sm:$0xf]
        %v3298 = vld [vmem:[%s4 + $0x34] sm:$0xf]
        %v3299 = vld [vmem:[%s4 + $0x38] sm:$0xf]
        %v3300 = vld [vmem:[%s4 + $0x3c] sm:$0xf]
        %v3301 = vld [vmem:[%s4 + $0x40] sm:$0xf]
        %v3302 = vld [vmem:[%s4 + $0x44] sm:$0xf]
        %v3303 = vld [vmem:[%s4 + $0x48] sm:$0xf]
        %v3304 = vld [vmem:[%s4 + $0x4c] sm:$0xf]
        %v3305 = vld [vmem:[%s4 + $0x50] sm:$0xf]
        %v3306 = vld [vmem:[%s4 + $0x54] sm:$0xf]
        %v3307 = vld [vmem:[%s4 + $0x58] sm:$0xf]
        %v3308 = vld [vmem:[%s4 + $0x5c] sm:$0xf]
        %v3333 = vunpack.c.l.b16 %v3285
        %v3334 = vunpack.c.l.b16 %v3286
        %v3335 = vunpack.c.l.b16 %v3287
        %v3336 = vunpack.c.l.b16 %v3288
        %v3337 = vunpack.c.l.b16 %v3289
        %v3338 = vunpack.c.l.b16 %v3290
        %v3339 = vunpack.c.l.b16 %v3291
        %v3340 = vunpack.c.l.b16 %v3292
        %v3341 = vunpack.c.l.b16 %v3293
        %v3342 = vunpack.c.l.b16 %v3294
        %v3343 = vunpack.c.l.b16 %v3295
        %v3344 = vunpack.c.l.b16 %v3296
        %v3345 = vunpack.c.l.b16 %v3297
        %v3346 = vunpack.c.l.b16 %v3298
        %v3347 = vunpack.c.l.b16 %v3299
        %v3348 = vunpack.c.l.b16 %v3300
        %v3349 = vunpack.c.l.b16 %v3301
        %v3350 = vunpack.c.l.b16 %v3302
        %v3351 = vunpack.c.l.b16 %v3303
        %v3352 = vunpack.c.l.b16 %v3304
        %v3353 = vunpack.c.l.b16 %v3305
        %v3354 = vunpack.c.l.b16 %v3306
        %v3355 = vunpack.c.l.b16 %v3307
        %v3356 = vunpack.c.l.b16 %v3308
        %v3357 = vpack.c.b16 %v3334, %v3333
        %v3358 = vpack.c.b16 %v3336, %v3335
        %v3359 = vpack.c.b16 %v3338, %v3337
        %v3360 = vpack.c.b16 %v3340, %v3339
        %v3361 = vpack.c.b16 %v3342, %v3341
        %v3362 = vpack.c.b16 %v3344, %v3343
        %v3363 = vpack.c.b16 %v3346, %v3345
        %v3364 = vpack.c.b16 %v3348, %v3347
        %v3365 = vpack.c.b16 %v3350, %v3349
        %v3366 = vpack.c.b16 %v3352, %v3351
        %v3367 = vpack.c.b16 %v3354, %v3353
        %v3368 = vpack.c.b16 %v3356, %v3355
        %v3382 = vsel %vm784, %v3186, 0
        %v3385 = vsel %vm784, %v3188, 0
        %v3388 = vsel %vm784, %v3190, 0
        %v3391 = vsel %vm784, %v3192, 0
        %v3394 = vsel %vm784, %v3194, 0
        %v3397 = vsel %vm784, %v3196, 0
        %v3400 = vsel %vm784, %v3198, 0
        %v3403 = vsel %vm784, %v3200, 0
        %v3406 = vsel %vm784, %v3202, 0
        %v3409 = vsel %vm784, %v3204, 0
        %v3412 = vsel %vm784, %v3206, 0
        %v3415 = vsel %vm784, %v3208, 0
        %v3418 = vsel %vm784, %v3210, 0
        %v3421 = vsel %vm784, %v3212, 0
        %v3424 = vsel %vm784, %v3214, 0
        %v3427 = vsel %vm784, %v3216, 0
        %3429 = vmatprep.subr.bf16.mxu0 0
        %3430 = vmatpush1.bf16.msra.mxu0 %v3364
        %3431 = vmatprep.subr.bf16.mxu0 0
        %3432 = vmatpush1.bf16.msra.mxu0 %v3363
        %3433 = vmatprep.subr.bf16.mxu0 0
        %3434 = vmatpush1.bf16.msra.mxu0 %v3362
        %3435 = vmatprep.subr.bf16.mxu0 0
        %3436 = vmatpush1.bf16.msra.mxu0 %v3361
        %3437 = vmatprep.subr.bf16.mxu0 0
        %3438 = vmatpush1.bf16.msra.mxu0 %v3360
        %3439 = vmatprep.subr.bf16.mxu0 0
        %3440 = vmatpush1.bf16.msra.mxu0 %v3359
        %3441 = vmatprep.subr.bf16.mxu0 0
        %3442 = vmatpush1.bf16.msra.mxu0 %v3358
        %3443 = vmatprep.subr.bf16.mxu0 0
        %3444 = vmatpush1.bf16.msra.mxu0 %v3357
        %3445 = vmatprep.subr.bf16.mxu0 0
        %3446 = vmatpush2.bf16.msra.mxu0 0
        %3447 = vmatprep.subr.bf16.mxu0 0
        %3448 = vmatpush2.bf16.msra.mxu0 0
        %3449 = vmatprep.subr.bf16.mxu0 0
        %3450 = vmatpush2.bf16.msra.mxu0 0
        %3451 = vmatprep.subr.bf16.mxu0 0
        %3452 = vmatpush2.bf16.msra.mxu0 0
        %3453 = vmatprep.subr.bf16.mxu0 0
        %3454 = vmatpush2.bf16.msra.mxu0 %v3368
        %3455 = vmatprep.subr.bf16.mxu0 0
        %3456 = vmatpush2.bf16.msra.mxu0 %v3367
        %3457 = vmatprep.subr.bf16.mxu0 0
        %3458 = vmatpush2.bf16.msra.mxu0 %v3366
        %3459 = vmatprep.subr.bf16.mxu0 0
        %3460 = vmatpush2.bf16.msra.mxu0 %v3365
        %3461 = vmatprep.mubr.bf16.mxu0 %v3382
        %3462 = vmatmul.mubr.bf16.gmra.mxu0 %v3185
        %v3463 = vpop.f32.mrf.mxu0
        %v3464 = vadd.f32 0.0, %v3463
        %v3465 = vpop.f32.mrf.mxu0
        %v3466 = vpop.f32.mrf.mxu0
        %v3467 = vadd.f32 0.0, %v3466
        %v3468 = vpop.f32.mrf.mxu0
        %3469 = vmatprep.mubr.bf16.mxu0 %v3385
        %3470 = vmatmul.mubr.bf16.gmra.mxu0 %v3187
        %v3471 = vpop.f32.mrf.mxu0
        %v3472 = vadd.f32 0.0, %v3471
        %v3473 = vpop.f32.mrf.mxu0
        %v3474 = vpop.f32.mrf.mxu0
        %v3475 = vadd.f32 0.0, %v3474
        %v3476 = vpop.f32.mrf.mxu0
        %3477 = vmatprep.mubr.bf16.mxu0 %v3388
        %3478 = vmatmul.mubr.bf16.gmra.mxu0 %v3189
        %v3479 = vpop.f32.mrf.mxu0
        %v3480 = vadd.f32 0.0, %v3479
        %v3481 = vpop.f32.mrf.mxu0
        %v3482 = vpop.f32.mrf.mxu0
        %v3483 = vadd.f32 0.0, %v3482
        %v3484 = vpop.f32.mrf.mxu0
        %3485 = vmatprep.mubr.bf16.mxu0 %v3391
        %3486 = vmatmul.mubr.bf16.gmra.mxu0 %v3191
        %v3487 = vpop.f32.mrf.mxu0
        %v3488 = vadd.f32 0.0, %v3487
        %v3489 = vpop.f32.mrf.mxu0
        %v3490 = vpop.f32.mrf.mxu0
        %v3491 = vadd.f32 0.0, %v3490
        %v3492 = vpop.f32.mrf.mxu0
        %3493 = vmatprep.mubr.bf16.mxu0 %v3394
        %3494 = vmatmul.mubr.bf16.gmra.mxu0 %v3193
        %v3495 = vpop.f32.mrf.mxu0
        %v3496 = vadd.f32 0.0, %v3495
        %v3497 = vpop.f32.mrf.mxu0
        %v3498 = vpop.f32.mrf.mxu0
        %v3499 = vadd.f32 0.0, %v3498
        %v3500 = vpop.f32.mrf.mxu0
        %3501 = vmatprep.mubr.bf16.mxu0 %v3397
        %3502 = vmatmul.mubr.bf16.gmra.mxu0 %v3195
        %v3503 = vpop.f32.mrf.mxu0
        %v3504 = vadd.f32 0.0, %v3503
        %v3505 = vpop.f32.mrf.mxu0
        %v3506 = vpop.f32.mrf.mxu0
        %v3507 = vadd.f32 0.0, %v3506
        %v3508 = vpop.f32.mrf.mxu0
        %3509 = vmatprep.mubr.bf16.mxu0 %v3400
        %3510 = vmatmul.mubr.bf16.gmra.mxu0 %v3197
        %v3511 = vpop.f32.mrf.mxu0
        %v3512 = vadd.f32 0.0, %v3511
        %v3513 = vpop.f32.mrf.mxu0
        %v3514 = vpop.f32.mrf.mxu0
        %v3515 = vadd.f32 0.0, %v3514
        %v3516 = vpop.f32.mrf.mxu0
        %3517 = vmatprep.mubr.bf16.mxu0 %v3403
        %3518 = vmatmul.mubr.bf16.gmra.mxu0 %v3199
        %v3519 = vpop.f32.mrf.mxu0
        %v3520 = vadd.f32 0.0, %v3519
        %v3521 = vpop.f32.mrf.mxu0
        %v3522 = vpop.f32.mrf.mxu0
        %v3523 = vadd.f32 0.0, %v3522
        %v3524 = vpop.f32.mrf.mxu0
        %3525 = vmatprep.mubr.bf16.mxu0 %v3406
        %3526 = vmatmul.mubr.bf16.gmra.mxu0 %v3201
        %v3527 = vpop.f32.mrf.mxu0
        %v3528 = vadd.f32 0.0, %v3527
        %v3529 = vpop.f32.mrf.mxu0
        %v3530 = vpop.f32.mrf.mxu0
        %v3531 = vadd.f32 0.0, %v3530
        %v3532 = vpop.f32.mrf.mxu0
        %3533 = vmatprep.mubr.bf16.mxu0 %v3409
        %3534 = vmatmul.mubr.bf16.gmra.mxu0 %v3203
        %v3535 = vpop.f32.mrf.mxu0
        %v3536 = vadd.f32 0.0, %v3535
        %v3537 = vpop.f32.mrf.mxu0
        %v3538 = vpop.f32.mrf.mxu0
        %v3539 = vadd.f32 0.0, %v3538
        %v3540 = vpop.f32.mrf.mxu0
        %3541 = vmatprep.mubr.bf16.mxu0 %v3412
        %3542 = vmatmul.mubr.bf16.gmra.mxu0 %v3205
        %v3543 = vpop.f32.mrf.mxu0
        %v3544 = vadd.f32 0.0, %v3543
        %v3545 = vpop.f32.mrf.mxu0
        %v3546 = vpop.f32.mrf.mxu0
        %v3547 = vadd.f32 0.0, %v3546
        %v3548 = vpop.f32.mrf.mxu0
        %3549 = vmatprep.mubr.bf16.mxu0 %v3415
        %3550 = vmatmul.mubr.bf16.gmra.mxu0 %v3207
        %v3551 = vpop.f32.mrf.mxu0
        %v3552 = vadd.f32 0.0, %v3551
        %v3553 = vpop.f32.mrf.mxu0
        %v3554 = vpop.f32.mrf.mxu0
        %v3555 = vadd.f32 0.0, %v3554
        %v3556 = vpop.f32.mrf.mxu0
        %3557 = vmatprep.mubr.bf16.mxu0 %v3418
        %3558 = vmatmul.mubr.bf16.gmra.mxu0 %v3209
        %v3559 = vpop.f32.mrf.mxu0
        %v3560 = vadd.f32 0.0, %v3559
        %v3561 = vpop.f32.mrf.mxu0
        %v3562 = vpop.f32.mrf.mxu0
        %v3563 = vadd.f32 0.0, %v3562
        %v3564 = vpop.f32.mrf.mxu0
        %3565 = vmatprep.mubr.bf16.mxu0 %v3421
        %3566 = vmatmul.mubr.bf16.gmra.mxu0 %v3211
        %v3567 = vpop.f32.mrf.mxu0
        %v3568 = vadd.f32 0.0, %v3567
        %v3569 = vpop.f32.mrf.mxu0
        %v3570 = vpop.f32.mrf.mxu0
        %v3571 = vadd.f32 0.0, %v3570
        %v3572 = vpop.f32.mrf.mxu0
        %3573 = vmatprep.mubr.bf16.mxu0 %v3424
        %3574 = vmatmul.mubr.bf16.gmra.mxu0 %v3213
        %v3575 = vpop.f32.mrf.mxu0
        %v3576 = vadd.f32 0.0, %v3575
        %v3577 = vpop.f32.mrf.mxu0
        %v3578 = vpop.f32.mrf.mxu0
        %v3579 = vadd.f32 0.0, %v3578
        %v3580 = vpop.f32.mrf.mxu0
        %3581 = vmatprep.mubr.bf16.mxu0 %v3427
        %3582 = vmatmul.mubr.bf16.gmra.mxu0 %v3215
        %v3583 = vpop.f32.mrf.mxu0
        %v3584 = vadd.f32 0.0, %v3583
        %v3585 = vpop.f32.mrf.mxu0
        %v3586 = vpop.f32.mrf.mxu0
        %v3587 = vadd.f32 0.0, %v3586
        %v3588 = vpop.f32.mrf.mxu0
        %3589 = vdwg.mxu0
        %v3590 = vadd.f32 %v3253, %v3464
        %v3591 = vadd.f32 %v3254, %v3467
        %v3592 = vadd.f32 %v3255, %v3472
        %v3593 = vadd.f32 %v3256, %v3475
        %v3594 = vadd.f32 %v3257, %v3480
        %v3595 = vadd.f32 %v3258, %v3483
        %v3596 = vadd.f32 %v3259, %v3488
        %v3597 = vadd.f32 %v3260, %v3491
        %v3598 = vadd.f32 %v3261, %v3496
        %v3599 = vadd.f32 %v3262, %v3499
        %v3600 = vadd.f32 %v3263, %v3504
        %v3601 = vadd.f32 %v3264, %v3507
        %v3602 = vadd.f32 %v3265, %v3512
        %v3603 = vadd.f32 %v3266, %v3515
        %v3604 = vadd.f32 %v3267, %v3520
        %v3605 = vadd.f32 %v3268, %v3523
        %v3606 = vadd.f32 %v3269, %v3528
        %v3607 = vadd.f32 %v3270, %v3531
        %v3608 = vadd.f32 %v3271, %v3536
        %v3609 = vadd.f32 %v3272, %v3539
        %v3610 = vadd.f32 %v3273, %v3544
        %v3611 = vadd.f32 %v3274, %v3547
        %v3612 = vadd.f32 %v3275, %v3552
        %v3613 = vadd.f32 %v3276, %v3555
        %v3614 = vadd.f32 %v3277, %v3560
        %v3615 = vadd.f32 %v3278, %v3563
        %v3616 = vadd.f32 %v3279, %v3568
        %v3617 = vadd.f32 %v3280, %v3571
        %v3618 = vadd.f32 %v3281, %v3576
        %v3619 = vadd.f32 %v3282, %v3579
        %v3620 = vadd.f32 %v3283, %v3584
        %v3621 = vadd.f32 %v3284, %v3587
        %3622 = vst.msk [vmem:[#allocation4] sm:$0xff] %vm784, %v3590
        %3623 = vst.msk [vmem:[#allocation4 + $0x8] sm:$0xff] %vm784, %v3591
        %3624 = vst.msk [vmem:[#allocation4 + $0x10] sm:$0xff] %vm784, %v3592
        %3625 = vst.msk [vmem:[#allocation4 + $0x18] sm:$0xff] %vm784, %v3593
        %3626 = vst.msk [vmem:[#allocation4 + $0x20] sm:$0xff] %vm784, %v3594
        %3627 = vst.msk [vmem:[#allocation4 + $0x28] sm:$0xff] %vm784, %v3595
        %3628 = vst.msk [vmem:[#allocation4 + $0x30] sm:$0xff] %vm784, %v3596
        %3629 = vst.msk [vmem:[#allocation4 + $0x38] sm:$0xff] %vm784, %v3597
        %3630 = vst.msk [vmem:[#allocation4 + $0x40] sm:$0xff] %vm784, %v3598
        %3631 = vst.msk [vmem:[#allocation4 + $0x48] sm:$0xff] %vm784, %v3599
        %3632 = vst.msk [vmem:[#allocation4 + $0x50] sm:$0xff] %vm784, %v3600
        %3633 = vst.msk [vmem:[#allocation4 + $0x58] sm:$0xff] %vm784, %v3601
        %3634 = vst.msk [vmem:[#allocation4 + $0x60] sm:$0xff] %vm784, %v3602
        %3635 = vst.msk [vmem:[#allocation4 + $0x68] sm:$0xff] %vm784, %v3603
        %3636 = vst.msk [vmem:[#allocation4 + $0x70] sm:$0xff] %vm784, %v3604
        %3637 = vst.msk [vmem:[#allocation4 + $0x78] sm:$0xff] %vm784, %v3605
        %3638 = vst.msk [vmem:[#allocation4 + $0x80] sm:$0xff] %vm784, %v3606
        %3639 = vst.msk [vmem:[#allocation4 + $0x88] sm:$0xff] %vm784, %v3607
        %3640 = vst.msk [vmem:[#allocation4 + $0x90] sm:$0xff] %vm784, %v3608
        %3641 = vst.msk [vmem:[#allocation4 + $0x98] sm:$0xff] %vm784, %v3609
        %3642 = vst.msk [vmem:[#allocation4 + $0xa0] sm:$0xff] %vm784, %v3610
        %3643 = vst.msk [vmem:[#allocation4 + $0xa8] sm:$0xff] %vm784, %v3611
        %3644 = vst.msk [vmem:[#allocation4 + $0xb0] sm:$0xff] %vm784, %v3612
        %3645 = vst.msk [vmem:[#allocation4 + $0xb8] sm:$0xff] %vm784, %v3613
        %3646 = vst.msk [vmem:[#allocation4 + $0xc0] sm:$0xff] %vm784, %v3614
        %3647 = vst.msk [vmem:[#allocation4 + $0xc8] sm:$0xff] %vm784, %v3615
        %3648 = vst.msk [vmem:[#allocation4 + $0xd0] sm:$0xff] %vm784, %v3616
        %3649 = vst.msk [vmem:[#allocation4 + $0xd8] sm:$0xff] %vm784, %v3617
        %3650 = vst.msk [vmem:[#allocation4 + $0xe0] sm:$0xff] %vm784, %v3618
        %3651 = vst.msk [vmem:[#allocation4 + $0xe8] sm:$0xff] %vm784, %v3619
        %3652 = vst.msk [vmem:[#allocation4 + $0xf0] sm:$0xff] %vm784, %v3620
        %3653 = vst.msk [vmem:[#allocation4 + $0xf8] sm:$0xff] %vm784, %v3621
        %v3654 = vld [vmem:[#allocation4] sm:$0xff]
        %v3655 = vld [vmem:[#allocation4 + $0x8] sm:$0xff]
        %v3656 = vld [vmem:[#allocation4 + $0x10] sm:$0xff]
        %v3657 = vld [vmem:[#allocation4 + $0x18] sm:$0xff]
        %v3658 = vld [vmem:[#allocation4 + $0x20] sm:$0xff]
        %v3659 = vld [vmem:[#allocation4 + $0x28] sm:$0xff]
        %v3660 = vld [vmem:[#allocation4 + $0x30] sm:$0xff]
        %v3661 = vld [vmem:[#allocation4 + $0x38] sm:$0xff]
        %v3662 = vld [vmem:[#allocation4 + $0x40] sm:$0xff]
        %v3663 = vld [vmem:[#allocation4 + $0x48] sm:$0xff]
        %v3664 = vld [vmem:[#allocation4 + $0x50] sm:$0xff]
        %v3665 = vld [vmem:[#allocation4 + $0x58] sm:$0xff]
        %v3666 = vld [vmem:[#allocation4 + $0x60] sm:$0xff]
        %v3667 = vld [vmem:[#allocation4 + $0x68] sm:$0xff]
        %v3668 = vld [vmem:[#allocation4 + $0x70] sm:$0xff]
        %v3669 = vld [vmem:[#allocation4 + $0x78] sm:$0xff]
        %v3670 = vld [vmem:[#allocation4 + $0x80] sm:$0xff]
        %v3671 = vld [vmem:[#allocation4 + $0x88] sm:$0xff]
        %v3672 = vld [vmem:[#allocation4 + $0x90] sm:$0xff]
        %v3673 = vld [vmem:[#allocation4 + $0x98] sm:$0xff]
        %v3674 = vld [vmem:[#allocation4 + $0xa0] sm:$0xff]
        %v3675 = vld [vmem:[#allocation4 + $0xa8] sm:$0xff]
        %v3676 = vld [vmem:[#allocation4 + $0xb0] sm:$0xff]
        %v3677 = vld [vmem:[#allocation4 + $0xb8] sm:$0xff]
        %v3678 = vld [vmem:[#allocation4 + $0xc0] sm:$0xff]
        %v3679 = vld [vmem:[#allocation4 + $0xc8] sm:$0xff]
        %v3680 = vld [vmem:[#allocation4 + $0xd0] sm:$0xff]
        %v3681 = vld [vmem:[#allocation4 + $0xd8] sm:$0xff]
        %v3682 = vld [vmem:[#allocation4 + $0xe0] sm:$0xff]
        %v3683 = vld [vmem:[#allocation4 + $0xe8] sm:$0xff]
        %v3684 = vld [vmem:[#allocation4 + $0xf0] sm:$0xff]
        %v3685 = vld [vmem:[#allocation4 + $0xf8] sm:$0xff]
        %s3686 = scalar_lea.vmem %s4, 96
        %v3687 = vld [vmem:[%s3686] sm:$0xf]
        %v3688 = vld [vmem:[%s3686 + $0x4] sm:$0xf]
        %v3689 = vld [vmem:[%s3686 + $0x8] sm:$0xf]
        %v3690 = vld [vmem:[%s3686 + $0xc] sm:$0xf]
        %v3691 = vld [vmem:[%s3686 + $0x10] sm:$0xf]
        %v3692 = vld [vmem:[%s3686 + $0x14] sm:$0xf]
        %v3693 = vld [vmem:[%s3686 + $0x18] sm:$0xf]
        %v3694 = vld [vmem:[%s3686 + $0x1c] sm:$0xf]
        %v3695 = vld [vmem:[%s3686 + $0x20] sm:$0xf]
        %v3696 = vld [vmem:[%s3686 + $0x24] sm:$0xf]
        %v3697 = vld [vmem:[%s3686 + $0x28] sm:$0xf]
        %v3698 = vld [vmem:[%s3686 + $0x2c] sm:$0xf]
        %v3699 = vld [vmem:[%s3686 + $0x30] sm:$0xf]
        %v3700 = vld [vmem:[%s3686 + $0x34] sm:$0xf]
        %v3701 = vld [vmem:[%s3686 + $0x38] sm:$0xf]
        %v3702 = vld [vmem:[%s3686 + $0x3c] sm:$0xf]
        %v3703 = vld [vmem:[%s3686 + $0x40] sm:$0xf]
        %v3704 = vld [vmem:[%s3686 + $0x44] sm:$0xf]
        %v3705 = vld [vmem:[%s3686 + $0x48] sm:$0xf]
        %v3706 = vld [vmem:[%s3686 + $0x4c] sm:$0xf]
        %v3707 = vld [vmem:[%s3686 + $0x50] sm:$0xf]
        %v3708 = vld [vmem:[%s3686 + $0x54] sm:$0xf]
        %v3709 = vld [vmem:[%s3686 + $0x58] sm:$0xf]
        %v3710 = vld [vmem:[%s3686 + $0x5c] sm:$0xf]
        %v3735 = vunpack.c.l.b16 %v3687
        %v3736 = vunpack.c.l.b16 %v3688
        %v3737 = vunpack.c.l.b16 %v3689
        %v3738 = vunpack.c.l.b16 %v3690
        %v3739 = vunpack.c.l.b16 %v3691
        %v3740 = vunpack.c.l.b16 %v3692
        %v3741 = vunpack.c.l.b16 %v3693
        %v3742 = vunpack.c.l.b16 %v3694
        %v3743 = vunpack.c.l.b16 %v3695
        %v3744 = vunpack.c.l.b16 %v3696
        %v3745 = vunpack.c.l.b16 %v3697
        %v3746 = vunpack.c.l.b16 %v3698
        %v3747 = vunpack.c.l.b16 %v3699
        %v3748 = vunpack.c.l.b16 %v3700
        %v3749 = vunpack.c.l.b16 %v3701
        %v3750 = vunpack.c.l.b16 %v3702
        %v3751 = vunpack.c.l.b16 %v3703
        %v3752 = vunpack.c.l.b16 %v3704
        %v3753 = vunpack.c.l.b16 %v3705
        %v3754 = vunpack.c.l.b16 %v3706
        %v3755 = vunpack.c.l.b16 %v3707
        %v3756 = vunpack.c.l.b16 %v3708
        %v3757 = vunpack.c.l.b16 %v3709
        %v3758 = vunpack.c.l.b16 %v3710
        %v3759 = vpack.c.b16 %v3736, %v3735
        %v3760 = vpack.c.b16 %v3738, %v3737
        %v3761 = vpack.c.b16 %v3740, %v3739
        %v3762 = vpack.c.b16 %v3742, %v3741
        %v3763 = vpack.c.b16 %v3744, %v3743
        %v3764 = vpack.c.b16 %v3746, %v3745
        %v3765 = vpack.c.b16 %v3748, %v3747
        %v3766 = vpack.c.b16 %v3750, %v3749
        %v3767 = vpack.c.b16 %v3752, %v3751
        %v3768 = vpack.c.b16 %v3754, %v3753
        %v3769 = vpack.c.b16 %v3756, %v3755
        %v3770 = vpack.c.b16 %v3758, %v3757
        %v3784 = vsel %vm784, %v3218, 0
        %3786 = vmatprep.subr.bf16.mxu0 0
        %3787 = vmatpush1.bf16.msra.mxu0 %v3766
        %3788 = vmatprep.subr.bf16.mxu0 0
        %3789 = vmatpush1.bf16.msra.mxu0 %v3765
        %3790 = vmatprep.subr.bf16.mxu0 0
        %3791 = vmatpush1.bf16.msra.mxu0 %v3764
        %3792 = vmatprep.subr.bf16.mxu0 0
        %3793 = vmatpush1.bf16.msra.mxu0 %v3763
        %3794 = vmatprep.subr.bf16.mxu0 0
        %3795 = vmatpush1.bf16.msra.mxu0 %v3762
        %3796 = vmatprep.subr.bf16.mxu0 0
        %3797 = vmatpush1.bf16.msra.mxu0 %v3761
        %3798 = vmatprep.subr.bf16.mxu0 0
        %3799 = vmatpush1.bf16.msra.mxu0 %v3760
        %3800 = vmatprep.subr.bf16.mxu0 0
        %3801 = vmatpush1.bf16.msra.mxu0 %v3759
        %3802 = vmatprep.subr.bf16.mxu0 0
        %3803 = vmatpush2.bf16.msra.mxu0 0
        %3804 = vmatprep.subr.bf16.mxu0 0
        %3805 = vmatpush2.bf16.msra.mxu0 0
        %3806 = vmatprep.subr.bf16.mxu0 0
        %3807 = vmatpush2.bf16.msra.mxu0 0
        %3808 = vmatprep.subr.bf16.mxu0 0
        %3809 = vmatpush2.bf16.msra.mxu0 0
        %3810 = vmatprep.subr.bf16.mxu0 0
        %3811 = vmatpush2.bf16.msra.mxu0 %v3770
        %3812 = vmatprep.subr.bf16.mxu0 0
        %3813 = vmatpush2.bf16.msra.mxu0 %v3769
        %3814 = vmatprep.subr.bf16.mxu0 0
        %3815 = vmatpush2.bf16.msra.mxu0 %v3768
        %3816 = vmatprep.subr.bf16.mxu0 0
        %3817 = vmatpush2.bf16.msra.mxu0 %v3767
        %3818 = vmatprep.mubr.bf16.mxu0 %v3385
        %3819 = vmatmul.mubr.bf16.gmra.mxu0 %v3187
        %v3820 = vpop.f32.mrf.mxu0
        %v3821 = vadd.f32 0.0, %v3820
        %v3822 = vpop.f32.mrf.mxu0
        %v3823 = vpop.f32.mrf.mxu0
        %v3824 = vadd.f32 0.0, %v3823
        %v3825 = vpop.f32.mrf.mxu0
        %3826 = vmatprep.mubr.bf16.mxu0 %v3388
        %3827 = vmatmul.mubr.bf16.gmra.mxu0 %v3189
        %v3828 = vpop.f32.mrf.mxu0
        %v3829 = vadd.f32 0.0, %v3828
        %v3830 = vpop.f32.mrf.mxu0
        %v3831 = vpop.f32.mrf.mxu0
        %v3832 = vadd.f32 0.0, %v3831
        %v3833 = vpop.f32.mrf.mxu0
        %3834 = vmatprep.mubr.bf16.mxu0 %v3391
        %3835 = vmatmul.mubr.bf16.gmra.mxu0 %v3191
        %v3836 = vpop.f32.mrf.mxu0
        %v3837 = vadd.f32 0.0, %v3836
        %v3838 = vpop.f32.mrf.mxu0
        %v3839 = vpop.f32.mrf.mxu0
        %v3840 = vadd.f32 0.0, %v3839
        %v3841 = vpop.f32.mrf.mxu0
        %3842 = vmatprep.mubr.bf16.mxu0 %v3394
        %3843 = vmatmul.mubr.bf16.gmra.mxu0 %v3193
        %v3844 = vpop.f32.mrf.mxu0
        %v3845 = vadd.f32 0.0, %v3844
        %v3846 = vpop.f32.mrf.mxu0
        %v3847 = vpop.f32.mrf.mxu0
        %v3848 = vadd.f32 0.0, %v3847
        %v3849 = vpop.f32.mrf.mxu0
        %3850 = vmatprep.mubr.bf16.mxu0 %v3397
        %3851 = vmatmul.mubr.bf16.gmra.mxu0 %v3195
        %v3852 = vpop.f32.mrf.mxu0
        %v3853 = vadd.f32 0.0, %v3852
        %v3854 = vpop.f32.mrf.mxu0
        %v3855 = vpop.f32.mrf.mxu0
        %v3856 = vadd.f32 0.0, %v3855
        %v3857 = vpop.f32.mrf.mxu0
        %3858 = vmatprep.mubr.bf16.mxu0 %v3400
        %3859 = vmatmul.mubr.bf16.gmra.mxu0 %v3197
        %v3860 = vpop.f32.mrf.mxu0
        %v3861 = vadd.f32 0.0, %v3860
        %v3862 = vpop.f32.mrf.mxu0
        %v3863 = vpop.f32.mrf.mxu0
        %v3864 = vadd.f32 0.0, %v3863
        %v3865 = vpop.f32.mrf.mxu0
        %3866 = vmatprep.mubr.bf16.mxu0 %v3403
        %3867 = vmatmul.mubr.bf16.gmra.mxu0 %v3199
        %v3868 = vpop.f32.mrf.mxu0
        %v3869 = vadd.f32 0.0, %v3868
        %v3870 = vpop.f32.mrf.mxu0
        %v3871 = vpop.f32.mrf.mxu0
        %v3872 = vadd.f32 0.0, %v3871
        %v3873 = vpop.f32.mrf.mxu0
        %3874 = vmatprep.mubr.bf16.mxu0 %v3406
        %3875 = vmatmul.mubr.bf16.gmra.mxu0 %v3201
        %v3876 = vpop.f32.mrf.mxu0
        %v3877 = vadd.f32 0.0, %v3876
        %v3878 = vpop.f32.mrf.mxu0
        %v3879 = vpop.f32.mrf.mxu0
        %v3880 = vadd.f32 0.0, %v3879
        %v3881 = vpop.f32.mrf.mxu0
        %3882 = vmatprep.mubr.bf16.mxu0 %v3409
        %3883 = vmatmul.mubr.bf16.gmra.mxu0 %v3203
        %v3884 = vpop.f32.mrf.mxu0
        %v3885 = vadd.f32 0.0, %v3884
        %v3886 = vpop.f32.mrf.mxu0
        %v3887 = vpop.f32.mrf.mxu0
        %v3888 = vadd.f32 0.0, %v3887
        %v3889 = vpop.f32.mrf.mxu0
        %3890 = vmatprep.mubr.bf16.mxu0 %v3412
        %3891 = vmatmul.mubr.bf16.gmra.mxu0 %v3205
        %v3892 = vpop.f32.mrf.mxu0
        %v3893 = vadd.f32 0.0, %v3892
        %v3894 = vpop.f32.mrf.mxu0
        %v3895 = vpop.f32.mrf.mxu0
        %v3896 = vadd.f32 0.0, %v3895
        %v3897 = vpop.f32.mrf.mxu0
        %3898 = vmatprep.mubr.bf16.mxu0 %v3415
        %3899 = vmatmul.mubr.bf16.gmra.mxu0 %v3207
        %v3900 = vpop.f32.mrf.mxu0
        %v3901 = vadd.f32 0.0, %v3900
        %v3902 = vpop.f32.mrf.mxu0
        %v3903 = vpop.f32.mrf.mxu0
        %v3904 = vadd.f32 0.0, %v3903
        %v3905 = vpop.f32.mrf.mxu0
        %3906 = vmatprep.mubr.bf16.mxu0 %v3418
        %3907 = vmatmul.mubr.bf16.gmra.mxu0 %v3209
        %v3908 = vpop.f32.mrf.mxu0
        %v3909 = vadd.f32 0.0, %v3908
        %v3910 = vpop.f32.mrf.mxu0
        %v3911 = vpop.f32.mrf.mxu0
        %v3912 = vadd.f32 0.0, %v3911
        %v3913 = vpop.f32.mrf.mxu0
        %3914 = vmatprep.mubr.bf16.mxu0 %v3421
        %3915 = vmatmul.mubr.bf16.gmra.mxu0 %v3211
        %v3916 = vpop.f32.mrf.mxu0
        %v3917 = vadd.f32 0.0, %v3916
        %v3918 = vpop.f32.mrf.mxu0
        %v3919 = vpop.f32.mrf.mxu0
        %v3920 = vadd.f32 0.0, %v3919
        %v3921 = vpop.f32.mrf.mxu0
        %3922 = vmatprep.mubr.bf16.mxu0 %v3424
        %3923 = vmatmul.mubr.bf16.gmra.mxu0 %v3213
        %v3924 = vpop.f32.mrf.mxu0
        %v3925 = vadd.f32 0.0, %v3924
        %v3926 = vpop.f32.mrf.mxu0
        %v3927 = vpop.f32.mrf.mxu0
        %v3928 = vadd.f32 0.0, %v3927
        %v3929 = vpop.f32.mrf.mxu0
        %3930 = vmatprep.mubr.bf16.mxu0 %v3427
        %3931 = vmatmul.mubr.bf16.gmra.mxu0 %v3215
        %v3932 = vpop.f32.mrf.mxu0
        %v3933 = vadd.f32 0.0, %v3932
        %v3934 = vpop.f32.mrf.mxu0
        %v3935 = vpop.f32.mrf.mxu0
        %v3936 = vadd.f32 0.0, %v3935
        %v3937 = vpop.f32.mrf.mxu0
        %3938 = vmatprep.mubr.bf16.mxu0 %v3784
        %3939 = vmatmul.mubr.bf16.gmra.mxu0 %v3217
        %v3940 = vpop.f32.mrf.mxu0
        %v3941 = vadd.f32 0.0, %v3940
        %v3942 = vpop.f32.mrf.mxu0
        %v3943 = vpop.f32.mrf.mxu0
        %v3944 = vadd.f32 0.0, %v3943
        %v3945 = vpop.f32.mrf.mxu0
        %3946 = vdwg.mxu0
        %v3947 = vadd.f32 %v3654, %v3821
        %v3948 = vadd.f32 %v3655, %v3824
        %v3949 = vadd.f32 %v3656, %v3829
        %v3950 = vadd.f32 %v3657, %v3832
        %v3951 = vadd.f32 %v3658, %v3837
        %v3952 = vadd.f32 %v3659, %v3840
        %v3953 = vadd.f32 %v3660, %v3845
        %v3954 = vadd.f32 %v3661, %v3848
        %v3955 = vadd.f32 %v3662, %v3853
        %v3956 = vadd.f32 %v3663, %v3856
        %v3957 = vadd.f32 %v3664, %v3861
        %v3958 = vadd.f32 %v3665, %v3864
        %v3959 = vadd.f32 %v3666, %v3869
        %v3960 = vadd.f32 %v3667, %v3872
        %v3961 = vadd.f32 %v3668, %v3877
        %v3962 = vadd.f32 %v3669, %v3880
        %v3963 = vadd.f32 %v3670, %v3885
        %v3964 = vadd.f32 %v3671, %v3888
        %v3965 = vadd.f32 %v3672, %v3893
        %v3966 = vadd.f32 %v3673, %v3896
        %v3967 = vadd.f32 %v3674, %v3901
        %v3968 = vadd.f32 %v3675, %v3904
        %v3969 = vadd.f32 %v3676, %v3909
        %v3970 = vadd.f32 %v3677, %v3912
        %v3971 = vadd.f32 %v3678, %v3917
        %v3972 = vadd.f32 %v3679, %v3920
        %v3973 = vadd.f32 %v3680, %v3925
        %v3974 = vadd.f32 %v3681, %v3928
        %v3975 = vadd.f32 %v3682, %v3933
        %v3976 = vadd.f32 %v3683, %v3936
        %v3977 = vadd.f32 %v3684, %v3941
        %v3978 = vadd.f32 %v3685, %v3944
        %3979 = vst.msk [vmem:[#allocation4] sm:$0xff] %vm784, %v3947
        %3980 = vst.msk [vmem:[#allocation4 + $0x8] sm:$0xff] %vm784, %v3948
        %3981 = vst.msk [vmem:[#allocation4 + $0x10] sm:$0xff] %vm784, %v3949
        %3982 = vst.msk [vmem:[#allocation4 + $0x18] sm:$0xff] %vm784, %v3950
        %3983 = vst.msk [vmem:[#allocation4 + $0x20] sm:$0xff] %vm784, %v3951
        %3984 = vst.msk [vmem:[#allocation4 + $0x28] sm:$0xff] %vm784, %v3952
        %3985 = vst.msk [vmem:[#allocation4 + $0x30] sm:$0xff] %vm784, %v3953
        %3986 = vst.msk [vmem:[#allocation4 + $0x38] sm:$0xff] %vm784, %v3954
        %3987 = vst.msk [vmem:[#allocation4 + $0x40] sm:$0xff] %vm784, %v3955
        %3988 = vst.msk [vmem:[#allocation4 + $0x48] sm:$0xff] %vm784, %v3956
        %3989 = vst.msk [vmem:[#allocation4 + $0x50] sm:$0xff] %vm784, %v3957
        %3990 = vst.msk [vmem:[#allocation4 + $0x58] sm:$0xff] %vm784, %v3958
        %3991 = vst.msk [vmem:[#allocation4 + $0x60] sm:$0xff] %vm784, %v3959
        %3992 = vst.msk [vmem:[#allocation4 + $0x68] sm:$0xff] %vm784, %v3960
        %3993 = vst.msk [vmem:[#allocation4 + $0x70] sm:$0xff] %vm784, %v3961
        %3994 = vst.msk [vmem:[#allocation4 + $0x78] sm:$0xff] %vm784, %v3962
        %3995 = vst.msk [vmem:[#allocation4 + $0x80] sm:$0xff] %vm784, %v3963
        %3996 = vst.msk [vmem:[#allocation4 + $0x88] sm:$0xff] %vm784, %v3964
        %3997 = vst.msk [vmem:[#allocation4 + $0x90] sm:$0xff] %vm784, %v3965
        %3998 = vst.msk [vmem:[#allocation4 + $0x98] sm:$0xff] %vm784, %v3966
        %3999 = vst.msk [vmem:[#allocation4 + $0xa0] sm:$0xff] %vm784, %v3967
        %4000 = vst.msk [vmem:[#allocation4 + $0xa8] sm:$0xff] %vm784, %v3968
        %4001 = vst.msk [vmem:[#allocation4 + $0xb0] sm:$0xff] %vm784, %v3969
        %4002 = vst.msk [vmem:[#allocation4 + $0xb8] sm:$0xff] %vm784, %v3970
        %4003 = vst.msk [vmem:[#allocation4 + $0xc0] sm:$0xff] %vm784, %v3971
        %4004 = vst.msk [vmem:[#allocation4 + $0xc8] sm:$0xff] %vm784, %v3972
        %4005 = vst.msk [vmem:[#allocation4 + $0xd0] sm:$0xff] %vm784, %v3973
        %4006 = vst.msk [vmem:[#allocation4 + $0xd8] sm:$0xff] %vm784, %v3974
        %4007 = vst.msk [vmem:[#allocation4 + $0xe0] sm:$0xff] %vm784, %v3975
        %4008 = vst.msk [vmem:[#allocation4 + $0xe8] sm:$0xff] %vm784, %v3976
        %4009 = vst.msk [vmem:[#allocation4 + $0xf0] sm:$0xff] %vm784, %v3977
        %4010 = vst.msk [vmem:[#allocation4 + $0xf8] sm:$0xff] %vm784, %v3978
        %v4011 = vld [vmem:[#allocation4] sm:$0xff]
        %v4012 = vld [vmem:[#allocation4 + $0x8] sm:$0xff]
        %v4013 = vld [vmem:[#allocation4 + $0x10] sm:$0xff]
        %v4014 = vld [vmem:[#allocation4 + $0x18] sm:$0xff]
        %v4015 = vld [vmem:[#allocation4 + $0x20] sm:$0xff]
        %v4016 = vld [vmem:[#allocation4 + $0x28] sm:$0xff]
        %v4017 = vld [vmem:[#allocation4 + $0x30] sm:$0xff]
        %v4018 = vld [vmem:[#allocation4 + $0x38] sm:$0xff]
        %v4019 = vld [vmem:[#allocation4 + $0x40] sm:$0xff]
        %v4020 = vld [vmem:[#allocation4 + $0x48] sm:$0xff]
        %v4021 = vld [vmem:[#allocation4 + $0x50] sm:$0xff]
        %v4022 = vld [vmem:[#allocation4 + $0x58] sm:$0xff]
        %v4023 = vld [vmem:[#allocation4 + $0x60] sm:$0xff]
        %v4024 = vld [vmem:[#allocation4 + $0x68] sm:$0xff]
        %v4025 = vld [vmem:[#allocation4 + $0x70] sm:$0xff]
        %v4026 = vld [vmem:[#allocation4 + $0x78] sm:$0xff]
        %v4027 = vld [vmem:[#allocation4 + $0x80] sm:$0xff]
        %v4028 = vld [vmem:[#allocation4 + $0x88] sm:$0xff]
        %v4029 = vld [vmem:[#allocation4 + $0x90] sm:$0xff]
        %v4030 = vld [vmem:[#allocation4 + $0x98] sm:$0xff]
        %v4031 = vld [vmem:[#allocation4 + $0xa0] sm:$0xff]
        %v4032 = vld [vmem:[#allocation4 + $0xa8] sm:$0xff]
        %v4033 = vld [vmem:[#allocation4 + $0xb0] sm:$0xff]
        %v4034 = vld [vmem:[#allocation4 + $0xb8] sm:$0xff]
        %v4035 = vld [vmem:[#allocation4 + $0xc0] sm:$0xff]
        %v4036 = vld [vmem:[#allocation4 + $0xc8] sm:$0xff]
        %v4037 = vld [vmem:[#allocation4 + $0xd0] sm:$0xff]
        %v4038 = vld [vmem:[#allocation4 + $0xd8] sm:$0xff]
        %v4039 = vld [vmem:[#allocation4 + $0xe0] sm:$0xff]
        %v4040 = vld [vmem:[#allocation4 + $0xe8] sm:$0xff]
        %v4041 = vld [vmem:[#allocation4 + $0xf0] sm:$0xff]
        %v4042 = vld [vmem:[#allocation4 + $0xf8] sm:$0xff]
        %s4043 = scalar_lea.vmem %s4, 192
        %v4044 = vld [vmem:[%s4043] sm:$0xf]
        %v4045 = vld [vmem:[%s4043 + $0x4] sm:$0xf]
        %v4046 = vld [vmem:[%s4043 + $0x8] sm:$0xf]
        %v4047 = vld [vmem:[%s4043 + $0xc] sm:$0xf]
        %v4048 = vld [vmem:[%s4043 + $0x10] sm:$0xf]
        %v4049 = vld [vmem:[%s4043 + $0x14] sm:$0xf]
        %v4050 = vld [vmem:[%s4043 + $0x18] sm:$0xf]
        %v4051 = vld [vmem:[%s4043 + $0x1c] sm:$0xf]
        %v4052 = vld [vmem:[%s4043 + $0x20] sm:$0xf]
        %v4053 = vld [vmem:[%s4043 + $0x24] sm:$0xf]
        %v4054 = vld [vmem:[%s4043 + $0x28] sm:$0xf]
        %v4055 = vld [vmem:[%s4043 + $0x2c] sm:$0xf]
        %v4056 = vld [vmem:[%s4043 + $0x30] sm:$0xf]
        %v4057 = vld [vmem:[%s4043 + $0x34] sm:$0xf]
        %v4058 = vld [vmem:[%s4043 + $0x38] sm:$0xf]
        %v4059 = vld [vmem:[%s4043 + $0x3c] sm:$0xf]
        %v4060 = vld [vmem:[%s4043 + $0x40] sm:$0xf]
        %v4061 = vld [vmem:[%s4043 + $0x44] sm:$0xf]
        %v4062 = vld [vmem:[%s4043 + $0x48] sm:$0xf]
        %v4063 = vld [vmem:[%s4043 + $0x4c] sm:$0xf]
        %v4064 = vld [vmem:[%s4043 + $0x50] sm:$0xf]
        %v4065 = vld [vmem:[%s4043 + $0x54] sm:$0xf]
        %v4066 = vld [vmem:[%s4043 + $0x58] sm:$0xf]
        %v4067 = vld [vmem:[%s4043 + $0x5c] sm:$0xf]
        %v4092 = vunpack.c.l.b16 %v4044
        %v4093 = vunpack.c.l.b16 %v4045
        %v4094 = vunpack.c.l.b16 %v4046
        %v4095 = vunpack.c.l.b16 %v4047
        %v4096 = vunpack.c.l.b16 %v4048
        %v4097 = vunpack.c.l.b16 %v4049
        %v4098 = vunpack.c.l.b16 %v4050
        %v4099 = vunpack.c.l.b16 %v4051
        %v4100 = vunpack.c.l.b16 %v4052
        %v4101 = vunpack.c.l.b16 %v4053
        %v4102 = vunpack.c.l.b16 %v4054
        %v4103 = vunpack.c.l.b16 %v4055
        %v4104 = vunpack.c.l.b16 %v4056
        %v4105 = vunpack.c.l.b16 %v4057
        %v4106 = vunpack.c.l.b16 %v4058
        %v4107 = vunpack.c.l.b16 %v4059
        %v4108 = vunpack.c.l.b16 %v4060
        %v4109 = vunpack.c.l.b16 %v4061
        %v4110 = vunpack.c.l.b16 %v4062
        %v4111 = vunpack.c.l.b16 %v4063
        %v4112 = vunpack.c.l.b16 %v4064
        %v4113 = vunpack.c.l.b16 %v4065
        %v4114 = vunpack.c.l.b16 %v4066
        %v4115 = vunpack.c.l.b16 %v4067
        %v4116 = vpack.c.b16 %v4093, %v4092
        %v4117 = vpack.c.b16 %v4095, %v4094
        %v4118 = vpack.c.b16 %v4097, %v4096
        %v4119 = vpack.c.b16 %v4099, %v4098
        %v4120 = vpack.c.b16 %v4101, %v4100
        %v4121 = vpack.c.b16 %v4103, %v4102
        %v4122 = vpack.c.b16 %v4105, %v4104
        %v4123 = vpack.c.b16 %v4107, %v4106
        %v4124 = vpack.c.b16 %v4109, %v4108
        %v4125 = vpack.c.b16 %v4111, %v4110
        %v4126 = vpack.c.b16 %v4113, %v4112
        %v4127 = vpack.c.b16 %v4115, %v4114
        %v4141 = vsel %vm784, %v3220, 0
        %4143 = vmatprep.subr.bf16.mxu0 0
        %4144 = vmatpush1.bf16.msra.mxu0 %v4123
        %4145 = vmatprep.subr.bf16.mxu0 0
        %4146 = vmatpush1.bf16.msra.mxu0 %v4122
        %4147 = vmatprep.subr.bf16.mxu0 0
        %4148 = vmatpush1.bf16.msra.mxu0 %v4121
        %4149 = vmatprep.subr.bf16.mxu0 0
        %4150 = vmatpush1.bf16.msra.mxu0 %v4120
        %4151 = vmatprep.subr.bf16.mxu0 0
        %4152 = vmatpush1.bf16.msra.mxu0 %v4119
        %4153 = vmatprep.subr.bf16.mxu0 0
        %4154 = vmatpush1.bf16.msra.mxu0 %v4118
        %4155 = vmatprep.subr.bf16.mxu0 0
        %4156 = vmatpush1.bf16.msra.mxu0 %v4117
        %4157 = vmatprep.subr.bf16.mxu0 0
        %4158 = vmatpush1.bf16.msra.mxu0 %v4116
        %4159 = vmatprep.subr.bf16.mxu0 0
        %4160 = vmatpush2.bf16.msra.mxu0 0
        %4161 = vmatprep.subr.bf16.mxu0 0
        %4162 = vmatpush2.bf16.msra.mxu0 0
        %4163 = vmatprep.subr.bf16.mxu0 0
        %4164 = vmatpush2.bf16.msra.mxu0 0
        %4165 = vmatprep.subr.bf16.mxu0 0
        %4166 = vmatpush2.bf16.msra.mxu0 0
        %4167 = vmatprep.subr.bf16.mxu0 0
        %4168 = vmatpush2.bf16.msra.mxu0 %v4127
        %4169 = vmatprep.subr.bf16.mxu0 0
        %4170 = vmatpush2.bf16.msra.mxu0 %v4126
        %4171 = vmatprep.subr.bf16.mxu0 0
        %4172 = vmatpush2.bf16.msra.mxu0 %v4125
        %4173 = vmatprep.subr.bf16.mxu0 0
        %4174 = vmatpush2.bf16.msra.mxu0 %v4124
        %4175 = vmatprep.mubr.bf16.mxu0 %v3388
        %4176 = vmatmul.mubr.bf16.gmra.mxu0 %v3189
        %v4177 = vpop.f32.mrf.mxu0
        %v4178 = vadd.f32 0.0, %v4177
        %v4179 = vpop.f32.mrf.mxu0
        %v4180 = vpop.f32.mrf.mxu0
        %v4181 = vadd.f32 0.0, %v4180
        %v4182 = vpop.f32.mrf.mxu0
        %4183 = vmatprep.mubr.bf16.mxu0 %v3391
        %4184 = vmatmul.mubr.bf16.gmra.mxu0 %v3191
        %v4185 = vpop.f32.mrf.mxu0
        %v4186 = vadd.f32 0.0, %v4185
        %v4187 = vpop.f32.mrf.mxu0
        %v4188 = vpop.f32.mrf.mxu0
        %v4189 = vadd.f32 0.0, %v4188
        %v4190 = vpop.f32.mrf.mxu0
        %4191 = vmatprep.mubr.bf16.mxu0 %v3394
        %4192 = vmatmul.mubr.bf16.gmra.mxu0 %v3193
        %v4193 = vpop.f32.mrf.mxu0
        %v4194 = vadd.f32 0.0, %v4193
        %v4195 = vpop.f32.mrf.mxu0
        %v4196 = vpop.f32.mrf.mxu0
        %v4197 = vadd.f32 0.0, %v4196
        %v4198 = vpop.f32.mrf.mxu0
        %4199 = vmatprep.mubr.bf16.mxu0 %v3397
        %4200 = vmatmul.mubr.bf16.gmra.mxu0 %v3195
        %v4201 = vpop.f32.mrf.mxu0
        %v4202 = vadd.f32 0.0, %v4201
        %v4203 = vpop.f32.mrf.mxu0
        %v4204 = vpop.f32.mrf.mxu0
        %v4205 = vadd.f32 0.0, %v4204
        %v4206 = vpop.f32.mrf.mxu0
        %4207 = vmatprep.mubr.bf16.mxu0 %v3400
        %4208 = vmatmul.mubr.bf16.gmra.mxu0 %v3197
        %v4209 = vpop.f32.mrf.mxu0
        %v4210 = vadd.f32 0.0, %v4209
        %v4211 = vpop.f32.mrf.mxu0
        %v4212 = vpop.f32.mrf.mxu0
        %v4213 = vadd.f32 0.0, %v4212
        %v4214 = vpop.f32.mrf.mxu0
        %4215 = vmatprep.mubr.bf16.mxu0 %v3403
        %4216 = vmatmul.mubr.bf16.gmra.mxu0 %v3199
        %v4217 = vpop.f32.mrf.mxu0
        %v4218 = vadd.f32 0.0, %v4217
        %v4219 = vpop.f32.mrf.mxu0
        %v4220 = vpop.f32.mrf.mxu0
        %v4221 = vadd.f32 0.0, %v4220
        %v4222 = vpop.f32.mrf.mxu0
        %4223 = vmatprep.mubr.bf16.mxu0 %v3406
        %4224 = vmatmul.mubr.bf16.gmra.mxu0 %v3201
        %v4225 = vpop.f32.mrf.mxu0
        %v4226 = vadd.f32 0.0, %v4225
        %v4227 = vpop.f32.mrf.mxu0
        %v4228 = vpop.f32.mrf.mxu0
        %v4229 = vadd.f32 0.0, %v4228
        %v4230 = vpop.f32.mrf.mxu0
        %4231 = vmatprep.mubr.bf16.mxu0 %v3409
        %4232 = vmatmul.mubr.bf16.gmra.mxu0 %v3203
        %v4233 = vpop.f32.mrf.mxu0
        %v4234 = vadd.f32 0.0, %v4233
        %v4235 = vpop.f32.mrf.mxu0
        %v4236 = vpop.f32.mrf.mxu0
        %v4237 = vadd.f32 0.0, %v4236
        %v4238 = vpop.f32.mrf.mxu0
        %4239 = vmatprep.mubr.bf16.mxu0 %v3412
        %4240 = vmatmul.mubr.bf16.gmra.mxu0 %v3205
        %v4241 = vpop.f32.mrf.mxu0
        %v4242 = vadd.f32 0.0, %v4241
        %v4243 = vpop.f32.mrf.mxu0
        %v4244 = vpop.f32.mrf.mxu0
        %v4245 = vadd.f32 0.0, %v4244
        %v4246 = vpop.f32.mrf.mxu0
        %4247 = vmatprep.mubr.bf16.mxu0 %v3415
        %4248 = vmatmul.mubr.bf16.gmra.mxu0 %v3207
        %v4249 = vpop.f32.mrf.mxu0
        %v4250 = vadd.f32 0.0, %v4249
        %v4251 = vpop.f32.mrf.mxu0
        %v4252 = vpop.f32.mrf.mxu0
        %v4253 = vadd.f32 0.0, %v4252
        %v4254 = vpop.f32.mrf.mxu0
        %4255 = vmatprep.mubr.bf16.mxu0 %v3418
        %4256 = vmatmul.mubr.bf16.gmra.mxu0 %v3209
        %v4257 = vpop.f32.mrf.mxu0
        %v4258 = vadd.f32 0.0, %v4257
        %v4259 = vpop.f32.mrf.mxu0
        %v4260 = vpop.f32.mrf.mxu0
        %v4261 = vadd.f32 0.0, %v4260
        %v4262 = vpop.f32.mrf.mxu0
        %4263 = vmatprep.mubr.bf16.mxu0 %v3421
        %4264 = vmatmul.mubr.bf16.gmra.mxu0 %v3211
        %v4265 = vpop.f32.mrf.mxu0
        %v4266 = vadd.f32 0.0, %v4265
        %v4267 = vpop.f32.mrf.mxu0
        %v4268 = vpop.f32.mrf.mxu0
        %v4269 = vadd.f32 0.0, %v4268
        %v4270 = vpop.f32.mrf.mxu0
        %4271 = vmatprep.mubr.bf16.mxu0 %v3424
        %4272 = vmatmul.mubr.bf16.gmra.mxu0 %v3213
        %v4273 = vpop.f32.mrf.mxu0
        %v4274 = vadd.f32 0.0, %v4273
        %v4275 = vpop.f32.mrf.mxu0
        %v4276 = vpop.f32.mrf.mxu0
        %v4277 = vadd.f32 0.0, %v4276
        %v4278 = vpop.f32.mrf.mxu0
        %4279 = vmatprep.mubr.bf16.mxu0 %v3427
        %4280 = vmatmul.mubr.bf16.gmra.mxu0 %v3215
        %v4281 = vpop.f32.mrf.mxu0
        %v4282 = vadd.f32 0.0, %v4281
        %v4283 = vpop.f32.mrf.mxu0
        %v4284 = vpop.f32.mrf.mxu0
        %v4285 = vadd.f32 0.0, %v4284
        %v4286 = vpop.f32.mrf.mxu0
        %4287 = vmatprep.mubr.bf16.mxu0 %v3784
        %4288 = vmatmul.mubr.bf16.gmra.mxu0 %v3217
        %v4289 = vpop.f32.mrf.mxu0
        %v4290 = vadd.f32 0.0, %v4289
        %v4291 = vpop.f32.mrf.mxu0
        %v4292 = vpop.f32.mrf.mxu0
        %v4293 = vadd.f32 0.0, %v4292
        %v4294 = vpop.f32.mrf.mxu0
        %4295 = vmatprep.mubr.bf16.mxu0 %v4141
        %4296 = vmatmul.mubr.bf16.gmra.mxu0 %v3219
        %v4297 = vpop.f32.mrf.mxu0
        %v4298 = vadd.f32 0.0, %v4297
        %v4299 = vpop.f32.mrf.mxu0
        %v4300 = vpop.f32.mrf.mxu0
        %v4301 = vadd.f32 0.0, %v4300
        %v4302 = vpop.f32.mrf.mxu0
        %4303 = vdwg.mxu0
        %v4304 = vadd.f32 %v4011, %v4178
        %v4305 = vadd.f32 %v4012, %v4181
        %v4306 = vadd.f32 %v4013, %v4186
        %v4307 = vadd.f32 %v4014, %v4189
        %v4308 = vadd.f32 %v4015, %v4194
        %v4309 = vadd.f32 %v4016, %v4197
        %v4310 = vadd.f32 %v4017, %v4202
        %v4311 = vadd.f32 %v4018, %v4205
        %v4312 = vadd.f32 %v4019, %v4210
        %v4313 = vadd.f32 %v4020, %v4213
        %v4314 = vadd.f32 %v4021, %v4218
        %v4315 = vadd.f32 %v4022, %v4221
        %v4316 = vadd.f32 %v4023, %v4226
        %v4317 = vadd.f32 %v4024, %v4229
        %v4318 = vadd.f32 %v4025, %v4234
        %v4319 = vadd.f32 %v4026, %v4237
        %v4320 = vadd.f32 %v4027, %v4242
        %v4321 = vadd.f32 %v4028, %v4245
        %v4322 = vadd.f32 %v4029, %v4250
        %v4323 = vadd.f32 %v4030, %v4253
        %v4324 = vadd.f32 %v4031, %v4258
        %v4325 = vadd.f32 %v4032, %v4261
        %v4326 = vadd.f32 %v4033, %v4266
        %v4327 = vadd.f32 %v4034, %v4269
        %v4328 = vadd.f32 %v4035, %v4274
        %v4329 = vadd.f32 %v4036, %v4277
        %v4330 = vadd.f32 %v4037, %v4282
        %v4331 = vadd.f32 %v4038, %v4285
        %v4332 = vadd.f32 %v4039, %v4290
        %v4333 = vadd.f32 %v4040, %v4293
        %v4334 = vadd.f32 %v4041, %v4298
        %v4335 = vadd.f32 %v4042, %v4301
        %4336 = vst.msk [vmem:[#allocation4] sm:$0xff] %vm784, %v4304
        %4337 = vst.msk [vmem:[#allocation4 + $0x8] sm:$0xff] %vm784, %v4305
        %4338 = vst.msk [vmem:[#allocation4 + $0x10] sm:$0xff] %vm784, %v4306
        %4339 = vst.msk [vmem:[#allocation4 + $0x18] sm:$0xff] %vm784, %v4307
        %4340 = vst.msk [vmem:[#allocation4 + $0x20] sm:$0xff] %vm784, %v4308
        %4341 = vst.msk [vmem:[#allocation4 + $0x28] sm:$0xff] %vm784, %v4309
        %4342 = vst.msk [vmem:[#allocation4 + $0x30] sm:$0xff] %vm784, %v4310
        %4343 = vst.msk [vmem:[#allocation4 + $0x38] sm:$0xff] %vm784, %v4311
        %4344 = vst.msk [vmem:[#allocation4 + $0x40] sm:$0xff] %vm784, %v4312
        %4345 = vst.msk [vmem:[#allocation4 + $0x48] sm:$0xff] %vm784, %v4313
        %4346 = vst.msk [vmem:[#allocation4 + $0x50] sm:$0xff] %vm784, %v4314
        %4347 = vst.msk [vmem:[#allocation4 + $0x58] sm:$0xff] %vm784, %v4315
        %4348 = vst.msk [vmem:[#allocation4 + $0x60] sm:$0xff] %vm784, %v4316
        %4349 = vst.msk [vmem:[#allocation4 + $0x68] sm:$0xff] %vm784, %v4317
        %4350 = vst.msk [vmem:[#allocation4 + $0x70] sm:$0xff] %vm784, %v4318
        %4351 = vst.msk [vmem:[#allocation4 + $0x78] sm:$0xff] %vm784, %v4319
        %4352 = vst.msk [vmem:[#allocation4 + $0x80] sm:$0xff] %vm784, %v4320
        %4353 = vst.msk [vmem:[#allocation4 + $0x88] sm:$0xff] %vm784, %v4321
        %4354 = vst.msk [vmem:[#allocation4 + $0x90] sm:$0xff] %vm784, %v4322
        %4355 = vst.msk [vmem:[#allocation4 + $0x98] sm:$0xff] %vm784, %v4323
        %4356 = vst.msk [vmem:[#allocation4 + $0xa0] sm:$0xff] %vm784, %v4324
        %4357 = vst.msk [vmem:[#allocation4 + $0xa8] sm:$0xff] %vm784, %v4325
        %4358 = vst.msk [vmem:[#allocation4 + $0xb0] sm:$0xff] %vm784, %v4326
        %4359 = vst.msk [vmem:[#allocation4 + $0xb8] sm:$0xff] %vm784, %v4327
        %4360 = vst.msk [vmem:[#allocation4 + $0xc0] sm:$0xff] %vm784, %v4328
        %4361 = vst.msk [vmem:[#allocation4 + $0xc8] sm:$0xff] %vm784, %v4329
        %4362 = vst.msk [vmem:[#allocation4 + $0xd0] sm:$0xff] %vm784, %v4330
        %4363 = vst.msk [vmem:[#allocation4 + $0xd8] sm:$0xff] %vm784, %v4331
        %4364 = vst.msk [vmem:[#allocation4 + $0xe0] sm:$0xff] %vm784, %v4332
        %4365 = vst.msk [vmem:[#allocation4 + $0xe8] sm:$0xff] %vm784, %v4333
        %4366 = vst.msk [vmem:[#allocation4 + $0xf0] sm:$0xff] %vm784, %v4334
        %4367 = vst.msk [vmem:[#allocation4 + $0xf8] sm:$0xff] %vm784, %v4335
        %v4368 = vld [vmem:[#allocation4] sm:$0xff]
        %v4369 = vld [vmem:[#allocation4 + $0x8] sm:$0xff]
        %v4370 = vld [vmem:[#allocation4 + $0x10] sm:$0xff]
        %v4371 = vld [vmem:[#allocation4 + $0x18] sm:$0xff]
        %v4372 = vld [vmem:[#allocation4 + $0x20] sm:$0xff]
        %v4373 = vld [vmem:[#allocation4 + $0x28] sm:$0xff]
        %v4374 = vld [vmem:[#allocation4 + $0x30] sm:$0xff]
        %v4375 = vld [vmem:[#allocation4 + $0x38] sm:$0xff]
        %v4376 = vld [vmem:[#allocation4 + $0x40] sm:$0xff]
        %v4377 = vld [vmem:[#allocation4 + $0x48] sm:$0xff]
        %v4378 = vld [vmem:[#allocation4 + $0x50] sm:$0xff]
        %v4379 = vld [vmem:[#allocation4 + $0x58] sm:$0xff]
        %v4380 = vld [vmem:[#allocation4 + $0x60] sm:$0xff]
        %v4381 = vld [vmem:[#allocation4 + $0x68] sm:$0xff]
        %v4382 = vld [vmem:[#allocation4 + $0x70] sm:$0xff]
        %v4383 = vld [vmem:[#allocation4 + $0x78] sm:$0xff]
        %v4384 = vld [vmem:[#allocation4 + $0x80] sm:$0xff]
        %v4385 = vld [vmem:[#allocation4 + $0x88] sm:$0xff]
        %v4386 = vld [vmem:[#allocation4 + $0x90] sm:$0xff]
        %v4387 = vld [vmem:[#allocation4 + $0x98] sm:$0xff]
        %v4388 = vld [vmem:[#allocation4 + $0xa0] sm:$0xff]
        %v4389 = vld [vmem:[#allocation4 + $0xa8] sm:$0xff]
        %v4390 = vld [vmem:[#allocation4 + $0xb0] sm:$0xff]
        %v4391 = vld [vmem:[#allocation4 + $0xb8] sm:$0xff]
        %v4392 = vld [vmem:[#allocation4 + $0xc0] sm:$0xff]
        %v4393 = vld [vmem:[#allocation4 + $0xc8] sm:$0xff]
        %v4394 = vld [vmem:[#allocation4 + $0xd0] sm:$0xff]
        %v4395 = vld [vmem:[#allocation4 + $0xd8] sm:$0xff]
        %v4396 = vld [vmem:[#allocation4 + $0xe0] sm:$0xff]
        %v4397 = vld [vmem:[#allocation4 + $0xe8] sm:$0xff]
        %v4398 = vld [vmem:[#allocation4 + $0xf0] sm:$0xff]
        %v4399 = vld [vmem:[#allocation4 + $0xf8] sm:$0xff]
        %v4400 = vld [vmem:[%s5] sm:$0x1]
        %v4402 = vlaneseq
        %v4403 = vshrl.u32 %v4402, 7
        %v4404 = vsub.s32 0, %v4403
        %v4405 = vrot.slane %v4400, %v4404
        %v4407 = vmul.f32 %v4368, %v4405
        %v4408 = vmul.f32 %v4369, %v4405
        %v4409 = vmul.f32 %v4370, %v4405
        %v4410 = vmul.f32 %v4371, %v4405
        %v4411 = vmul.f32 %v4372, %v4405
        %v4412 = vmul.f32 %v4373, %v4405
        %v4413 = vmul.f32 %v4374, %v4405
        %v4414 = vmul.f32 %v4375, %v4405
        %v4415 = vmul.f32 %v4376, %v4405
        %v4416 = vmul.f32 %v4377, %v4405
        %v4417 = vmul.f32 %v4378, %v4405
        %v4418 = vmul.f32 %v4379, %v4405
        %v4419 = vmul.f32 %v4380, %v4405
        %v4420 = vmul.f32 %v4381, %v4405
        %v4421 = vmul.f32 %v4382, %v4405
        %v4422 = vmul.f32 %v4383, %v4405
        %v4423 = vmul.f32 %v4384, %v4405
        %v4424 = vmul.f32 %v4385, %v4405
        %v4425 = vmul.f32 %v4386, %v4405
        %v4426 = vmul.f32 %v4387, %v4405
        %v4427 = vmul.f32 %v4388, %v4405
        %v4428 = vmul.f32 %v4389, %v4405
        %v4429 = vmul.f32 %v4390, %v4405
        %v4430 = vmul.f32 %v4391, %v4405
        %v4431 = vmul.f32 %v4392, %v4405
        %v4432 = vmul.f32 %v4393, %v4405
        %v4433 = vmul.f32 %v4394, %v4405
        %v4434 = vmul.f32 %v4395, %v4405
        %v4435 = vmul.f32 %v4396, %v4405
        %v4436 = vmul.f32 %v4397, %v4405
        %v4437 = vmul.f32 %v4398, %v4405
        %v4438 = vmul.f32 %v4399, %v4405
        %v4439 = vld [vmem:[%s6] sm:$0x1]
        %v4441 = vlaneseq
        %v4442 = vshrl.u32 %v4441, 7
        %v4443 = vsub.s32 0, %v4442
        %v4444 = vrot.slane %v4439, %v4443
        %v4446 = vadd.f32 %v4407, %v4444
        %v4447 = vadd.f32 %v4408, %v4444
        %v4448 = vadd.f32 %v4409, %v4444
        %v4449 = vadd.f32 %v4410, %v4444
        %v4450 = vadd.f32 %v4411, %v4444
        %v4451 = vadd.f32 %v4412, %v4444
        %v4452 = vadd.f32 %v4413, %v4444
        %v4453 = vadd.f32 %v4414, %v4444
        %v4454 = vadd.f32 %v4415, %v4444
        %v4455 = vadd.f32 %v4416, %v4444
        %v4456 = vadd.f32 %v4417, %v4444
        %v4457 = vadd.f32 %v4418, %v4444
        %v4458 = vadd.f32 %v4419, %v4444
        %v4459 = vadd.f32 %v4420, %v4444
        %v4460 = vadd.f32 %v4421, %v4444
        %v4461 = vadd.f32 %v4422, %v4444
        %v4462 = vadd.f32 %v4423, %v4444
        %v4463 = vadd.f32 %v4424, %v4444
        %v4464 = vadd.f32 %v4425, %v4444
        %v4465 = vadd.f32 %v4426, %v4444
        %v4466 = vadd.f32 %v4427, %v4444
        %v4467 = vadd.f32 %v4428, %v4444
        %v4468 = vadd.f32 %v4429, %v4444
        %v4469 = vadd.f32 %v4430, %v4444
        %v4470 = vadd.f32 %v4431, %v4444
        %v4471 = vadd.f32 %v4432, %v4444
        %v4472 = vadd.f32 %v4433, %v4444
        %v4473 = vadd.f32 %v4434, %v4444
        %v4474 = vadd.f32 %v4435, %v4444
        %v4475 = vadd.f32 %v4436, %v4444
        %v4476 = vadd.f32 %v4437, %v4444
        %v4477 = vadd.f32 %v4438, %v4444
        %v4478 = vadd.f32 %v4446, %v2683
        %v4479 = vadd.f32 %v4447, %v2684
        %v4480 = vadd.f32 %v4448, %v2685
        %v4481 = vadd.f32 %v4449, %v2686
        %v4482 = vadd.f32 %v4450, %v2687
        %v4483 = vadd.f32 %v4451, %v2688
        %v4484 = vadd.f32 %v4452, %v2689
        %v4485 = vadd.f32 %v4453, %v2690
        %v4486 = vadd.f32 %v4454, %v2691
        %v4487 = vadd.f32 %v4455, %v2692
        %v4488 = vadd.f32 %v4456, %v2693
        %v4489 = vadd.f32 %v4457, %v2694
        %v4490 = vadd.f32 %v4458, %v2695
        %v4491 = vadd.f32 %v4459, %v2696
        %v4492 = vadd.f32 %v4460, %v2697
        %v4493 = vadd.f32 %v4461, %v2698
        %v4494 = vadd.f32 %v4462, %v2699
        %v4495 = vadd.f32 %v4463, %v2700
        %v4496 = vadd.f32 %v4464, %v2701
        %v4497 = vadd.f32 %v4465, %v2702
        %v4498 = vadd.f32 %v4466, %v2703
        %v4499 = vadd.f32 %v4467, %v2704
        %v4500 = vadd.f32 %v4468, %v2705
        %v4501 = vadd.f32 %v4469, %v2706
        %v4502 = vadd.f32 %v4470, %v2707
        %v4503 = vadd.f32 %v4471, %v2708
        %v4504 = vadd.f32 %v4472, %v2709
        %v4505 = vadd.f32 %v4473, %v2710
        %v4506 = vadd.f32 %v4474, %v2711
        %v4507 = vadd.f32 %v4475, %v2712
        %v4508 = vadd.f32 %v4476, %v2713
        %v4509 = vadd.f32 %v4477, %v2714
        %v4510 = vmax.f32 %v4478, 0.0
        %v4511 = vmax.f32 %v4479, 0.0
        %v4512 = vmax.f32 %v4480, 0.0
        %v4513 = vmax.f32 %v4481, 0.0
        %v4514 = vmax.f32 %v4482, 0.0
        %v4515 = vmax.f32 %v4483, 0.0
        %v4516 = vmax.f32 %v4484, 0.0
        %v4517 = vmax.f32 %v4485, 0.0
        %v4518 = vmax.f32 %v4486, 0.0
        %v4519 = vmax.f32 %v4487, 0.0
        %v4520 = vmax.f32 %v4488, 0.0
        %v4521 = vmax.f32 %v4489, 0.0
        %v4522 = vmax.f32 %v4490, 0.0
        %v4523 = vmax.f32 %v4491, 0.0
        %v4524 = vmax.f32 %v4492, 0.0
        %v4525 = vmax.f32 %v4493, 0.0
        %v4526 = vmax.f32 %v4494, 0.0
        %v4527 = vmax.f32 %v4495, 0.0
        %v4528 = vmax.f32 %v4496, 0.0
        %v4529 = vmax.f32 %v4497, 0.0
        %v4530 = vmax.f32 %v4498, 0.0
        %v4531 = vmax.f32 %v4499, 0.0
        %v4532 = vmax.f32 %v4500, 0.0
        %v4533 = vmax.f32 %v4501, 0.0
        %v4534 = vmax.f32 %v4502, 0.0
        %v4535 = vmax.f32 %v4503, 0.0
        %v4536 = vmax.f32 %v4504, 0.0
        %v4537 = vmax.f32 %v4505, 0.0
        %v4538 = vmax.f32 %v4506, 0.0
        %v4539 = vmax.f32 %v4507, 0.0
        %v4540 = vmax.f32 %v4508, 0.0
        %v4541 = vmax.f32 %v4509, 0.0
        %4542 = vst.msk [vmem:[%s271] sm:$0xff] %vm784, %v4510
        %4543 = vst.msk [vmem:[%s271 + $0x8] sm:$0xff] %vm784, %v4511
        %4544 = vst.msk [vmem:[%s271 + $0x10] sm:$0xff] %vm784, %v4512
        %4545 = vst.msk [vmem:[%s271 + $0x18] sm:$0xff] %vm784, %v4513
        %4546 = vst.msk [vmem:[%s271 + $0x20] sm:$0xff] %vm784, %v4514
        %4547 = vst.msk [vmem:[%s271 + $0x28] sm:$0xff] %vm784, %v4515
        %4548 = vst.msk [vmem:[%s271 + $0x30] sm:$0xff] %vm784, %v4516
        %4549 = vst.msk [vmem:[%s271 + $0x38] sm:$0xff] %vm784, %v4517
        %4550 = vst.msk [vmem:[%s271 + $0x40] sm:$0xff] %vm784, %v4518
        %4551 = vst.msk [vmem:[%s271 + $0x48] sm:$0xff] %vm784, %v4519
        %4552 = vst.msk [vmem:[%s271 + $0x50] sm:$0xff] %vm784, %v4520
        %4553 = vst.msk [vmem:[%s271 + $0x58] sm:$0xff] %vm784, %v4521
        %4554 = vst.msk [vmem:[%s271 + $0x60] sm:$0xff] %vm784, %v4522
        %4555 = vst.msk [vmem:[%s271 + $0x68] sm:$0xff] %vm784, %v4523
        %4556 = vst.msk [vmem:[%s271 + $0x70] sm:$0xff] %vm784, %v4524
        %4557 = vst.msk [vmem:[%s271 + $0x78] sm:$0xff] %vm784, %v4525
        %4558 = vst.msk [vmem:[%s271 + $0x80] sm:$0xff] %vm784, %v4526
        %4559 = vst.msk [vmem:[%s271 + $0x88] sm:$0xff] %vm784, %v4527
        %4560 = vst.msk [vmem:[%s271 + $0x90] sm:$0xff] %vm784, %v4528
        %4561 = vst.msk [vmem:[%s271 + $0x98] sm:$0xff] %vm784, %v4529
        %4562 = vst.msk [vmem:[%s271 + $0xa0] sm:$0xff] %vm784, %v4530
        %4563 = vst.msk [vmem:[%s271 + $0xa8] sm:$0xff] %vm784, %v4531
        %4564 = vst.msk [vmem:[%s271 + $0xb0] sm:$0xff] %vm784, %v4532
        %4565 = vst.msk [vmem:[%s271 + $0xb8] sm:$0xff] %vm784, %v4533
        %4566 = vst.msk [vmem:[%s271 + $0xc0] sm:$0xff] %vm784, %v4534
        %4567 = vst.msk [vmem:[%s271 + $0xc8] sm:$0xff] %vm784, %v4535
        %4568 = vst.msk [vmem:[%s271 + $0xd0] sm:$0xff] %vm784, %v4536
        %4569 = vst.msk [vmem:[%s271 + $0xd8] sm:$0xff] %vm784, %v4537
        %4570 = vst.msk [vmem:[%s271 + $0xe0] sm:$0xff] %vm784, %v4538
        %4571 = vst.msk [vmem:[%s271 + $0xe8] sm:$0xff] %vm784, %v4539
        %4572 = vst.msk [vmem:[%s271 + $0xf0] sm:$0xff] %vm784, %v4540
        %4573 = vst.msk [vmem:[%s271 + $0xf8] sm:$0xff] %vm784, %v4541
        %s4574 = sand.u32 %s181, 1
        %s4575 = scalar_lea.sflag [#allocation6], %s4574
        %s4576 = sand.u32 %s181, 1
        %s4577 = smul.addr %s4576, 256
        %s4578 = scalar_lea.vmem [#allocation5], %s4577
        // Predicated region
        $region49: #{residual_block.1} parent=47 // pred_check
          %p4579 = pneg %p191
        $region50: #{residual_block.1} parent=47 // pred_check_branch
          %4581 = sbr.rel (%p4579) target = $region52
        $region51: #{residual_block.1} parent=47 // pred_region
          %s4583 = ssub.s32 4096, 4096
          %4584 = vsyncadd %s4575, %s4583
          %s4585 = smul.addr %s21, 32
          %s4586 = smul.addr %s4585, 128
          %s4587 = scalar_lea.hbm %s7, %s4586
          %s4588 = sshll.u32 %s4578, 4
          %s4589 = int_to_ptr.vmem [resolvable:$true] %s4588
          %4594 = dma.vmem_to_hbm [thread:$0]  %s4589, 4096, %s4587, %s4575, 128, 128, 8
        $region52: #{residual_block.1} parent=47 // pred_fallthru
          _
      $region48: #{residual_block.1} parent=5 // pred_fallthru
        _
      %p4595 = scmp.le.s32.totalorder 2, %s16
      // Predicated region
      $region53: #{residual_block.1} parent=5 // pred_check
        %p4596 = pneg %p4595
      $region54: #{residual_block.1} parent=5 // pred_check_branch
        %4598 = sbr.rel (%p4596) target = $region56
      $region55: #{residual_block.1} parent=5 // pred_region
        %s4599 = ssub.s32 %s16, 2
        // Predicated region
        $region57: #{residual_block.1} parent=55 // pred_check
          %p4600 = pneg %p197
        $region58: #{residual_block.1} parent=55 // pred_check_branch
          %4602 = sbr.rel (%p4600) target = $region60
        $region59: #{residual_block.1} parent=55 // pred_region
          %s4603 = sand.u32 %s182, 1
          %s4604 = scalar_lea.sflag [#allocation6], %s4603
          %s4605 = sand.u32 %s182, 1
          %s4606 = smul.addr %s4605, 256
          %s4607 = scalar_lea.vmem [#allocation5], %s4606
          %4608 = dma.done %s4604, 4096
        $region60: #{residual_block.1} parent=55 // pred_fallthru
          _
      $region56: #{residual_block.1} parent=5 // pred_fallthru
        _
    $region6: #{residual_block.1} parent=1 // loop_footer
      %s20 = sadd.s32 1, %s16
    $region7: #{residual_block.1} parent=1 // loop_footer_branch
      %15 = sbr.rel target = $region3
    $region8: #{residual_block.1} parent=1 // loop_exit
      _
    %4609 = vsyncpa [#allocation6], 1
    %s4610 = scalar_lea.sflag [#allocation6], 1
    %4611 = vsyncpa %s4610, 1

</llo_original>
